<compile_context>
chip_gen: v7x
topology: tpu7x:2x2x1
jax: 0.10.0
libtpu: 0.0.40
codegen_flags: <defaults>
</compile_context>

<pallas_src>
import functools
import math

import jax
import jax.numpy as jnp
from jax.experimental import pallas as pl
from jax.experimental.pallas import tpu as pltpu


# ----------------------------- helpers ---------------------------------------

def _round_up(x, m):
    return ((x + m - 1) // m) * m


def _tile(dim, cap, gran):
    """Return (tile, padded_dim) with tile | padded_dim, tile gran-aligned."""
    if dim <= cap:
        t = _round_up(dim, gran)
        return t, t
    return cap, _round_up(dim, cap)


def _pad2(x, r, c):
    R, C = x.shape
    if R == r and C == c:
        return x
    return jnp.pad(x, ((0, r - R), (0, c - C)))


# ----------------------- tiled matmul (+fused BN/ReLU/bias/act) ---------------

def _mm_kernel(x_ref, w_ref, b_ref, o_ref, acc_ref, *, out_act):
    @pl.when(pl.program_id(2) == 0)
    def _init():
        acc_ref[...] = jnp.zeros_like(acc_ref)

    acc_ref[...] += jnp.dot(x_ref[...], w_ref[...],
                            preferred_element_type=jnp.float32)

    @pl.when(pl.program_id(2) == pl.num_programs(2) - 1)
    def _fin():
        y = acc_ref[...] + b_ref[...]
        if out_act == "relu":
            y = jnp.maximum(y, 0.0)
        elif out_act == "sigmoid":
            y = jax.nn.sigmoid(y)
        o_ref[...] = y


def _mm_bn_kernel(x_ref, s_ref, t_ref, w_ref, b_ref, o_ref, acc_ref, *, out_act):
    """Matmul whose prologue applies a fused BatchNorm+ReLU to the input tile."""
    @pl.when(pl.program_id(2) == 0)
    def _init():
        acc_ref[...] = jnp.zeros_like(acc_ref)

    x = jnp.maximum(x_ref[...] * s_ref[...] + t_ref[...], 0.0)
    acc_ref[...] += jnp.dot(x.astype(jnp.bfloat16), w_ref[...],
                            preferred_element_type=jnp.float32)

    @pl.when(pl.program_id(2) == pl.num_programs(2) - 1)
    def _fin():
        y = acc_ref[...] + b_ref[...]
        if out_act == "relu":
            y = jnp.maximum(y, 0.0)
        elif out_act == "sigmoid":
            y = jax.nn.sigmoid(y)
        o_ref[...] = y


def matmul_fused(x, w, b=None, *, out_act="none", bn=None):
    """y = out_act(prologue(x) @ w + b).

    prologue(x) = relu(x*scale + shift) when bn=(scale, shift) is given
    (BatchNorm+ReLU fused into a 1x1 conv), identity otherwise.  bf16 MXU
    inputs, f32 accumulation, (M,N,K)-tiled grid with a VMEM accumulator.
    """
    M, K = x.shape
    Kw, N = w.shape
    assert K == Kw
    tm, Mp = _tile(M, 256, 8)
    tk, Kp = _tile(K, 512, 128)
    tn, Np = _tile(N, 256, 128)
    grid = (Mp // tm, Np // tn, Kp // tk)

    wp = _pad2(w.astype(jnp.bfloat16), Kp, Np)
    if b is None:
        b = jnp.zeros((N,), jnp.float32)
    bp = _pad2(b.reshape(1, N).astype(jnp.float32), 1, Np)

    cost = pl.CostEstimate(flops=2 * Mp * Np * Kp, transcendentals=0,
                           bytes_accessed=Mp * Kp * 4 + Kp * Np * 2 + Mp * Np * 4)
    cparams = pltpu.CompilerParams(
        dimension_semantics=("parallel", "parallel", "arbitrary"))
    out_shape = jax.ShapeDtypeStruct((Mp, Np), jnp.float32)
    out_spec = pl.BlockSpec((tm, tn), lambda i, j, k: (i, j))
    scratch = [pltpu.VMEM((tm, tn), jnp.float32)]

    if bn is None:
        xp = _pad2(x.astype(jnp.bfloat16), Mp, Kp)
        out = pl.pallas_call(
            functools.partial(_mm_kernel, out_act=out_act),
            out_shape=out_shape, grid=grid,
            in_specs=[pl.BlockSpec((tm, tk), lambda i, j, k: (i, k)),
                      pl.BlockSpec((tk, tn), lambda i, j, k: (k, j)),
                      pl.BlockSpec((1, tn), lambda i, j, k: (0, j))],
            out_specs=out_spec, scratch_shapes=scratch,
            compiler_params=cparams, cost_estimate=cost,
        )(xp, wp, bp)
    else:
        scale, shift = bn
        xp = _pad2(x.astype(jnp.float32), Mp, Kp)
        sp = _pad2(scale.reshape(1, K).astype(jnp.float32), 1, Kp)
        tp = _pad2(shift.reshape(1, K).astype(jnp.float32), 1, Kp)
        out = pl.pallas_call(
            functools.partial(_mm_bn_kernel, out_act=out_act),
            out_shape=out_shape, grid=grid,
            in_specs=[pl.BlockSpec((tm, tk), lambda i, j, k: (i, k)),
                      pl.BlockSpec((1, tk), lambda i, j, k: (0, k)),
                      pl.BlockSpec((1, tk), lambda i, j, k: (0, k)),
                      pl.BlockSpec((tk, tn), lambda i, j, k: (k, j)),
                      pl.BlockSpec((1, tn), lambda i, j, k: (0, j))],
            out_specs=out_spec, scratch_shapes=scratch,
            compiler_params=cparams, cost_estimate=cost,
        )(xp, sp, tp, wp, bp)
    return out[:M, :N]


# ----------------------- BatchNorm: stats + apply ------------------------------

def _bn_stats_kernel(x_ref, sum_ref, sq_ref):
    @pl.when(pl.program_id(1) == 0)
    def _init():
        sum_ref[...] = jnp.zeros_like(sum_ref)
        sq_ref[...] = jnp.zeros_like(sq_ref)

    x = x_ref[...]
    sum_ref[...] += jnp.sum(x, axis=0, keepdims=True)
    sq_ref[...] += jnp.sum(x * x, axis=0, keepdims=True)


def bn_scale_shift(x2d, gamma, beta, eps=1e-5):
    """Training-mode BatchNorm stats over rows -> per-channel (scale, shift)."""
    M, C = x2d.shape
    tm, Mp = _tile(M, 512, 8)
    tc, Cp = _tile(C, 512, 128)
    xp = _pad2(x2d.astype(jnp.float32), Mp, Cp)     # zero rows/cols add nothing
    s, q = pl.pallas_call(
        _bn_stats_kernel,
        out_shape=(jax.ShapeDtypeStruct((1, Cp), jnp.float32),
                   jax.ShapeDtypeStruct((1, Cp), jnp.float32)),
        grid=(Cp // tc, Mp // tm),
        in_specs=[pl.BlockSpec((tm, tc), lambda c, m: (m, c))],
        out_specs=(pl.BlockSpec((1, tc), lambda c, m: (0, c)),
                   pl.BlockSpec((1, tc), lambda c, m: (0, c))),
        compiler_params=pltpu.CompilerParams(
            dimension_semantics=("parallel", "arbitrary")),
    )(xp)
    mean = s[0, :C] / M
    var = q[0, :C] / M - mean * mean            # biased var = PyTorch train mode
    scale = gamma * jax.lax.rsqrt(var + eps)
    shift = beta - mean * scale
    return scale, shift


def _scale_shift_act_kernel(x_ref, s_ref, t_ref, o_ref, *, act):
    y = x_ref[...] * s_ref[...] + t_ref[...]
    if act == "relu":
        y = jnp.maximum(y, 0.0)
    o_ref[...] = y


def scale_shift_act(x2d, scale, shift, act="relu"):
    """Tiled per-channel affine (+ReLU): y = act(x*scale + shift)."""
    M, C = x2d.shape
    tm, Mp = _tile(M, 512, 8)
    tc, Cp = _tile(C, 512, 128)
    xp = _pad2(x2d.astype(jnp.float32), Mp, Cp)
    sp = _pad2(scale.reshape(1, C).astype(jnp.float32), 1, Cp)
    tp = _pad2(shift.reshape(1, C).astype(jnp.float32), 1, Cp)
    out = pl.pallas_call(
        functools.partial(_scale_shift_act_kernel, act=act),
        out_shape=jax.ShapeDtypeStruct((Mp, Cp), jnp.float32),
        grid=(Mp // tm, Cp // tc),
        in_specs=[pl.BlockSpec((tm, tc), lambda i, j: (i, j)),
                  pl.BlockSpec((1, tc), lambda i, j: (0, j)),
                  pl.BlockSpec((1, tc), lambda i, j: (0, j))],
        out_specs=pl.BlockSpec((tm, tc), lambda i, j: (i, j)),
        compiler_params=pltpu.CompilerParams(
            dimension_semantics=("parallel", "parallel")),
    )(xp, sp, tp)
    return out[:M, :C]


# ----------------------- fused AttentionNet (VPU) ------------------------------

def _attention_kernel(x_ref, w_ref, b_ref, o_ref, *, att_w, relu_layer_ids):
    # x_ref: (W, tm, tc); weights/biases live in SMEM as flat f32 scalars.
    xs = [x_ref[wi] for wi in range(att_w)]

    def dense(xs, li, act):
        ys = []
        for wo in range(att_w):
            acc = xs[0] * w_ref[li * att_w * att_w + wo * att_w] \
                + b_ref[li * att_w + wo]
            for wi in range(1, att_w):
                acc = acc + xs[wi] * w_ref[li * att_w * att_w + wo * att_w + wi]
            if act == "relu":
                acc = jnp.maximum(acc, 0.0)
            else:
                acc = jax.nn.sigmoid(acc)
            ys.append(acc)
        return ys

    for li in relu_layer_ids:
        xs = dense(xs, li, "relu")
    ys = dense(xs, 4, "sigmoid")
    for wo in range(att_w):
        o_ref[wo] = ys[wo]


def attention_apply(att_params, out_nhwc, hidden_layers):
    """AttentionNet along the PyTorch width axis, fused into one VPU kernel."""
    N, H, W, C = out_nhwc.shape
    names = ("l1", "l2", "l3", "l4", "l5")
    # pack as A.T so [li, wo, wi] multiplies x[wi] for output wo  (y = x @ A + b)
    w_flat = jnp.stack([att_params[n]["w"].T for n in names]).reshape(-1)
    w_flat = w_flat.astype(jnp.float32)
    b_flat = jnp.stack([att_params[n]["b"] for n in names]).reshape(-1)
    b_flat = b_flat.astype(jnp.float32)

    M = N * H
    tm, Mp = _tile(M, 256, 8)
    tc, Cp = _tile(C, 256, 128)
    x = jnp.transpose(out_nhwc, (2, 0, 1, 3)).reshape(W, M, C)
    if (Mp, Cp) != (M, C):
        x = jnp.pad(x, ((0, 0), (0, Mp - M), (0, Cp - C)))
    relu_ids = tuple([0] + [li for li in (1, 2, 3) if hidden_layers >= li + 1])

    att = pl.pallas_call(
        functools.partial(_attention_kernel, att_w=W, relu_layer_ids=relu_ids),
        out_shape=jax.ShapeDtypeStruct((W, Mp, Cp), jnp.float32),
        grid=(Mp // tm, Cp // tc),
        in_specs=[
            pl.BlockSpec((W, tm, tc), lambda i, c: (0, i, c)),
            pl.BlockSpec(memory_space=pltpu.MemorySpace.SMEM),
            pl.BlockSpec(memory_space=pltpu.MemorySpace.SMEM),
        ],
        out_specs=pl.BlockSpec((W, tm, tc), lambda i, c: (0, i, c)),
        compiler_params=pltpu.CompilerParams(
            dimension_semantics=("parallel", "parallel")),
    )(x, w_flat, b_flat)
    att = att[:, :M, :C].reshape(W, N, H, C)
    return jnp.transpose(att, (1, 2, 0, 3))          # (N, H, W, C)


# ----------------------- (out * attention) global avg pool ---------------------

def _mul_pool_kernel(a_ref, b_ref, o_ref, *, inv_hw):
    @pl.when(pl.program_id(1) == 0)
    def _init():
        o_ref[...] = jnp.zeros_like(o_ref)
    o_ref[...] += jnp.sum(a_ref[...] * b_ref[...], axis=1) * inv_hw


def mul_global_avg_pool(a_nhwc, b_nhwc):
    """(a * b) followed by adaptive_avg_pool2d((1,1)) -> (N, C)."""
    N, H, W, C = a_nhwc.shape
    HW = H * W
    th, HWp = _tile(HW, 512, 8)
    tc, Cp = _tile(C, 512, 128)
    a = a_nhwc.reshape(N, HW, C).astype(jnp.float32)
    b = b_nhwc.reshape(N, HW, C).astype(jnp.float32)
    if (HWp, Cp) != (HW, C):
        a = jnp.pad(a, ((0, 0), (0, HWp - HW), (0, Cp - C)))
        b = jnp.pad(b, ((0, 0), (0, HWp - HW), (0, Cp - C)))
    out = pl.pallas_call(
        functools.partial(_mul_pool_kernel, inv_hw=1.0 / HW),
        out_shape=jax.ShapeDtypeStruct((N, Cp), jnp.float32),
        grid=(Cp // tc, HWp // th),
        in_specs=[pl.BlockSpec((N, th, tc), lambda c, h: (0, h, c)),
                  pl.BlockSpec((N, th, tc), lambda c, h: (0, h, c))],
        out_specs=pl.BlockSpec((N, tc), lambda c, h: (0, c)),
        compiler_params=pltpu.CompilerParams(
            dimension_semantics=("parallel", "arbitrary")),
    )(a, b)
    return out[:, :C]


# ----------------------- conv / pool glue --------------------------------------

def _im2col(x_nhwc, kh, kw, stride, pad):
    # TODO(synk): express the kh*kw taps as an extra K grid axis of the matmul
    # (index_map offsets into the padded NHWC map) to avoid materializing the
    # kh*kw-times-larger patch matrix in HBM.
    N, H, W, C = x_nhwc.shape
    Ho = (H + 2 * pad - kh) // stride + 1
    Wo = (W + 2 * pad - kw) // stride + 1
    xp = jnp.pad(x_nhwc.astype(jnp.bfloat16),
                 ((0, 0), (pad, pad), (pad, pad), (0, 0)))
    cols = [xp[:, i:i + stride * Ho:stride, j:j + stride * Wo:stride, :]
            for i in range(kh) for j in range(kw)]
    patches = jnp.concatenate(cols, axis=-1)          # (N, Ho, Wo, kh*kw*C)
    return patches.reshape(N * Ho * Wo, kh * kw * C), Ho, Wo


def conv1x1(x_nhwc, w_hwio, b=None, *, out_act="none", bn=None):
    N, H, W, C = x_nhwc.shape
    cout = w_hwio.shape[-1]
    y = matmul_fused(x_nhwc.reshape(N * H * W, C), w_hwio.reshape(C, cout), b,
                     out_act=out_act, bn=bn)
    return y.reshape(N, H, W, cout)


def conv2d(x_nhwc, w_hwio, b=None, *, stride=1, pad=0, out_act="none"):
    kh, kw, cin, cout = w_hwio.shape
    if (kh, kw, stride, pad) == (1, 1, 1, 0):
        return conv1x1(x_nhwc, w_hwio, b, out_act=out_act)
    N = x_nhwc.shape[0]
    patches, Ho, Wo = _im2col(x_nhwc, kh, kw, stride, pad)
    y = matmul_fused(patches, w_hwio.reshape(kh * kw * cin, cout), b,
                     out_act=out_act)
    return y.reshape(N, Ho, Wo, cout)


def maxpool_3x3_s2_p1(x_nhwc):
    # TODO(synk): could be fused into the stem BN epilogue; the 9 shifted views
    # are combined with incrementally-fused jnp.maximum (no 9x stacked copy).
    N, H, W, C = x_nhwc.shape
    Ho = (H + 2 - 3) // 2 + 1
    Wo = (W + 2 - 3) // 2 + 1
    xp = jnp.pad(x_nhwc, ((0, 0), (1, 1), (1, 1), (0, 0)),
                 constant_values=-jnp.inf)
    out = None
    for i in range(3):
        for j in range(3):
            v = xp[:, i:i + 2 * Ho:2, j:j + 2 * Wo:2, :]
            out = v if out is None else jnp.maximum(out, v)
    return out


def avgpool_2x2_s2(x_nhwc):
    # TODO(synk): could be fused into the transition-conv epilogue.
    N, H, W, C = x_nhwc.shape
    return x_nhwc.reshape(N, H // 2, 2, W // 2, 2, C).mean(axis=(2, 4))


# ----------------------------- parameters --------------------------------------

def init_params(key, *, growth_rate, block_config, num_init_features, bn_size,
                num_classes, att_size, reducer_channels, loc_in_dim):
    keys = iter(jax.random.split(key, 256))
    nk = lambda: next(keys)

    def conv_w(kh, kw, cin, cout):            # kaiming_normal_, HWIO layout
        fan_in = cin * kh * kw
        return jax.random.normal(nk(), (kh, kw, cin, cout),
                                 jnp.float32) * math.sqrt(2.0 / fan_in)

    def lin_w(cin, cout):                     # (in, out): y = x @ w + b
        return jax.random.normal(nk(), (cin, cout),
                                 jnp.float32) * math.sqrt(1.0 / cin)

    p = {"conv0_w": conv_w(7, 7, 3, num_init_features),
         "norm0": (jnp.ones((num_init_features,), jnp.float32),
                   jnp.zeros((num_init_features,), jnp.float32))}

    blocks = []
    c = num_init_features
    for bi, num_layers in enumerate(block_config):
        layers = []
        for _ in range(num_layers):
            layers.append({
                "norm1": (jnp.ones((c,), jnp.float32), jnp.zeros((c,), jnp.float32)),
                "conv1_w": conv_w(1, 1, c, bn_size * growth_rate),
                "norm2": (jnp.ones((bn_size * growth_rate,), jnp.float32),
                          jnp.zeros((bn_size * growth_rate,), jnp.float32)),
                "conv2_w": conv_w(3, 3, bn_size * growth_rate, growth_rate),
            })
            c += growth_rate
        block = {"layers": layers}
        if bi != len(block_config) - 1:
            block["trans_norm"] = (jnp.ones((c,), jnp.float32),
                                   jnp.zeros((c,), jnp.float32))
            block["trans_conv_w"] = conv_w(1, 1, c, c // 2)
            c //= 2
        blocks.append(block)
    p["blocks"] = blocks
    p["norm5"] = (jnp.ones((c,), jnp.float32), jnp.zeros((c,), jnp.float32))

    # 1x1 conv reducers (scaled analogue of 1664->64->32->16->8), bias=True.
    reds, rin = [], c
    for rout in reducer_channels:
        reds.append({"w": conv_w(1, 1, rin, rout),
                     "b": jax.random.normal(nk(), (rout,), jnp.float32) * 0.01})
        rin = rout
    p["reducers"] = reds

    # AttentionNet(att_size): five Linear(att_size, att_size), bias init to 0.
    p["attention"] = {name: {"w": lin_w(att_size, att_size),
                             "b": jnp.zeros((att_size,), jnp.float32)}
                      for name in ("l1", "l2", "l3", "l4", "l5")}

    p["classifier_locations"] = {"w": lin_w(loc_in_dim, 2),
                                 "b": jnp.zeros((2,), jnp.float32)}
    p["classifier"] = {"w": lin_w(c, num_classes),
                       "b": jnp.zeros((num_classes,), jnp.float32)}
    return p


# ------------------------------- forward ----------------------------------------

def densenet_multi_att_forward(params, x_nchw, *, hidden_layers_att=1):
    x = jnp.transpose(x_nchw, (0, 2, 3, 1)).astype(jnp.float32)  # NCHW -> NHWC

    # stem: conv0 -> norm0 -> relu0 -> pool0
    x = conv2d(x, params["conv0_w"], stride=2, pad=3)
    N, H, W, C = x.shape
    sc, sh = bn_scale_shift(x.reshape(-1, C), *params["norm0"])
    x = scale_shift_act(x.reshape(-1, C), sc, sh, act="relu").reshape(N, H, W, C)
    x = maxpool_3x3_s2_p1(x)

    feats = x
    nblocks = len(params["blocks"])
    for bi, block in enumerate(params["blocks"]):
        for layer in block["layers"]:
            N, H, W, C = feats.shape
            f2 = feats.reshape(-1, C)
            # norm1 + relu fused into the 1x1 bottleneck conv (one pass on feats)
            sc1, sh1 = bn_scale_shift(f2, *layer["norm1"])
            cb = layer["conv1_w"].shape[-1]
            h = matmul_fused(f2, layer["conv1_w"].reshape(C, cb),
                             bn=(sc1, sh1)).reshape(N, H, W, cb)
            # norm2 + relu applied before the zero-padded 3x3 conv
            sc2, sh2 = bn_scale_shift(h.reshape(-1, cb), *layer["norm2"])
            h = scale_shift_act(h.reshape(-1, cb), sc2, sh2,
                                act="relu").reshape(N, H, W, cb)
            hh = conv2d(h, layer["conv2_w"], stride=1, pad=1)
            # TODO(synk): replace the O(L^2) concat with a preallocated channel
            # buffer written in place via out_specs offsets + input_output_aliases.
            feats = jnp.concatenate([feats, hh], axis=-1)
        if bi != nblocks - 1:
            N, H, W, C = feats.shape
            sct, sht = bn_scale_shift(feats.reshape(-1, C), *block["trans_norm"])
            ct = block["trans_conv_w"].shape[-1]
            t = matmul_fused(feats.reshape(-1, C),
                             block["trans_conv_w"].reshape(C, ct),
                             bn=(sct, sht)).reshape(N, H, W, ct)
            feats = avgpool_2x2_s2(t)

    # norm5 + F.relu
    N, H, W, C = feats.shape
    sc5, sh5 = bn_scale_shift(feats.reshape(-1, C), *params["norm5"])
    out = scale_shift_act(feats.reshape(-1, C), sc5, sh5,
                          act="relu").reshape(N, H, W, C)

    # AttentionNet along the PyTorch width axis (fused multi-layer VPU kernel)
    att = attention_apply(params["attention"], out, hidden_layers_att)

    # 1x1 conv reducers (+ReLU) on the attention map (all_in_1=False path)
    p = att
    for red in params["reducers"]:
        p = conv1x1(p, red["w"], red["b"], out_act="relu")
    out_pos = jnp.transpose(p, (0, 3, 1, 2)).reshape(N, -1)   # PyTorch C,H,W order
    locations = matmul_fused(out_pos, params["classifier_locations"]["w"],
                             params["classifier_locations"]["b"])

    pooled = mul_global_avg_pool(out, att)                    # (N, C)
    radiographical_findings = matmul_fused(
        pooled, params["classifier"]["w"], params["classifier"]["b"])
    return radiographical_findings, locations


# --------------------------------- demo ------------------------------------------

if __name__ == "__main__":
    key = jax.random.PRNGKey(0)
    # Scaled-down DenseNet-BC config so shapes stay small and self-consistent:
    # final feature map is (2, 4, 4, 32) -> AttentionNet size = W = 4, and the
    # flattened reducer output (2ch * 4 * 4 = 32) equals num_features, matching
    # the module's Linear(num_features, 2) classifier_locations.
    cfg = dict(growth_rate=8, block_config=(2, 2), num_init_features=16,
               bn_size=2, num_classes=10)
    k_param, k_x = jax.random.split(key)
    params = init_params(k_param, **cfg, att_size=4,
                         reducer_channels=(16, 8, 4, 2), loc_in_dim=32)

    x = jax.random.normal(k_x, (2, 3, 32, 32), jnp.float32)   # NCHW, like PyTorch

    fwd = jax.jit(functools.partial(densenet_multi_att_forward,
                                    hidden_layers_att=1))
    findings, locations = fwd(params, x)
    jax.block_until_ready((findings, locations))
    assert findings.shape == (2, 10) and locations.shape == (2, 2)
    assert jnp.all(jnp.isfinite(findings)) and jnp.all(jnp.isfinite(locations))
    print("KERNEL_OK")
</pallas_src>

<mosaic_0001>
module attributes {stable_mosaic.version = 11 : i64} {
  func.func @_mm_kernel(%arg0: i32, %arg1: i32, %arg2: i32, %arg3: memref<256x256xbf16, #tpu.memory_space<vmem>>, %arg4: memref<256x128xbf16, #tpu.memory_space<vmem>>, %arg5: memref<1x128xf32, #tpu.memory_space<vmem>>, %arg6: memref<256x128xf32, #tpu.memory_space<vmem>>, %arg7: memref<256x128xf32, #tpu.memory_space<vmem>>) attributes {dimension_semantics = [#tpu.dimension_semantics<parallel>, #tpu.dimension_semantics<parallel>, #tpu.dimension_semantics<arbitrary>], iteration_bounds = array<i64: 2, 1, 1>, scalar_prefetch = 0 : i64, scratch_operands = 1 : i64, tpu.core_type = #tpu.core_type<tc>, window_params = [{transform_indices = @transform_0, window_bounds = array<i64: 256, 256>}, {transform_indices = @transform_1, window_bounds = array<i64: 256, 128>}, {transform_indices = @transform_2, window_bounds = array<i64: 1, 128>}, {transform_indices = @transform_3, window_bounds = array<i64: 256, 128>}]} {
    %c0_i32 = arith.constant 0 : i32
    %0 = arith.cmpi eq, %arg2, %c0_i32 : i32
    %1 = arith.extui %0 : i1 to i32
    %c0_i32_0 = arith.constant 0 : i32
    %2 = arith.cmpi ne, %1, %c0_i32_0 : i32
    scf.if %2 {
      %cst_10 = arith.constant 0.000000e+00 : f32
      %12 = vector.broadcast %cst_10 : f32 to vector<256x128xf32>
      %c0_11 = arith.constant 0 : index
      %c0_12 = arith.constant 0 : index
      %13 = vector.load %arg7[%c0_11, %c0_12] : memref<256x128xf32, #tpu.memory_space<vmem>>, vector<256x128xf32>
      tpu.vector_store %arg7[%c0_11, %c0_12], %12 {strides = array<i32>} : memref<256x128xf32, #tpu.memory_space<vmem>>, vector<256x128xf32>,
    } else {
    }
    %c0 = arith.constant 0 : index
    %c0_1 = arith.constant 0 : index
    %3 = vector.load %arg7[%c0, %c0_1] : memref<256x128xf32, #tpu.memory_space<vmem>>, vector<256x128xf32>
    %c0_2 = arith.constant 0 : index
    %c0_3 = arith.constant 0 : index
    %4 = vector.load %arg3[%c0_2, %c0_3] : memref<256x256xbf16, #tpu.memory_space<vmem>>, vector<256x256xbf16>
    %c0_4 = arith.constant 0 : index
    %c0_5 = arith.constant 0 : index
    %5 = vector.load %arg4[%c0_4, %c0_5] : memref<256x128xbf16, #tpu.memory_space<vmem>>, vector<256x128xbf16>
    %cst = arith.constant dense<0.000000e+00> : vector<256x128xf32>
    %6 = tpu.matmul %4, %5, %cst {dimension_numbers = #tpu.dot_dimension_numbers<[1], [0], [0], [1], [0, 0, 1, 1], [], []>} : vector<256x256xbf16>, vector<256x128xbf16>, vector<256x128xf32> -> vector<256x128xf32>
    %7 = arith.addf %3, %6 : vector<256x128xf32>
    %c0_6 = arith.constant 0 : index
    %c0_7 = arith.constant 0 : index
    %8 = vector.load %arg7[%c0_6, %c0_7] : memref<256x128xf32, #tpu.memory_space<vmem>>, vector<256x128xf32>
    tpu.vector_store %arg7[%c0_6, %c0_7], %7 {strides = array<i32>} : memref<256x128xf32, #tpu.memory_space<vmem>>, vector<256x128xf32>,
    %c0_i32_8 = arith.constant 0 : i32
    %9 = arith.cmpi eq, %arg2, %c0_i32_8 : i32
    %10 = arith.extui %9 : i1 to i32
    %c0_i32_9 = arith.constant 0 : i32
    %11 = arith.cmpi ne, %10, %c0_i32_9 : i32
    scf.if %11 {
      %c0_10 = arith.constant 0 : index
      %c0_11 = arith.constant 0 : index
      %12 = vector.load %arg7[%c0_10, %c0_11] : memref<256x128xf32, #tpu.memory_space<vmem>>, vector<256x128xf32>
      %c0_12 = arith.constant 0 : index
      %c0_13 = arith.constant 0 : index
      %13 = vector.load %arg5[%c0_12, %c0_13] : memref<1x128xf32, #tpu.memory_space<vmem>>, vector<1x128xf32>
      %14 = vector.broadcast %13 : vector<1x128xf32> to vector<256x128xf32>
      %15 = arith.addf %12, %14 : vector<256x128xf32>
      %c0_14 = arith.constant 0 : index
      %c0_15 = arith.constant 0 : index
      %16 = vector.load %arg6[%c0_14, %c0_15] : memref<256x128xf32, #tpu.memory_space<vmem>>, vector<256x128xf32>
      tpu.vector_store %arg6[%c0_14, %c0_15], %15 {strides = array<i32>} : memref<256x128xf32, #tpu.memory_space<vmem>>, vector<256x128xf32>,
    } else {
    }
    return
  }
  func.func @transform_0(%arg0: i32, %arg1: i32, %arg2: i32) -> (i32, i32) {
    %c0_i32 = arith.constant 0 : i32
    return %arg0, %arg2 : i32, i32
  }
  func.func @transform_1(%arg0: i32, %arg1: i32, %arg2: i32) -> (i32, i32) {
    %c0_i32 = arith.constant 0 : i32
    return %arg2, %arg1 : i32, i32
  }
  func.func @transform_2(%arg0: i32, %arg1: i32, %arg2: i32) -> (i32, i32) {
    %c0_i32 = arith.constant 0 : i32
    %c0_i32_0 = arith.constant 0 : i32
    return %c0_i32, %arg1 : i32, i32
  }
  func.func @transform_3(%arg0: i32, %arg1: i32, %arg2: i32) -> (i32, i32) {
    %c0_i32 = arith.constant 0 : i32
    return %arg0, %arg1 : i32, i32
  }
}

module attributes {stable_mosaic.version = 11 : i64} {
  func.func @_bn_stats_kernel(%arg0: i32, %arg1: i32, %arg2: memref<512x128xf32, #tpu.memory_space<vmem>>, %arg3: memref<1x128xf32, #tpu.memory_space<vmem>>, %arg4: memref<1x128xf32, #tpu.memory_space<vmem>>) attributes {dimension_semantics = [#tpu.dimension_semantics<parallel>, #tpu.dimension_semantics<arbitrary>], iteration_bounds = array<i64: 1, 1>, scalar_prefetch = 0 : i64, scratch_operands = 0 : i64, tpu.core_type = #tpu.core_type<tc>, window_params = [{transform_indices = @transform_0, window_bounds = array<i64: 512, 128>}, {transform_indices = @transform_1, window_bounds = array<i64: 1, 128>}, {transform_indices = @transform_2, window_bounds = array<i64: 1, 128>}]} {
    %c0_i32 = arith.constant 0 : i32
    %0 = arith.cmpi eq, %arg1, %c0_i32 : i32
    %1 = arith.extui %0 : i1 to i32
    %c0_i32_0 = arith.constant 0 : i32
    %2 = arith.cmpi ne, %1, %c0_i32_0 : i32
    scf.if %2 {
      %cst_11 = arith.constant 0.000000e+00 : f32
      %15 = vector.broadcast %cst_11 : f32 to vector<1x128xf32>
      %c0_12 = arith.constant 0 : index
      %c0_13 = arith.constant 0 : index
      %16 = vector.load %arg3[%c0_12, %c0_13] : memref<1x128xf32, #tpu.memory_space<vmem>>, vector<1x128xf32>
      tpu.vector_store %arg3[%c0_12, %c0_13], %15 {strides = array<i32>} : memref<1x128xf32, #tpu.memory_space<vmem>>, vector<1x128xf32>,
      %cst_14 = arith.constant 0.000000e+00 : f32
      %17 = vector.broadcast %cst_14 : f32 to vector<1x128xf32>
      %c0_15 = arith.constant 0 : index
      %c0_16 = arith.constant 0 : index
      %18 = vector.load %arg4[%c0_15, %c0_16] : memref<1x128xf32, #tpu.memory_space<vmem>>, vector<1x128xf32>
      tpu.vector_store %arg4[%c0_15, %c0_16], %17 {strides = array<i32>} : memref<1x128xf32, #tpu.memory_space<vmem>>, vector<1x128xf32>,
    } else {
    }
    %c0 = arith.constant 0 : index
    %c0_1 = arith.constant 0 : index
    %3 = vector.load %arg2[%c0, %c0_1] : memref<512x128xf32, #tpu.memory_space<vmem>>, vector<512x128xf32>
    %c0_2 = arith.constant 0 : index
    %c0_3 = arith.constant 0 : index
    %4 = vector.load %arg3[%c0_2, %c0_3] : memref<1x128xf32, #tpu.memory_space<vmem>>, vector<1x128xf32>
    %cst = arith.constant dense<0.000000e+00> : vector<128xf32>
    %5 = vector.multi_reduction <add>, %3, %cst [0] : vector<512x128xf32> to vector<128xf32>
    %6 = vector.shape_cast %5 : vector<128xf32> to vector<1x128xf32>
    %7 = arith.addf %4, %6 : vector<1x128xf32>
    %c0_4 = arith.constant 0 : index
    %c0_5 = arith.constant 0 : index
    %8 = vector.load %arg3[%c0_4, %c0_5] : memref<1x128xf32, #tpu.memory_space<vmem>>, vector<1x128xf32>
    tpu.vector_store %arg3[%c0_4, %c0_5], %7 {strides = array<i32>} : memref<1x128xf32, #tpu.memory_space<vmem>>, vector<1x128xf32>,
    %c0_6 = arith.constant 0 : index
    %c0_7 = arith.constant 0 : index
    %9 = vector.load %arg4[%c0_6, %c0_7] : memref<1x128xf32, #tpu.memory_space<vmem>>, vector<1x128xf32>
    %10 = arith.mulf %3, %3 : vector<512x128xf32>
    %cst_8 = arith.constant dense<0.000000e+00> : vector<128xf32>
    %11 = vector.multi_reduction <add>, %10, %cst_8 [0] : vector<512x128xf32> to vector<128xf32>
    %12 = vector.shape_cast %11 : vector<128xf32> to vector<1x128xf32>
    %13 = arith.addf %9, %12 : vector<1x128xf32>
    %c0_9 = arith.constant 0 : index
    %c0_10 = arith.constant 0 : index
    %14 = vector.load %arg4[%c0_9, %c0_10] : memref<1x128xf32, #tpu.memory_space<vmem>>, vector<1x128xf32>
    tpu.vector_store %arg4[%c0_9, %c0_10], %13 {strides = array<i32>} : memref<1x128xf32, #tpu.memory_space<vmem>>, vector<1x128xf32>,
    return
  }
  func.func @transform_0(%arg0: i32, %arg1: i32) -> (i32, i32) {
    %c0_i32 = arith.constant 0 : i32
    return %arg1, %arg0 : i32, i32
  }
  func.func @transform_1(%arg0: i32, %arg1: i32) -> (i32, i32) {
    %c0_i32 = arith.constant 0 : i32
    %c0_i32_0 = arith.constant 0 : i32
    return %c0_i32, %arg0 : i32, i32
  }
  func.func @transform_2(%arg0: i32, %arg1: i32) -> (i32, i32) {
    %c0_i32 = arith.constant 0 : i32
    %c0_i32_0 = arith.constant 0 : i32
    return %c0_i32, %arg0 : i32, i32
  }
}

module attributes {stable_mosaic.version = 11 : i64} {
  func.func @_scale_shift_act_kernel(%arg0: i32, %arg1: i32, %arg2: memref<512x128xf32, #tpu.memory_space<vmem>>, %arg3: memref<1x128xf32, #tpu.memory_space<vmem>>, %arg4: memref<1x128xf32, #tpu.memory_space<vmem>>, %arg5: memref<512x128xf32, #tpu.memory_space<vmem>>) attributes {dimension_semantics = [#tpu.dimension_semantics<parallel>, #tpu.dimension_semantics<parallel>], iteration_bounds = array<i64: 1, 1>, scalar_prefetch = 0 : i64, scratch_operands = 0 : i64, tpu.core_type = #tpu.core_type<tc>, window_params = [{transform_indices = @transform_0, window_bounds = array<i64: 512, 128>}, {transform_indices = @transform_1, window_bounds = array<i64: 1, 128>}, {transform_indices = @transform_2, window_bounds = array<i64: 1, 128>}, {transform_indices = @transform_3, window_bounds = array<i64: 512, 128>}]} {
    %c0 = arith.constant 0 : index
    %c0_0 = arith.constant 0 : index
    %0 = vector.load %arg2[%c0, %c0_0] : memref<512x128xf32, #tpu.memory_space<vmem>>, vector<512x128xf32>
    %c0_1 = arith.constant 0 : index
    %c0_2 = arith.constant 0 : index
    %1 = vector.load %arg3[%c0_1, %c0_2] : memref<1x128xf32, #tpu.memory_space<vmem>>, vector<1x128xf32>
    %2 = vector.broadcast %1 : vector<1x128xf32> to vector<512x128xf32>
    %3 = arith.mulf %0, %2 : vector<512x128xf32>
    %c0_3 = arith.constant 0 : index
    %c0_4 = arith.constant 0 : index
    %4 = vector.load %arg4[%c0_3, %c0_4] : memref<1x128xf32, #tpu.memory_space<vmem>>, vector<1x128xf32>
    %5 = vector.broadcast %4 : vector<1x128xf32> to vector<512x128xf32>
    %6 = arith.addf %3, %5 : vector<512x128xf32>
    %cst = arith.constant 0.000000e+00 : f32
    %7 = vector.broadcast %cst : f32 to vector<512x128xf32>
    %8 = arith.maximumf %6, %7 : vector<512x128xf32>
    %c0_5 = arith.constant 0 : index
    %c0_6 = arith.constant 0 : index
    %9 = vector.load %arg5[%c0_5, %c0_6] : memref<512x128xf32, #tpu.memory_space<vmem>>, vector<512x128xf32>
    tpu.vector_store %arg5[%c0_5, %c0_6], %8 {strides = array<i32>} : memref<512x128xf32, #tpu.memory_space<vmem>>, vector<512x128xf32>,
    return
  }
  func.func @transform_0(%arg0: i32, %arg1: i32) -> (i32, i32) {
    %c0_i32 = arith.constant 0 : i32
    return %arg0, %arg1 : i32, i32
  }
  func.func @transform_1(%arg0: i32, %arg1: i32) -> (i32, i32) {
    %c0_i32 = arith.constant 0 : i32
    %c0_i32_0 = arith.constant 0 : i32
    return %c0_i32, %arg1 : i32, i32
  }
  func.func @transform_2(%arg0: i32, %arg1: i32) -> (i32, i32) {
    %c0_i32 = arith.constant 0 : i32
    %c0_i32_0 = arith.constant 0 : i32
    return %c0_i32, %arg1 : i32, i32
  }
  func.func @transform_3(%arg0: i32, %arg1: i32) -> (i32, i32) {
    %c0_i32 = arith.constant 0 : i32
    return %arg0, %arg1 : i32, i32
  }
}

module attributes {stable_mosaic.version = 11 : i64} {
  func.func @_mm_bn_kernel(%arg0: i32, %arg1: i32, %arg2: i32, %arg3: memref<128x128xf32, #tpu.memory_space<vmem>>, %arg4: memref<1x128xf32, #tpu.memory_space<vmem>>, %arg5: memref<1x128xf32, #tpu.memory_space<vmem>>, %arg6: memref<128x128xbf16, #tpu.memory_space<vmem>>, %arg7: memref<1x128xf32, #tpu.memory_space<vmem>>, %arg8: memref<128x128xf32, #tpu.memory_space<vmem>>, %arg9: memref<128x128xf32, #tpu.memory_space<vmem>>) attributes {dimension_semantics = [#tpu.dimension_semantics<parallel>, #tpu.dimension_semantics<parallel>, #tpu.dimension_semantics<arbitrary>], iteration_bounds = array<i64: 1, 1, 1>, scalar_prefetch = 0 : i64, scratch_operands = 1 : i64, tpu.core_type = #tpu.core_type<tc>, window_params = [{transform_indices = @transform_0, window_bounds = array<i64: 128, 128>}, {transform_indices = @transform_1, window_bounds = array<i64: 1, 128>}, {transform_indices = @transform_2, window_bounds = array<i64: 1, 128>}, {transform_indices = @transform_3, window_bounds = array<i64: 128, 128>}, {transform_indices = @transform_4, window_bounds = array<i64: 1, 128>}, {transform_indices = @transform_5, window_bounds = array<i64: 128, 128>}]} {
    %c0_i32 = arith.constant 0 : i32
    %0 = arith.cmpi eq, %arg2, %c0_i32 : i32
    %1 = arith.extui %0 : i1 to i32
    %c0_i32_0 = arith.constant 0 : i32
    %2 = arith.cmpi ne, %1, %c0_i32_0 : i32
    scf.if %2 {
      %cst_15 = arith.constant 0.000000e+00 : f32
      %21 = vector.broadcast %cst_15 : f32 to vector<128x128xf32>
      %c0_16 = arith.constant 0 : index
      %c0_17 = arith.constant 0 : index
      %22 = vector.load %arg9[%c0_16, %c0_17] : memref<128x128xf32, #tpu.memory_space<vmem>>, vector<128x128xf32>
      tpu.vector_store %arg9[%c0_16, %c0_17], %21 {strides = array<i32>} : memref<128x128xf32, #tpu.memory_space<vmem>>, vector<128x128xf32>,
    } else {
    }
    %c0 = arith.constant 0 : index
    %c0_1 = arith.constant 0 : index
    %3 = vector.load %arg3[%c0, %c0_1] : memref<128x128xf32, #tpu.memory_space<vmem>>, vector<128x128xf32>
    %c0_2 = arith.constant 0 : index
    %c0_3 = arith.constant 0 : index
    %4 = vector.load %arg4[%c0_2, %c0_3] : memref<1x128xf32, #tpu.memory_space<vmem>>, vector<1x128xf32>
    %5 = vector.broadcast %4 : vector<1x128xf32> to vector<128x128xf32>
    %6 = arith.mulf %3, %5 : vector<128x128xf32>
    %c0_4 = arith.constant 0 : index
    %c0_5 = arith.constant 0 : index
    %7 = vector.load %arg5[%c0_4, %c0_5] : memref<1x128xf32, #tpu.memory_space<vmem>>, vector<1x128xf32>
    %8 = vector.broadcast %7 : vector<1x128xf32> to vector<128x128xf32>
    %9 = arith.addf %6, %8 : vector<128x128xf32>
    %cst = arith.constant 0.000000e+00 : f32
    %10 = vector.broadcast %cst : f32 to vector<128x128xf32>
    %11 = arith.maximumf %9, %10 : vector<128x128xf32>
    %c0_6 = arith.constant 0 : index
    %c0_7 = arith.constant 0 : index
    %12 = vector.load %arg9[%c0_6, %c0_7] : memref<128x128xf32, #tpu.memory_space<vmem>>, vector<128x128xf32>
    %13 = arith.truncf %11 : vector<128x128xf32> to vector<128x128xbf16>
    %c0_8 = arith.constant 0 : index
    %c0_9 = arith.constant 0 : index
    %14 = vector.load %arg6[%c0_8, %c0_9] : memref<128x128xbf16, #tpu.memory_space<vmem>>, vector<128x128xbf16>
    %cst_10 = arith.constant dense<0.000000e+00> : vector<128x128xf32>
    %15 = tpu.matmul %13, %14, %cst_10 {dimension_numbers = #tpu.dot_dimension_numbers<[1], [0], [0], [1], [0, 0, 1, 1], [], []>} : vector<128x128xbf16>, vector<128x128xbf16>, vector<128x128xf32> -> vector<128x128xf32>
    %16 = arith.addf %12, %15 : vector<128x128xf32>
    %c0_11 = arith.constant 0 : index
    %c0_12 = arith.constant 0 : index
    %17 = vector.load %arg9[%c0_11, %c0_12] : memref<128x128xf32, #tpu.memory_space<vmem>>, vector<128x128xf32>
    tpu.vector_store %arg9[%c0_11, %c0_12], %16 {strides = array<i32>} : memref<128x128xf32, #tpu.memory_space<vmem>>, vector<128x128xf32>,
    %c0_i32_13 = arith.constant 0 : i32
    %18 = arith.cmpi eq, %arg2, %c0_i32_13 : i32
    %19 = arith.extui %18 : i1 to i32
    %c0_i32_14 = arith.constant 0 : i32
    %20 = arith.cmpi ne, %19, %c0_i32_14 : i32
    scf.if %20 {
      %c0_15 = arith.constant 0 : index
      %c0_16 = arith.constant 0 : index
      %21 = vector.load %arg9[%c0_15, %c0_16] : memref<128x128xf32, #tpu.memory_space<vmem>>, vector<128x128xf32>
      %c0_17 = arith.constant 0 : index
      %c0_18 = arith.constant 0 : index
      %22 = vector.load %arg7[%c0_17, %c0_18] : memref<1x128xf32, #tpu.memory_space<vmem>>, vector<1x128xf32>
      %23 = vector.broadcast %22 : vector<1x128xf32> to vector<128x128xf32>
      %24 = arith.addf %21, %23 : vector<128x128xf32>
      %c0_19 = arith.constant 0 : index
      %c0_20 = arith.constant 0 : index
      %25 = vector.load %arg8[%c0_19, %c0_20] : memref<128x128xf32, #tpu.memory_space<vmem>>, vector<128x128xf32>
      tpu.vector_store %arg8[%c0_19, %c0_20], %24 {strides = array<i32>} : memref<128x128xf32, #tpu.memory_space<vmem>>, vector<128x128xf32>,
    } else {
    }
    return
  }
  func.func @transform_0(%arg0: i32, %arg1: i32, %arg2: i32) -> (i32, i32) {
    %c0_i32 = arith.constant 0 : i32
    return %arg0, %arg2 : i32, i32
  }
  func.func @transform_1(%arg0: i32, %arg1: i32, %arg2: i32) -> (i32, i32) {
    %c0_i32 = arith.constant 0 : i32
    %c0_i32_0 = arith.constant 0 : i32
    return %c0_i32, %arg2 : i32, i32
  }
  func.func @transform_2(%arg0: i32, %arg1: i32, %arg2: i32) -> (i32, i32) {
    %c0_i32 = arith.constant 0 : i32
    %c0_i32_0 = arith.constant 0 : i32
    return %c0_i32, %arg2 : i32, i32
  }
  func.func @transform_3(%arg0: i32, %arg1: i32, %arg2: i32) -> (i32, i32) {
    %c0_i32 = arith.constant 0 : i32
    return %arg2, %arg1 : i32, i32
  }
  func.func @transform_4(%arg0: i32, %arg1: i32, %arg2: i32) -> (i32, i32) {
    %c0_i32 = arith.constant 0 : i32
    %c0_i32_0 = arith.constant 0 : i32
    return %c0_i32, %arg1 : i32, i32
  }
  func.func @transform_5(%arg0: i32, %arg1: i32, %arg2: i32) -> (i32, i32) {
    %c0_i32 = arith.constant 0 : i32
    return %arg0, %arg1 : i32, i32
  }
}

module attributes {stable_mosaic.version = 11 : i64} {
  func.func @_scale_shift_act_kernel(%arg0: i32, %arg1: i32, %arg2: memref<128x128xf32, #tpu.memory_space<vmem>>, %arg3: memref<1x128xf32, #tpu.memory_space<vmem>>, %arg4: memref<1x128xf32, #tpu.memory_space<vmem>>, %arg5: memref<128x128xf32, #tpu.memory_space<vmem>>) attributes {dimension_semantics = [#tpu.dimension_semantics<parallel>, #tpu.dimension_semantics<parallel>], iteration_bounds = array<i64: 1, 1>, scalar_prefetch = 0 : i64, scratch_operands = 0 : i64, tpu.core_type = #tpu.core_type<tc>, window_params = [{transform_indices = @transform_0, window_bounds = array<i64: 128, 128>}, {transform_indices = @transform_1, window_bounds = array<i64: 1, 128>}, {transform_indices = @transform_2, window_bounds = array<i64: 1, 128>}, {transform_indices = @transform_3, window_bounds = array<i64: 128, 128>}]} {
    %c0 = arith.constant 0 : index
    %c0_0 = arith.constant 0 : index
    %0 = vector.load %arg2[%c0, %c0_0] : memref<128x128xf32, #tpu.memory_space<vmem>>, vector<128x128xf32>
    %c0_1 = arith.constant 0 : index
    %c0_2 = arith.constant 0 : index
    %1 = vector.load %arg3[%c0_1, %c0_2] : memref<1x128xf32, #tpu.memory_space<vmem>>, vector<1x128xf32>
    %2 = vector.broadcast %1 : vector<1x128xf32> to vector<128x128xf32>
    %3 = arith.mulf %0, %2 : vector<128x128xf32>
    %c0_3 = arith.constant 0 : index
    %c0_4 = arith.constant 0 : index
    %4 = vector.load %arg4[%c0_3, %c0_4] : memref<1x128xf32, #tpu.memory_space<vmem>>, vector<1x128xf32>
    %5 = vector.broadcast %4 : vector<1x128xf32> to vector<128x128xf32>
    %6 = arith.addf %3, %5 : vector<128x128xf32>
    %cst = arith.constant 0.000000e+00 : f32
    %7 = vector.broadcast %cst : f32 to vector<128x128xf32>
    %8 = arith.maximumf %6, %7 : vector<128x128xf32>
    %c0_5 = arith.constant 0 : index
    %c0_6 = arith.constant 0 : index
    %9 = vector.load %arg5[%c0_5, %c0_6] : memref<128x128xf32, #tpu.memory_space<vmem>>, vector<128x128xf32>
    tpu.vector_store %arg5[%c0_5, %c0_6], %8 {strides = array<i32>} : memref<128x128xf32, #tpu.memory_space<vmem>>, vector<128x128xf32>,
    return
  }
  func.func @transform_0(%arg0: i32, %arg1: i32) -> (i32, i32) {
    %c0_i32 = arith.constant 0 : i32
    return %arg0, %arg1 : i32, i32
  }
  func.func @transform_1(%arg0: i32, %arg1: i32) -> (i32, i32) {
    %c0_i32 = arith.constant 0 : i32
    %c0_i32_0 = arith.constant 0 : i32
    return %c0_i32, %arg1 : i32, i32
  }
  func.func @transform_2(%arg0: i32, %arg1: i32) -> (i32, i32) {
    %c0_i32 = arith.constant 0 : i32
    %c0_i32_0 = arith.constant 0 : i32
    return %c0_i32, %arg1 : i32, i32
  }
  func.func @transform_3(%arg0: i32, %arg1: i32) -> (i32, i32) {
    %c0_i32 = arith.constant 0 : i32
    return %arg0, %arg1 : i32, i32
  }
}

module attributes {stable_mosaic.version = 11 : i64} {
  func.func @_bn_stats_kernel(%arg0: i32, %arg1: i32, %arg2: memref<128x128xf32, #tpu.memory_space<vmem>>, %arg3: memref<1x128xf32, #tpu.memory_space<vmem>>, %arg4: memref<1x128xf32, #tpu.memory_space<vmem>>) attributes {dimension_semantics = [#tpu.dimension_semantics<parallel>, #tpu.dimension_semantics<arbitrary>], iteration_bounds = array<i64: 1, 1>, scalar_prefetch = 0 : i64, scratch_operands = 0 : i64, tpu.core_type = #tpu.core_type<tc>, window_params = [{transform_indices = @transform_0, window_bounds = array<i64: 128, 128>}, {transform_indices = @transform_1, window_bounds = array<i64: 1, 128>}, {transform_indices = @transform_2, window_bounds = array<i64: 1, 128>}]} {
    %c0_i32 = arith.constant 0 : i32
    %0 = arith.cmpi eq, %arg1, %c0_i32 : i32
    %1 = arith.extui %0 : i1 to i32
    %c0_i32_0 = arith.constant 0 : i32
    %2 = arith.cmpi ne, %1, %c0_i32_0 : i32
    scf.if %2 {
      %cst_11 = arith.constant 0.000000e+00 : f32
      %15 = vector.broadcast %cst_11 : f32 to vector<1x128xf32>
      %c0_12 = arith.constant 0 : index
      %c0_13 = arith.constant 0 : index
      %16 = vector.load %arg3[%c0_12, %c0_13] : memref<1x128xf32, #tpu.memory_space<vmem>>, vector<1x128xf32>
      tpu.vector_store %arg3[%c0_12, %c0_13], %15 {strides = array<i32>} : memref<1x128xf32, #tpu.memory_space<vmem>>, vector<1x128xf32>,
      %cst_14 = arith.constant 0.000000e+00 : f32
      %17 = vector.broadcast %cst_14 : f32 to vector<1x128xf32>
      %c0_15 = arith.constant 0 : index
      %c0_16 = arith.constant 0 : index
      %18 = vector.load %arg4[%c0_15, %c0_16] : memref<1x128xf32, #tpu.memory_space<vmem>>, vector<1x128xf32>
      tpu.vector_store %arg4[%c0_15, %c0_16], %17 {strides = array<i32>} : memref<1x128xf32, #tpu.memory_space<vmem>>, vector<1x128xf32>,
    } else {
    }
    %c0 = arith.constant 0 : index
    %c0_1 = arith.constant 0 : index
    %3 = vector.load %arg2[%c0, %c0_1] : memref<128x128xf32, #tpu.memory_space<vmem>>, vector<128x128xf32>
    %c0_2 = arith.constant 0 : index
    %c0_3 = arith.constant 0 : index
    %4 = vector.load %arg3[%c0_2, %c0_3] : memref<1x128xf32, #tpu.memory_space<vmem>>, vector<1x128xf32>
    %cst = arith.constant dense<0.000000e+00> : vector<128xf32>
    %5 = vector.multi_reduction <add>, %3, %cst [0] : vector<128x128xf32> to vector<128xf32>
    %6 = vector.shape_cast %5 : vector<128xf32> to vector<1x128xf32>
    %7 = arith.addf %4, %6 : vector<1x128xf32>
    %c0_4 = arith.constant 0 : index
    %c0_5 = arith.constant 0 : index
    %8 = vector.load %arg3[%c0_4, %c0_5] : memref<1x128xf32, #tpu.memory_space<vmem>>, vector<1x128xf32>
    tpu.vector_store %arg3[%c0_4, %c0_5], %7 {strides = array<i32>} : memref<1x128xf32, #tpu.memory_space<vmem>>, vector<1x128xf32>,
    %c0_6 = arith.constant 0 : index
    %c0_7 = arith.constant 0 : index
    %9 = vector.load %arg4[%c0_6, %c0_7] : memref<1x128xf32, #tpu.memory_space<vmem>>, vector<1x128xf32>
    %10 = arith.mulf %3, %3 : vector<128x128xf32>
    %cst_8 = arith.constant dense<0.000000e+00> : vector<128xf32>
    %11 = vector.multi_reduction <add>, %10, %cst_8 [0] : vector<128x128xf32> to vector<128xf32>
    %12 = vector.shape_cast %11 : vector<128xf32> to vector<1x128xf32>
    %13 = arith.addf %9, %12 : vector<1x128xf32>
    %c0_9 = arith.constant 0 : index
    %c0_10 = arith.constant 0 : index
    %14 = vector.load %arg4[%c0_9, %c0_10] : memref<1x128xf32, #tpu.memory_space<vmem>>, vector<1x128xf32>
    tpu.vector_store %arg4[%c0_9, %c0_10], %13 {strides = array<i32>} : memref<1x128xf32, #tpu.memory_space<vmem>>, vector<1x128xf32>,
    return
  }
  func.func @transform_0(%arg0: i32, %arg1: i32) -> (i32, i32) {
    %c0_i32 = arith.constant 0 : i32
    return %arg1, %arg0 : i32, i32
  }
  func.func @transform_1(%arg0: i32, %arg1: i32) -> (i32, i32) {
    %c0_i32 = arith.constant 0 : i32
    %c0_i32_0 = arith.constant 0 : i32
    return %c0_i32, %arg0 : i32, i32
  }
  func.func @transform_2(%arg0: i32, %arg1: i32) -> (i32, i32) {
    %c0_i32 = arith.constant 0 : i32
    %c0_i32_0 = arith.constant 0 : i32
    return %c0_i32, %arg0 : i32, i32
  }
}

module attributes {stable_mosaic.version = 11 : i64} {
  func.func @_mm_kernel(%arg0: i32, %arg1: i32, %arg2: i32, %arg3: memref<128x256xbf16, #tpu.memory_space<vmem>>, %arg4: memref<256x128xbf16, #tpu.memory_space<vmem>>, %arg5: memref<1x128xf32, #tpu.memory_space<vmem>>, %arg6: memref<128x128xf32, #tpu.memory_space<vmem>>, %arg7: memref<128x128xf32, #tpu.memory_space<vmem>>) attributes {dimension_semantics = [#tpu.dimension_semantics<parallel>, #tpu.dimension_semantics<parallel>, #tpu.dimension_semantics<arbitrary>], iteration_bounds = array<i64: 1, 1, 1>, scalar_prefetch = 0 : i64, scratch_operands = 1 : i64, tpu.core_type = #tpu.core_type<tc>, window_params = [{transform_indices = @transform_0, window_bounds = array<i64: 128, 256>}, {transform_indices = @transform_1, window_bounds = array<i64: 256, 128>}, {transform_indices = @transform_2, window_bounds = array<i64: 1, 128>}, {transform_indices = @transform_3, window_bounds = array<i64: 128, 128>}]} {
    %c0_i32 = arith.constant 0 : i32
    %0 = arith.cmpi eq, %arg2, %c0_i32 : i32
    %1 = arith.extui %0 : i1 to i32
    %c0_i32_0 = arith.constant 0 : i32
    %2 = arith.cmpi ne, %1, %c0_i32_0 : i32
    scf.if %2 {
      %cst_10 = arith.constant 0.000000e+00 : f32
      %12 = vector.broadcast %cst_10 : f32 to vector<128x128xf32>
      %c0_11 = arith.constant 0 : index
      %c0_12 = arith.constant 0 : index
      %13 = vector.load %arg7[%c0_11, %c0_12] : memref<128x128xf32, #tpu.memory_space<vmem>>, vector<128x128xf32>
      tpu.vector_store %arg7[%c0_11, %c0_12], %12 {strides = array<i32>} : memref<128x128xf32, #tpu.memory_space<vmem>>, vector<128x128xf32>,
    } else {
    }
    %c0 = arith.constant 0 : index
    %c0_1 = arith.constant 0 : index
    %3 = vector.load %arg7[%c0, %c0_1] : memref<128x128xf32, #tpu.memory_space<vmem>>, vector<128x128xf32>
    %c0_2 = arith.constant 0 : index
    %c0_3 = arith.constant 0 : index
    %4 = vector.load %arg3[%c0_2, %c0_3] : memref<128x256xbf16, #tpu.memory_space<vmem>>, vector<128x256xbf16>
    %c0_4 = arith.constant 0 : index
    %c0_5 = arith.constant 0 : index
    %5 = vector.load %arg4[%c0_4, %c0_5] : memref<256x128xbf16, #tpu.memory_space<vmem>>, vector<256x128xbf16>
    %cst = arith.constant dense<0.000000e+00> : vector<128x128xf32>
    %6 = tpu.matmul %4, %5, %cst {dimension_numbers = #tpu.dot_dimension_numbers<[1], [0], [0], [1], [0, 0, 1, 1], [], []>} : vector<128x256xbf16>, vector<256x128xbf16>, vector<128x128xf32> -> vector<128x128xf32>
    %7 = arith.addf %3, %6 : vector<128x128xf32>
    %c0_6 = arith.constant 0 : index
    %c0_7 = arith.constant 0 : index
    %8 = vector.load %arg7[%c0_6, %c0_7] : memref<128x128xf32, #tpu.memory_space<vmem>>, vector<128x128xf32>
    tpu.vector_store %arg7[%c0_6, %c0_7], %7 {strides = array<i32>} : memref<128x128xf32, #tpu.memory_space<vmem>>, vector<128x128xf32>,
    %c0_i32_8 = arith.constant 0 : i32
    %9 = arith.cmpi eq, %arg2, %c0_i32_8 : i32
    %10 = arith.extui %9 : i1 to i32
    %c0_i32_9 = arith.constant 0 : i32
    %11 = arith.cmpi ne, %10, %c0_i32_9 : i32
    scf.if %11 {
      %c0_10 = arith.constant 0 : index
      %c0_11 = arith.constant 0 : index
      %12 = vector.load %arg7[%c0_10, %c0_11] : memref<128x128xf32, #tpu.memory_space<vmem>>, vector<128x128xf32>
      %c0_12 = arith.constant 0 : index
      %c0_13 = arith.constant 0 : index
      %13 = vector.load %arg5[%c0_12, %c0_13] : memref<1x128xf32, #tpu.memory_space<vmem>>, vector<1x128xf32>
      %14 = vector.broadcast %13 : vector<1x128xf32> to vector<128x128xf32>
      %15 = arith.addf %12, %14 : vector<128x128xf32>
      %c0_14 = arith.constant 0 : index
      %c0_15 = arith.constant 0 : index
      %16 = vector.load %arg6[%c0_14, %c0_15] : memref<128x128xf32, #tpu.memory_space<vmem>>, vector<128x128xf32>
      tpu.vector_store %arg6[%c0_14, %c0_15], %15 {strides = array<i32>} : memref<128x128xf32, #tpu.memory_space<vmem>>, vector<128x128xf32>,
    } else {
    }
    return
  }
  func.func @transform_0(%arg0: i32, %arg1: i32, %arg2: i32) -> (i32, i32) {
    %c0_i32 = arith.constant 0 : i32
    return %arg0, %arg2 : i32, i32
  }
  func.func @transform_1(%arg0: i32, %arg1: i32, %arg2: i32) -> (i32, i32) {
    %c0_i32 = arith.constant 0 : i32
    return %arg2, %arg1 : i32, i32
  }
  func.func @transform_2(%arg0: i32, %arg1: i32, %arg2: i32) -> (i32, i32) {
    %c0_i32 = arith.constant 0 : i32
    %c0_i32_0 = arith.constant 0 : i32
    return %c0_i32, %arg1 : i32, i32
  }
  func.func @transform_3(%arg0: i32, %arg1: i32, %arg2: i32) -> (i32, i32) {
    %c0_i32 = arith.constant 0 : i32
    return %arg0, %arg1 : i32, i32
  }
}

module attributes {stable_mosaic.version = 11 : i64} {
  func.func @_bn_stats_kernel(%arg0: i32, %arg1: i32, %arg2: memref<32x128xf32, #tpu.memory_space<vmem>>, %arg3: memref<1x128xf32, #tpu.memory_space<vmem>>, %arg4: memref<1x128xf32, #tpu.memory_space<vmem>>) attributes {dimension_semantics = [#tpu.dimension_semantics<parallel>, #tpu.dimension_semantics<arbitrary>], iteration_bounds = array<i64: 1, 1>, scalar_prefetch = 0 : i64, scratch_operands = 0 : i64, tpu.core_type = #tpu.core_type<tc>, window_params = [{transform_indices = @transform_0, window_bounds = array<i64: 32, 128>}, {transform_indices = @transform_1, window_bounds = array<i64: 1, 128>}, {transform_indices = @transform_2, window_bounds = array<i64: 1, 128>}]} {
    %c0_i32 = arith.constant 0 : i32
    %0 = arith.cmpi eq, %arg1, %c0_i32 : i32
    %1 = arith.extui %0 : i1 to i32
    %c0_i32_0 = arith.constant 0 : i32
    %2 = arith.cmpi ne, %1, %c0_i32_0 : i32
    scf.if %2 {
      %cst_11 = arith.constant 0.000000e+00 : f32
      %15 = vector.broadcast %cst_11 : f32 to vector<1x128xf32>
      %c0_12 = arith.constant 0 : index
      %c0_13 = arith.constant 0 : index
      %16 = vector.load %arg3[%c0_12, %c0_13] : memref<1x128xf32, #tpu.memory_space<vmem>>, vector<1x128xf32>
      tpu.vector_store %arg3[%c0_12, %c0_13], %15 {strides = array<i32>} : memref<1x128xf32, #tpu.memory_space<vmem>>, vector<1x128xf32>,
      %cst_14 = arith.constant 0.000000e+00 : f32
      %17 = vector.broadcast %cst_14 : f32 to vector<1x128xf32>
      %c0_15 = arith.constant 0 : index
      %c0_16 = arith.constant 0 : index
      %18 = vector.load %arg4[%c0_15, %c0_16] : memref<1x128xf32, #tpu.memory_space<vmem>>, vector<1x128xf32>
      tpu.vector_store %arg4[%c0_15, %c0_16], %17 {strides = array<i32>} : memref<1x128xf32, #tpu.memory_space<vmem>>, vector<1x128xf32>,
    } else {
    }
    %c0 = arith.constant 0 : index
    %c0_1 = arith.constant 0 : index
    %3 = vector.load %arg2[%c0, %c0_1] : memref<32x128xf32, #tpu.memory_space<vmem>>, vector<32x128xf32>
    %c0_2 = arith.constant 0 : index
    %c0_3 = arith.constant 0 : index
    %4 = vector.load %arg3[%c0_2, %c0_3] : memref<1x128xf32, #tpu.memory_space<vmem>>, vector<1x128xf32>
    %cst = arith.constant dense<0.000000e+00> : vector<128xf32>
    %5 = vector.multi_reduction <add>, %3, %cst [0] : vector<32x128xf32> to vector<128xf32>
    %6 = vector.shape_cast %5 : vector<128xf32> to vector<1x128xf32>
    %7 = arith.addf %4, %6 : vector<1x128xf32>
    %c0_4 = arith.constant 0 : index
    %c0_5 = arith.constant 0 : index
    %8 = vector.load %arg3[%c0_4, %c0_5] : memref<1x128xf32, #tpu.memory_space<vmem>>, vector<1x128xf32>
    tpu.vector_store %arg3[%c0_4, %c0_5], %7 {strides = array<i32>} : memref<1x128xf32, #tpu.memory_space<vmem>>, vector<1x128xf32>,
    %c0_6 = arith.constant 0 : index
    %c0_7 = arith.constant 0 : index
    %9 = vector.load %arg4[%c0_6, %c0_7] : memref<1x128xf32, #tpu.memory_space<vmem>>, vector<1x128xf32>
    %10 = arith.mulf %3, %3 : vector<32x128xf32>
    %cst_8 = arith.constant dense<0.000000e+00> : vector<128xf32>
    %11 = vector.multi_reduction <add>, %10, %cst_8 [0] : vector<32x128xf32> to vector<128xf32>
    %12 = vector.shape_cast %11 : vector<128xf32> to vector<1x128xf32>
    %13 = arith.addf %9, %12 : vector<1x128xf32>
    %c0_9 = arith.constant 0 : index
    %c0_10 = arith.constant 0 : index
    %14 = vector.load %arg4[%c0_9, %c0_10] : memref<1x128xf32, #tpu.memory_space<vmem>>, vector<1x128xf32>
    tpu.vector_store %arg4[%c0_9, %c0_10], %13 {strides = array<i32>} : memref<1x128xf32, #tpu.memory_space<vmem>>, vector<1x128xf32>,
    return
  }
  func.func @transform_0(%arg0: i32, %arg1: i32) -> (i32, i32) {
    %c0_i32 = arith.constant 0 : i32
    return %arg1, %arg0 : i32, i32
  }
  func.func @transform_1(%arg0: i32, %arg1: i32) -> (i32, i32) {
    %c0_i32 = arith.constant 0 : i32
    %c0_i32_0 = arith.constant 0 : i32
    return %c0_i32, %arg0 : i32, i32
  }
  func.func @transform_2(%arg0: i32, %arg1: i32) -> (i32, i32) {
    %c0_i32 = arith.constant 0 : i32
    %c0_i32_0 = arith.constant 0 : i32
    return %c0_i32, %arg0 : i32, i32
  }
}

module attributes {stable_mosaic.version = 11 : i64} {
  func.func @_mm_bn_kernel(%arg0: i32, %arg1: i32, %arg2: i32, %arg3: memref<32x128xf32, #tpu.memory_space<vmem>>, %arg4: memref<1x128xf32, #tpu.memory_space<vmem>>, %arg5: memref<1x128xf32, #tpu.memory_space<vmem>>, %arg6: memref<128x128xbf16, #tpu.memory_space<vmem>>, %arg7: memref<1x128xf32, #tpu.memory_space<vmem>>, %arg8: memref<32x128xf32, #tpu.memory_space<vmem>>, %arg9: memref<32x128xf32, #tpu.memory_space<vmem>>) attributes {dimension_semantics = [#tpu.dimension_semantics<parallel>, #tpu.dimension_semantics<parallel>, #tpu.dimension_semantics<arbitrary>], iteration_bounds = array<i64: 1, 1, 1>, scalar_prefetch = 0 : i64, scratch_operands = 1 : i64, tpu.core_type = #tpu.core_type<tc>, window_params = [{transform_indices = @transform_0, window_bounds = array<i64: 32, 128>}, {transform_indices = @transform_1, window_bounds = array<i64: 1, 128>}, {transform_indices = @transform_2, window_bounds = array<i64: 1, 128>}, {transform_indices = @transform_3, window_bounds = array<i64: 128, 128>}, {transform_indices = @transform_4, window_bounds = array<i64: 1, 128>}, {transform_indices = @transform_5, window_bounds = array<i64: 32, 128>}]} {
    %c0_i32 = arith.constant 0 : i32
    %0 = arith.cmpi eq, %arg2, %c0_i32 : i32
    %1 = arith.extui %0 : i1 to i32
    %c0_i32_0 = arith.constant 0 : i32
    %2 = arith.cmpi ne, %1, %c0_i32_0 : i32
    scf.if %2 {
      %cst_15 = arith.constant 0.000000e+00 : f32
      %21 = vector.broadcast %cst_15 : f32 to vector<32x128xf32>
      %c0_16 = arith.constant 0 : index
      %c0_17 = arith.constant 0 : index
      %22 = vector.load %arg9[%c0_16, %c0_17] : memref<32x128xf32, #tpu.memory_space<vmem>>, vector<32x128xf32>
      tpu.vector_store %arg9[%c0_16, %c0_17], %21 {strides = array<i32>} : memref<32x128xf32, #tpu.memory_space<vmem>>, vector<32x128xf32>,
    } else {
    }
    %c0 = arith.constant 0 : index
    %c0_1 = arith.constant 0 : index
    %3 = vector.load %arg3[%c0, %c0_1] : memref<32x128xf32, #tpu.memory_space<vmem>>, vector<32x128xf32>
    %c0_2 = arith.constant 0 : index
    %c0_3 = arith.constant 0 : index
    %4 = vector.load %arg4[%c0_2, %c0_3] : memref<1x128xf32, #tpu.memory_space<vmem>>, vector<1x128xf32>
    %5 = vector.broadcast %4 : vector<1x128xf32> to vector<32x128xf32>
    %6 = arith.mulf %3, %5 : vector<32x128xf32>
    %c0_4 = arith.constant 0 : index
    %c0_5 = arith.constant 0 : index
    %7 = vector.load %arg5[%c0_4, %c0_5] : memref<1x128xf32, #tpu.memory_space<vmem>>, vector<1x128xf32>
    %8 = vector.broadcast %7 : vector<1x128xf32> to vector<32x128xf32>
    %9 = arith.addf %6, %8 : vector<32x128xf32>
    %cst = arith.constant 0.000000e+00 : f32
    %10 = vector.broadcast %cst : f32 to vector<32x128xf32>
    %11 = arith.maximumf %9, %10 : vector<32x128xf32>
    %c0_6 = arith.constant 0 : index
    %c0_7 = arith.constant 0 : index
    %12 = vector.load %arg9[%c0_6, %c0_7] : memref<32x128xf32, #tpu.memory_space<vmem>>, vector<32x128xf32>
    %13 = arith.truncf %11 : vector<32x128xf32> to vector<32x128xbf16>
    %c0_8 = arith.constant 0 : index
    %c0_9 = arith.constant 0 : index
    %14 = vector.load %arg6[%c0_8, %c0_9] : memref<128x128xbf16, #tpu.memory_space<vmem>>, vector<128x128xbf16>
    %cst_10 = arith.constant dense<0.000000e+00> : vector<32x128xf32>
    %15 = tpu.matmul %13, %14, %cst_10 {dimension_numbers = #tpu.dot_dimension_numbers<[1], [0], [0], [1], [0, 0, 1, 1], [], []>} : vector<32x128xbf16>, vector<128x128xbf16>, vector<32x128xf32> -> vector<32x128xf32>
    %16 = arith.addf %12, %15 : vector<32x128xf32>
    %c0_11 = arith.constant 0 : index
    %c0_12 = arith.constant 0 : index
    %17 = vector.load %arg9[%c0_11, %c0_12] : memref<32x128xf32, #tpu.memory_space<vmem>>, vector<32x128xf32>
    tpu.vector_store %arg9[%c0_11, %c0_12], %16 {strides = array<i32>} : memref<32x128xf32, #tpu.memory_space<vmem>>, vector<32x128xf32>,
    %c0_i32_13 = arith.constant 0 : i32
    %18 = arith.cmpi eq, %arg2, %c0_i32_13 : i32
    %19 = arith.extui %18 : i1 to i32
    %c0_i32_14 = arith.constant 0 : i32
    %20 = arith.cmpi ne, %19, %c0_i32_14 : i32
    scf.if %20 {
      %c0_15 = arith.constant 0 : index
      %c0_16 = arith.constant 0 : index
      %21 = vector.load %arg9[%c0_15, %c0_16] : memref<32x128xf32, #tpu.memory_space<vmem>>, vector<32x128xf32>
      %c0_17 = arith.constant 0 : index
      %c0_18 = arith.constant 0 : index
      %22 = vector.load %arg7[%c0_17, %c0_18] : memref<1x128xf32, #tpu.memory_space<vmem>>, vector<1x128xf32>
      %23 = vector.broadcast %22 : vector<1x128xf32> to vector<32x128xf32>
      %24 = arith.addf %21, %23 : vector<32x128xf32>
      %c0_19 = arith.constant 0 : index
      %c0_20 = arith.constant 0 : index
      %25 = vector.load %arg8[%c0_19, %c0_20] : memref<32x128xf32, #tpu.memory_space<vmem>>, vector<32x128xf32>
      tpu.vector_store %arg8[%c0_19, %c0_20], %24 {strides = array<i32>} : memref<32x128xf32, #tpu.memory_space<vmem>>, vector<32x128xf32>,
    } else {
    }
    return
  }
  func.func @transform_0(%arg0: i32, %arg1: i32, %arg2: i32) -> (i32, i32) {
    %c0_i32 = arith.constant 0 : i32
    return %arg0, %arg2 : i32, i32
  }
  func.func @transform_1(%arg0: i32, %arg1: i32, %arg2: i32) -> (i32, i32) {
    %c0_i32 = arith.constant 0 : i32
    %c0_i32_0 = arith.constant 0 : i32
    return %c0_i32, %arg2 : i32, i32
  }
  func.func @transform_2(%arg0: i32, %arg1: i32, %arg2: i32) -> (i32, i32) {
    %c0_i32 = arith.constant 0 : i32
    %c0_i32_0 = arith.constant 0 : i32
    return %c0_i32, %arg2 : i32, i32
  }
  func.func @transform_3(%arg0: i32, %arg1: i32, %arg2: i32) -> (i32, i32) {
    %c0_i32 = arith.constant 0 : i32
    return %arg2, %arg1 : i32, i32
  }
  func.func @transform_4(%arg0: i32, %arg1: i32, %arg2: i32) -> (i32, i32) {
    %c0_i32 = arith.constant 0 : i32
    %c0_i32_0 = arith.constant 0 : i32
    return %c0_i32, %arg1 : i32, i32
  }
  func.func @transform_5(%arg0: i32, %arg1: i32, %arg2: i32) -> (i32, i32) {
    %c0_i32 = arith.constant 0 : i32
    return %arg0, %arg1 : i32, i32
  }
}

module attributes {stable_mosaic.version = 11 : i64} {
  func.func @_scale_shift_act_kernel(%arg0: i32, %arg1: i32, %arg2: memref<32x128xf32, #tpu.memory_space<vmem>>, %arg3: memref<1x128xf32, #tpu.memory_space<vmem>>, %arg4: memref<1x128xf32, #tpu.memory_space<vmem>>, %arg5: memref<32x128xf32, #tpu.memory_space<vmem>>) attributes {dimension_semantics = [#tpu.dimension_semantics<parallel>, #tpu.dimension_semantics<parallel>], iteration_bounds = array<i64: 1, 1>, scalar_prefetch = 0 : i64, scratch_operands = 0 : i64, tpu.core_type = #tpu.core_type<tc>, window_params = [{transform_indices = @transform_0, window_bounds = array<i64: 32, 128>}, {transform_indices = @transform_1, window_bounds = array<i64: 1, 128>}, {transform_indices = @transform_2, window_bounds = array<i64: 1, 128>}, {transform_indices = @transform_3, window_bounds = array<i64: 32, 128>}]} {
    %c0 = arith.constant 0 : index
    %c0_0 = arith.constant 0 : index
    %0 = vector.load %arg2[%c0, %c0_0] : memref<32x128xf32, #tpu.memory_space<vmem>>, vector<32x128xf32>
    %c0_1 = arith.constant 0 : index
    %c0_2 = arith.constant 0 : index
    %1 = vector.load %arg3[%c0_1, %c0_2] : memref<1x128xf32, #tpu.memory_space<vmem>>, vector<1x128xf32>
    %2 = vector.broadcast %1 : vector<1x128xf32> to vector<32x128xf32>
    %3 = arith.mulf %0, %2 : vector<32x128xf32>
    %c0_3 = arith.constant 0 : index
    %c0_4 = arith.constant 0 : index
    %4 = vector.load %arg4[%c0_3, %c0_4] : memref<1x128xf32, #tpu.memory_space<vmem>>, vector<1x128xf32>
    %5 = vector.broadcast %4 : vector<1x128xf32> to vector<32x128xf32>
    %6 = arith.addf %3, %5 : vector<32x128xf32>
    %cst = arith.constant 0.000000e+00 : f32
    %7 = vector.broadcast %cst : f32 to vector<32x128xf32>
    %8 = arith.maximumf %6, %7 : vector<32x128xf32>
    %c0_5 = arith.constant 0 : index
    %c0_6 = arith.constant 0 : index
    %9 = vector.load %arg5[%c0_5, %c0_6] : memref<32x128xf32, #tpu.memory_space<vmem>>, vector<32x128xf32>
    tpu.vector_store %arg5[%c0_5, %c0_6], %8 {strides = array<i32>} : memref<32x128xf32, #tpu.memory_space<vmem>>, vector<32x128xf32>,
    return
  }
  func.func @transform_0(%arg0: i32, %arg1: i32) -> (i32, i32) {
    %c0_i32 = arith.constant 0 : i32
    return %arg0, %arg1 : i32, i32
  }
  func.func @transform_1(%arg0: i32, %arg1: i32) -> (i32, i32) {
    %c0_i32 = arith.constant 0 : i32
    %c0_i32_0 = arith.constant 0 : i32
    return %c0_i32, %arg1 : i32, i32
  }
  func.func @transform_2(%arg0: i32, %arg1: i32) -> (i32, i32) {
    %c0_i32 = arith.constant 0 : i32
    %c0_i32_0 = arith.constant 0 : i32
    return %c0_i32, %arg1 : i32, i32
  }
  func.func @transform_3(%arg0: i32, %arg1: i32) -> (i32, i32) {
    %c0_i32 = arith.constant 0 : i32
    return %arg0, %arg1 : i32, i32
  }
}

module attributes {stable_mosaic.version = 11 : i64} {
  func.func @_mm_kernel(%arg0: i32, %arg1: i32, %arg2: i32, %arg3: memref<32x256xbf16, #tpu.memory_space<vmem>>, %arg4: memref<256x128xbf16, #tpu.memory_space<vmem>>, %arg5: memref<1x128xf32, #tpu.memory_space<vmem>>, %arg6: memref<32x128xf32, #tpu.memory_space<vmem>>, %arg7: memref<32x128xf32, #tpu.memory_space<vmem>>) attributes {dimension_semantics = [#tpu.dimension_semantics<parallel>, #tpu.dimension_semantics<parallel>, #tpu.dimension_semantics<arbitrary>], iteration_bounds = array<i64: 1, 1, 1>, scalar_prefetch = 0 : i64, scratch_operands = 1 : i64, tpu.core_type = #tpu.core_type<tc>, window_params = [{transform_indices = @transform_0, window_bounds = array<i64: 32, 256>}, {transform_indices = @transform_1, window_bounds = array<i64: 256, 128>}, {transform_indices = @transform_2, window_bounds = array<i64: 1, 128>}, {transform_indices = @transform_3, window_bounds = array<i64: 32, 128>}]} {
    %c0_i32 = arith.constant 0 : i32
    %0 = arith.cmpi eq, %arg2, %c0_i32 : i32
    %1 = arith.extui %0 : i1 to i32
    %c0_i32_0 = arith.constant 0 : i32
    %2 = arith.cmpi ne, %1, %c0_i32_0 : i32
    scf.if %2 {
      %cst_10 = arith.constant 0.000000e+00 : f32
      %12 = vector.broadcast %cst_10 : f32 to vector<32x128xf32>
      %c0_11 = arith.constant 0 : index
      %c0_12 = arith.constant 0 : index
      %13 = vector.load %arg7[%c0_11, %c0_12] : memref<32x128xf32, #tpu.memory_space<vmem>>, vector<32x128xf32>
      tpu.vector_store %arg7[%c0_11, %c0_12], %12 {strides = array<i32>} : memref<32x128xf32, #tpu.memory_space<vmem>>, vector<32x128xf32>,
    } else {
    }
    %c0 = arith.constant 0 : index
    %c0_1 = arith.constant 0 : index
    %3 = vector.load %arg7[%c0, %c0_1] : memref<32x128xf32, #tpu.memory_space<vmem>>, vector<32x128xf32>
    %c0_2 = arith.constant 0 : index
    %c0_3 = arith.constant 0 : index
    %4 = vector.load %arg3[%c0_2, %c0_3] : memref<32x256xbf16, #tpu.memory_space<vmem>>, vector<32x256xbf16>
    %c0_4 = arith.constant 0 : index
    %c0_5 = arith.constant 0 : index
    %5 = vector.load %arg4[%c0_4, %c0_5] : memref<256x128xbf16, #tpu.memory_space<vmem>>, vector<256x128xbf16>
    %cst = arith.constant dense<0.000000e+00> : vector<32x128xf32>
    %6 = tpu.matmul %4, %5, %cst {dimension_numbers = #tpu.dot_dimension_numbers<[1], [0], [0], [1], [0, 0, 1, 1], [], []>} : vector<32x256xbf16>, vector<256x128xbf16>, vector<32x128xf32> -> vector<32x128xf32>
    %7 = arith.addf %3, %6 : vector<32x128xf32>
    %c0_6 = arith.constant 0 : index
    %c0_7 = arith.constant 0 : index
    %8 = vector.load %arg7[%c0_6, %c0_7] : memref<32x128xf32, #tpu.memory_space<vmem>>, vector<32x128xf32>
    tpu.vector_store %arg7[%c0_6, %c0_7], %7 {strides = array<i32>} : memref<32x128xf32, #tpu.memory_space<vmem>>, vector<32x128xf32>,
    %c0_i32_8 = arith.constant 0 : i32
    %9 = arith.cmpi eq, %arg2, %c0_i32_8 : i32
    %10 = arith.extui %9 : i1 to i32
    %c0_i32_9 = arith.constant 0 : i32
    %11 = arith.cmpi ne, %10, %c0_i32_9 : i32
    scf.if %11 {
      %c0_10 = arith.constant 0 : index
      %c0_11 = arith.constant 0 : index
      %12 = vector.load %arg7[%c0_10, %c0_11] : memref<32x128xf32, #tpu.memory_space<vmem>>, vector<32x128xf32>
      %c0_12 = arith.constant 0 : index
      %c0_13 = arith.constant 0 : index
      %13 = vector.load %arg5[%c0_12, %c0_13] : memref<1x128xf32, #tpu.memory_space<vmem>>, vector<1x128xf32>
      %14 = vector.broadcast %13 : vector<1x128xf32> to vector<32x128xf32>
      %15 = arith.addf %12, %14 : vector<32x128xf32>
      %c0_14 = arith.constant 0 : index
      %c0_15 = arith.constant 0 : index
      %16 = vector.load %arg6[%c0_14, %c0_15] : memref<32x128xf32, #tpu.memory_space<vmem>>, vector<32x128xf32>
      tpu.vector_store %arg6[%c0_14, %c0_15], %15 {strides = array<i32>} : memref<32x128xf32, #tpu.memory_space<vmem>>, vector<32x128xf32>,
    } else {
    }
    return
  }
  func.func @transform_0(%arg0: i32, %arg1: i32, %arg2: i32) -> (i32, i32) {
    %c0_i32 = arith.constant 0 : i32
    return %arg0, %arg2 : i32, i32
  }
  func.func @transform_1(%arg0: i32, %arg1: i32, %arg2: i32) -> (i32, i32) {
    %c0_i32 = arith.constant 0 : i32
    return %arg2, %arg1 : i32, i32
  }
  func.func @transform_2(%arg0: i32, %arg1: i32, %arg2: i32) -> (i32, i32) {
    %c0_i32 = arith.constant 0 : i32
    %c0_i32_0 = arith.constant 0 : i32
    return %c0_i32, %arg1 : i32, i32
  }
  func.func @transform_3(%arg0: i32, %arg1: i32, %arg2: i32) -> (i32, i32) {
    %c0_i32 = arith.constant 0 : i32
    return %arg0, %arg1 : i32, i32
  }
}

module attributes {stable_mosaic.version = 11 : i64} {
  func.func @_attention_kernel(%arg0: i32, %arg1: i32, %arg2: memref<4x8x128xf32, #tpu.memory_space<vmem>>, %arg3: memref<80xf32, #tpu.memory_space<smem>>, %arg4: memref<20xf32, #tpu.memory_space<smem>>, %arg5: memref<4x8x128xf32, #tpu.memory_space<vmem>>) attributes {dimension_semantics = [#tpu.dimension_semantics<parallel>, #tpu.dimension_semantics<parallel>], iteration_bounds = array<i64: 1, 1>, scalar_prefetch = 0 : i64, scratch_operands = 0 : i64, tpu.core_type = #tpu.core_type<tc>, window_params = [{transform_indices = @transform_0, window_bounds = array<i64: 4, 8, 128>}, {transform_indices = @transform_1, window_bounds = array<i64: 80>}, {transform_indices = @transform_2, window_bounds = array<i64: 20>}, {transform_indices = @transform_3, window_bounds = array<i64: 4, 8, 128>}]} {
    %c0 = arith.constant 0 : index
    %c0_0 = arith.constant 0 : index
    %c0_1 = arith.constant 0 : index
    %0 = vector.load %arg2[%c0, %c0_0, %c0_1] : memref<4x8x128xf32, #tpu.memory_space<vmem>>, vector<1x8x128xf32>
    %1 = vector.shape_cast %0 : vector<1x8x128xf32> to vector<8x128xf32>
    %c1 = arith.constant 1 : index
    %c0_2 = arith.constant 0 : index
    %c0_3 = arith.constant 0 : index
    %2 = vector.load %arg2[%c1, %c0_2, %c0_3] : memref<4x8x128xf32, #tpu.memory_space<vmem>>, vector<1x8x128xf32>
    %3 = vector.shape_cast %2 : vector<1x8x128xf32> to vector<8x128xf32>
    %c2 = arith.constant 2 : index
    %c0_4 = arith.constant 0 : index
    %c0_5 = arith.constant 0 : index
    %4 = vector.load %arg2[%c2, %c0_4, %c0_5] : memref<4x8x128xf32, #tpu.memory_space<vmem>>, vector<1x8x128xf32>
    %5 = vector.shape_cast %4 : vector<1x8x128xf32> to vector<8x128xf32>
    %c3 = arith.constant 3 : index
    %c0_6 = arith.constant 0 : index
    %c0_7 = arith.constant 0 : index
    %6 = vector.load %arg2[%c3, %c0_6, %c0_7] : memref<4x8x128xf32, #tpu.memory_space<vmem>>, vector<1x8x128xf32>
    %7 = vector.shape_cast %6 : vector<1x8x128xf32> to vector<8x128xf32>
    %c0_8 = arith.constant 0 : index
    %8 = memref.load %arg3[%c0_8] : memref<80xf32, #tpu.memory_space<smem>>
    %9 = vector.broadcast %8 : f32 to vector<8x128xf32>
    %10 = arith.mulf %1, %9 : vector<8x128xf32>
    %c0_9 = arith.constant 0 : index
    %11 = memref.load %arg4[%c0_9] : memref<20xf32, #tpu.memory_space<smem>>
    %12 = vector.broadcast %11 : f32 to vector<8x128xf32>
    %13 = arith.addf %10, %12 : vector<8x128xf32>
    %c1_10 = arith.constant 1 : index
    %14 = memref.load %arg3[%c1_10] : memref<80xf32, #tpu.memory_space<smem>>
    %15 = vector.broadcast %14 : f32 to vector<8x128xf32>
    %16 = arith.mulf %3, %15 : vector<8x128xf32>
    %17 = arith.addf %13, %16 : vector<8x128xf32>
    %c2_11 = arith.constant 2 : index
    %18 = memref.load %arg3[%c2_11] : memref<80xf32, #tpu.memory_space<smem>>
    %19 = vector.broadcast %18 : f32 to vector<8x128xf32>
    %20 = arith.mulf %5, %19 : vector<8x128xf32>
    %21 = arith.addf %17, %20 : vector<8x128xf32>
    %c3_12 = arith.constant 3 : index
    %22 = memref.load %arg3[%c3_12] : memref<80xf32, #tpu.memory_space<smem>>
    %23 = vector.broadcast %22 : f32 to vector<8x128xf32>
    %24 = arith.mulf %7, %23 : vector<8x128xf32>
    %25 = arith.addf %21, %24 : vector<8x128xf32>
    %cst = arith.constant 0.000000e+00 : f32
    %26 = vector.broadcast %cst : f32 to vector<8x128xf32>
    %27 = arith.maximumf %25, %26 : vector<8x128xf32>
    %c4 = arith.constant 4 : index
    %28 = memref.load %arg3[%c4] : memref<80xf32, #tpu.memory_space<smem>>
    %29 = vector.broadcast %28 : f32 to vector<8x128xf32>
    %30 = arith.mulf %1, %29 : vector<8x128xf32>
    %c1_13 = arith.constant 1 : index
    %31 = memref.load %arg4[%c1_13] : memref<20xf32, #tpu.memory_space<smem>>
    %32 = vector.broadcast %31 : f32 to vector<8x128xf32>
    %33 = arith.addf %30, %32 : vector<8x128xf32>
    %c5 = arith.constant 5 : index
    %34 = memref.load %arg3[%c5] : memref<80xf32, #tpu.memory_space<smem>>
    %35 = vector.broadcast %34 : f32 to vector<8x128xf32>
    %36 = arith.mulf %3, %35 : vector<8x128xf32>
    %37 = arith.addf %33, %36 : vector<8x128xf32>
    %c6 = arith.constant 6 : index
    %38 = memref.load %arg3[%c6] : memref<80xf32, #tpu.memory_space<smem>>
    %39 = vector.broadcast %38 : f32 to vector<8x128xf32>
    %40 = arith.mulf %5, %39 : vector<8x128xf32>
    %41 = arith.addf %37, %40 : vector<8x128xf32>
    %c7 = arith.constant 7 : index
    %42 = memref.load %arg3[%c7] : memref<80xf32, #tpu.memory_space<smem>>
    %43 = vector.broadcast %42 : f32 to vector<8x128xf32>
    %44 = arith.mulf %7, %43 : vector<8x128xf32>
    %45 = arith.addf %41, %44 : vector<8x128xf32>
    %cst_14 = arith.constant 0.000000e+00 : f32
    %46 = vector.broadcast %cst_14 : f32 to vector<8x128xf32>
    %47 = arith.maximumf %45, %46 : vector<8x128xf32>
    %c8 = arith.constant 8 : index
    %48 = memref.load %arg3[%c8] : memref<80xf32, #tpu.memory_space<smem>>
    %49 = vector.broadcast %48 : f32 to vector<8x128xf32>
    %50 = arith.mulf %1, %49 : vector<8x128xf32>
    %c2_15 = arith.constant 2 : index
    %51 = memref.load %arg4[%c2_15] : memref<20xf32, #tpu.memory_space<smem>>
    %52 = vector.broadcast %51 : f32 to vector<8x128xf32>
    %53 = arith.addf %50, %52 : vector<8x128xf32>
    %c9 = arith.constant 9 : index
    %54 = memref.load %arg3[%c9] : memref<80xf32, #tpu.memory_space<smem>>
    %55 = vector.broadcast %54 : f32 to vector<8x128xf32>
    %56 = arith.mulf %3, %55 : vector<8x128xf32>
    %57 = arith.addf %53, %56 : vector<8x128xf32>
    %c10 = arith.constant 10 : index
    %58 = memref.load %arg3[%c10] : memref<80xf32, #tpu.memory_space<smem>>
    %59 = vector.broadcast %58 : f32 to vector<8x128xf32>
    %60 = arith.mulf %5, %59 : vector<8x128xf32>
    %61 = arith.addf %57, %60 : vector<8x128xf32>
    %c11 = arith.constant 11 : index
    %62 = memref.load %arg3[%c11] : memref<80xf32, #tpu.memory_space<smem>>
    %63 = vector.broadcast %62 : f32 to vector<8x128xf32>
    %64 = arith.mulf %7, %63 : vector<8x128xf32>
    %65 = arith.addf %61, %64 : vector<8x128xf32>
    %cst_16 = arith.constant 0.000000e+00 : f32
    %66 = vector.broadcast %cst_16 : f32 to vector<8x128xf32>
    %67 = arith.maximumf %65, %66 : vector<8x128xf32>
    %c12 = arith.constant 12 : index
    %68 = memref.load %arg3[%c12] : memref<80xf32, #tpu.memory_space<smem>>
    %69 = vector.broadcast %68 : f32 to vector<8x128xf32>
    %70 = arith.mulf %1, %69 : vector<8x128xf32>
    %c3_17 = arith.constant 3 : index
    %71 = memref.load %arg4[%c3_17] : memref<20xf32, #tpu.memory_space<smem>>
    %72 = vector.broadcast %71 : f32 to vector<8x128xf32>
    %73 = arith.addf %70, %72 : vector<8x128xf32>
    %c13 = arith.constant 13 : index
    %74 = memref.load %arg3[%c13] : memref<80xf32, #tpu.memory_space<smem>>
    %75 = vector.broadcast %74 : f32 to vector<8x128xf32>
    %76 = arith.mulf %3, %75 : vector<8x128xf32>
    %77 = arith.addf %73, %76 : vector<8x128xf32>
    %c14 = arith.constant 14 : index
    %78 = memref.load %arg3[%c14] : memref<80xf32, #tpu.memory_space<smem>>
    %79 = vector.broadcast %78 : f32 to vector<8x128xf32>
    %80 = arith.mulf %5, %79 : vector<8x128xf32>
    %81 = arith.addf %77, %80 : vector<8x128xf32>
    %c15 = arith.constant 15 : index
    %82 = memref.load %arg3[%c15] : memref<80xf32, #tpu.memory_space<smem>>
    %83 = vector.broadcast %82 : f32 to vector<8x128xf32>
    %84 = arith.mulf %7, %83 : vector<8x128xf32>
    %85 = arith.addf %81, %84 : vector<8x128xf32>
    %cst_18 = arith.constant 0.000000e+00 : f32
    %86 = vector.broadcast %cst_18 : f32 to vector<8x128xf32>
    %87 = arith.maximumf %85, %86 : vector<8x128xf32>
    %c64 = arith.constant 64 : index
    %88 = memref.load %arg3[%c64] : memref<80xf32, #tpu.memory_space<smem>>
    %89 = vector.broadcast %88 : f32 to vector<8x128xf32>
    %90 = arith.mulf %27, %89 : vector<8x128xf32>
    %c16 = arith.constant 16 : index
    %91 = memref.load %arg4[%c16] : memref<20xf32, #tpu.memory_space<smem>>
    %92 = vector.broadcast %91 : f32 to vector<8x128xf32>
    %93 = arith.addf %90, %92 : vector<8x128xf32>
    %c65 = arith.constant 65 : index
    %94 = memref.load %arg3[%c65] : memref<80xf32, #tpu.memory_space<smem>>
    %95 = vector.broadcast %94 : f32 to vector<8x128xf32>
    %96 = arith.mulf %47, %95 : vector<8x128xf32>
    %97 = arith.addf %93, %96 : vector<8x128xf32>
    %c66 = arith.constant 66 : index
    %98 = memref.load %arg3[%c66] : memref<80xf32, #tpu.memory_space<smem>>
    %99 = vector.broadcast %98 : f32 to vector<8x128xf32>
    %100 = arith.mulf %67, %99 : vector<8x128xf32>
    %101 = arith.addf %97, %100 : vector<8x128xf32>
    %c67 = arith.constant 67 : index
    %102 = memref.load %arg3[%c67] : memref<80xf32, #tpu.memory_space<smem>>
    %103 = vector.broadcast %102 : f32 to vector<8x128xf32>
    %104 = arith.mulf %87, %103 : vector<8x128xf32>
    %105 = arith.addf %101, %104 : vector<8x128xf32>
    %106 = arith.negf %105 : vector<8x128xf32>
    %107 = math.exp %106 : vector<8x128xf32>
    %cst_19 = arith.constant 1.000000e+00 : f32
    %108 = vector.broadcast %cst_19 : f32 to vector<8x128xf32>
    %109 = arith.addf %108, %107 : vector<8x128xf32>
    %110 = arith.divf %108, %109 : vector<8x128xf32>
    %c68 = arith.constant 68 : index
    %111 = memref.load %arg3[%c68] : memref<80xf32, #tpu.memory_space<smem>>
    %112 = vector.broadcast %111 : f32 to vector<8x128xf32>
    %113 = arith.mulf %27, %112 : vector<8x128xf32>
    %c17 = arith.constant 17 : index
    %114 = memref.load %arg4[%c17] : memref<20xf32, #tpu.memory_space<smem>>
    %115 = vector.broadcast %114 : f32 to vector<8x128xf32>
    %116 = arith.addf %113, %115 : vector<8x128xf32>
    %c69 = arith.constant 69 : index
    %117 = memref.load %arg3[%c69] : memref<80xf32, #tpu.memory_space<smem>>
    %118 = vector.broadcast %117 : f32 to vector<8x128xf32>
    %119 = arith.mulf %47, %118 : vector<8x128xf32>
    %120 = arith.addf %116, %119 : vector<8x128xf32>
    %c70 = arith.constant 70 : index
    %121 = memref.load %arg3[%c70] : memref<80xf32, #tpu.memory_space<smem>>
    %122 = vector.broadcast %121 : f32 to vector<8x128xf32>
    %123 = arith.mulf %67, %122 : vector<8x128xf32>
    %124 = arith.addf %120, %123 : vector<8x128xf32>
    %c71 = arith.constant 71 : index
    %125 = memref.load %arg3[%c71] : memref<80xf32, #tpu.memory_space<smem>>
    %126 = vector.broadcast %125 : f32 to vector<8x128xf32>
    %127 = arith.mulf %87, %126 : vector<8x128xf32>
    %128 = arith.addf %124, %127 : vector<8x128xf32>
    %129 = arith.negf %128 : vector<8x128xf32>
    %130 = math.exp %129 : vector<8x128xf32>
    %cst_20 = arith.constant 1.000000e+00 : f32
    %131 = vector.broadcast %cst_20 : f32 to vector<8x128xf32>
    %132 = arith.addf %131, %130 : vector<8x128xf32>
    %133 = arith.divf %131, %132 : vector<8x128xf32>
    %c72 = arith.constant 72 : index
    %134 = memref.load %arg3[%c72] : memref<80xf32, #tpu.memory_space<smem>>
    %135 = vector.broadcast %134 : f32 to vector<8x128xf32>
    %136 = arith.mulf %27, %135 : vector<8x128xf32>
    %c18 = arith.constant 18 : index
    %137 = memref.load %arg4[%c18] : memref<20xf32, #tpu.memory_space<smem>>
    %138 = vector.broadcast %137 : f32 to vector<8x128xf32>
    %139 = arith.addf %136, %138 : vector<8x128xf32>
    %c73 = arith.constant 73 : index
    %140 = memref.load %arg3[%c73] : memref<80xf32, #tpu.memory_space<smem>>
    %141 = vector.broadcast %140 : f32 to vector<8x128xf32>
    %142 = arith.mulf %47, %141 : vector<8x128xf32>
    %143 = arith.addf %139, %142 : vector<8x128xf32>
    %c74 = arith.constant 74 : index
    %144 = memref.load %arg3[%c74] : memref<80xf32, #tpu.memory_space<smem>>
    %145 = vector.broadcast %144 : f32 to vector<8x128xf32>
    %146 = arith.mulf %67, %145 : vector<8x128xf32>
    %147 = arith.addf %143, %146 : vector<8x128xf32>
    %c75 = arith.constant 75 : index
    %148 = memref.load %arg3[%c75] : memref<80xf32, #tpu.memory_space<smem>>
    %149 = vector.broadcast %148 : f32 to vector<8x128xf32>
    %150 = arith.mulf %87, %149 : vector<8x128xf32>
    %151 = arith.addf %147, %150 : vector<8x128xf32>
    %152 = arith.negf %151 : vector<8x128xf32>
    %153 = math.exp %152 : vector<8x128xf32>
    %cst_21 = arith.constant 1.000000e+00 : f32
    %154 = vector.broadcast %cst_21 : f32 to vector<8x128xf32>
    %155 = arith.addf %154, %153 : vector<8x128xf32>
    %156 = arith.divf %154, %155 : vector<8x128xf32>
    %c76 = arith.constant 76 : index
    %157 = memref.load %arg3[%c76] : memref<80xf32, #tpu.memory_space<smem>>
    %158 = vector.broadcast %157 : f32 to vector<8x128xf32>
    %159 = arith.mulf %27, %158 : vector<8x128xf32>
    %c19 = arith.constant 19 : index
    %160 = memref.load %arg4[%c19] : memref<20xf32, #tpu.memory_space<smem>>
    %161 = vector.broadcast %160 : f32 to vector<8x128xf32>
    %162 = arith.addf %159, %161 : vector<8x128xf32>
    %c77 = arith.constant 77 : index
    %163 = memref.load %arg3[%c77] : memref<80xf32, #tpu.memory_space<smem>>
    %164 = vector.broadcast %163 : f32 to vector<8x128xf32>
    %165 = arith.mulf %47, %164 : vector<8x128xf32>
    %166 = arith.addf %162, %165 : vector<8x128xf32>
    %c78 = arith.constant 78 : index
    %167 = memref.load %arg3[%c78] : memref<80xf32, #tpu.memory_space<smem>>
    %168 = vector.broadcast %167 : f32 to vector<8x128xf32>
    %169 = arith.mulf %67, %168 : vector<8x128xf32>
    %170 = arith.addf %166, %169 : vector<8x128xf32>
    %c79 = arith.constant 79 : index
    %171 = memref.load %arg3[%c79] : memref<80xf32, #tpu.memory_space<smem>>
    %172 = vector.broadcast %171 : f32 to vector<8x128xf32>
    %173 = arith.mulf %87, %172 : vector<8x128xf32>
    %174 = arith.addf %170, %173 : vector<8x128xf32>
    %175 = arith.negf %174 : vector<8x128xf32>
    %176 = math.exp %175 : vector<8x128xf32>
    %cst_22 = arith.constant 1.000000e+00 : f32
    %177 = vector.broadcast %cst_22 : f32 to vector<8x128xf32>
    %178 = arith.addf %177, %176 : vector<8x128xf32>
    %179 = arith.divf %177, %178 : vector<8x128xf32>
    %c0_23 = arith.constant 0 : index
    %c0_24 = arith.constant 0 : index
    %c0_25 = arith.constant 0 : index
    %180 = vector.load %arg5[%c0_23, %c0_24, %c0_25] : memref<4x8x128xf32, #tpu.memory_space<vmem>>, vector<1x8x128xf32>
    %181 = vector.shape_cast %180 : vector<1x8x128xf32> to vector<8x128xf32>
    %182 = vector.shape_cast %110 : vector<8x128xf32> to vector<1x8x128xf32>
    tpu.vector_store %arg5[%c0_23, %c0_24, %c0_25], %182 {strides = array<i32>} : memref<4x8x128xf32, #tpu.memory_space<vmem>>, vector<1x8x128xf32>,
    %c1_26 = arith.constant 1 : index
    %c0_27 = arith.constant 0 : index
    %c0_28 = arith.constant 0 : index
    %183 = vector.load %arg5[%c1_26, %c0_27, %c0_28] : memref<4x8x128xf32, #tpu.memory_space<vmem>>, vector<1x8x128xf32>
    %184 = vector.shape_cast %183 : vector<1x8x128xf32> to vector<8x128xf32>
    %185 = vector.shape_cast %133 : vector<8x128xf32> to vector<1x8x128xf32>
    tpu.vector_store %arg5[%c1_26, %c0_27, %c0_28], %185 {strides = array<i32>} : memref<4x8x128xf32, #tpu.memory_space<vmem>>, vector<1x8x128xf32>,
    %c2_29 = arith.constant 2 : index
    %c0_30 = arith.constant 0 : index
    %c0_31 = arith.constant 0 : index
    %186 = vector.load %arg5[%c2_29, %c0_30, %c0_31] : memref<4x8x128xf32, #tpu.memory_space<vmem>>, vector<1x8x128xf32>
    %187 = vector.shape_cast %186 : vector<1x8x128xf32> to vector<8x128xf32>
    %188 = vector.shape_cast %156 : vector<8x128xf32> to vector<1x8x128xf32>
    tpu.vector_store %arg5[%c2_29, %c0_30, %c0_31], %188 {strides = array<i32>} : memref<4x8x128xf32, #tpu.memory_space<vmem>>, vector<1x8x128xf32>,
    %c3_32 = arith.constant 3 : index
    %c0_33 = arith.constant 0 : index
    %c0_34 = arith.constant 0 : index
    %189 = vector.load %arg5[%c3_32, %c0_33, %c0_34] : memref<4x8x128xf32, #tpu.memory_space<vmem>>, vector<1x8x128xf32>
    %190 = vector.shape_cast %189 : vector<1x8x128xf32> to vector<8x128xf32>
    %191 = vector.shape_cast %179 : vector<8x128xf32> to vector<1x8x128xf32>
    tpu.vector_store %arg5[%c3_32, %c0_33, %c0_34], %191 {strides = array<i32>} : memref<4x8x128xf32, #tpu.memory_space<vmem>>, vector<1x8x128xf32>,
    return
  }
  func.func @transform_0(%arg0: i32, %arg1: i32) -> (i32, i32, i32) {
    %c0_i32 = arith.constant 0 : i32
    %c0_i32_0 = arith.constant 0 : i32
    return %c0_i32, %arg0, %arg1 : i32, i32, i32
  }
  func.func @transform_1(%arg0: i32, %arg1: i32) -> i32 {
    %c0_i32 = arith.constant 0 : i32
    %c0_i32_0 = arith.constant 0 : i32
    return %c0_i32 : i32
  }
  func.func @transform_2(%arg0: i32, %arg1: i32) -> i32 {
    %c0_i32 = arith.constant 0 : i32
    %c0_i32_0 = arith.constant 0 : i32
    return %c0_i32 : i32
  }
  func.func @transform_3(%arg0: i32, %arg1: i32) -> (i32, i32, i32) {
    %c0_i32 = arith.constant 0 : i32
    %c0_i32_0 = arith.constant 0 : i32
    return %c0_i32, %arg0, %arg1 : i32, i32, i32
  }
}

module attributes {stable_mosaic.version = 11 : i64} {
  func.func @_mm_kernel(%arg0: i32, %arg1: i32, %arg2: i32, %arg3: memref<32x128xbf16, #tpu.memory_space<vmem>>, %arg4: memref<128x128xbf16, #tpu.memory_space<vmem>>, %arg5: memref<1x128xf32, #tpu.memory_space<vmem>>, %arg6: memref<32x128xf32, #tpu.memory_space<vmem>>, %arg7: memref<32x128xf32, #tpu.memory_space<vmem>>) attributes {dimension_semantics = [#tpu.dimension_semantics<parallel>, #tpu.dimension_semantics<parallel>, #tpu.dimension_semantics<arbitrary>], iteration_bounds = array<i64: 1, 1, 1>, scalar_prefetch = 0 : i64, scratch_operands = 1 : i64, tpu.core_type = #tpu.core_type<tc>, window_params = [{transform_indices = @transform_0, window_bounds = array<i64: 32, 128>}, {transform_indices = @transform_1, window_bounds = array<i64: 128, 128>}, {transform_indices = @transform_2, window_bounds = array<i64: 1, 128>}, {transform_indices = @transform_3, window_bounds = array<i64: 32, 128>}]} {
    %c0_i32 = arith.constant 0 : i32
    %0 = arith.cmpi eq, %arg2, %c0_i32 : i32
    %1 = arith.extui %0 : i1 to i32
    %c0_i32_0 = arith.constant 0 : i32
    %2 = arith.cmpi ne, %1, %c0_i32_0 : i32
    scf.if %2 {
      %cst_10 = arith.constant 0.000000e+00 : f32
      %12 = vector.broadcast %cst_10 : f32 to vector<32x128xf32>
      %c0_11 = arith.constant 0 : index
      %c0_12 = arith.constant 0 : index
      %13 = vector.load %arg7[%c0_11, %c0_12] : memref<32x128xf32, #tpu.memory_space<vmem>>, vector<32x128xf32>
      tpu.vector_store %arg7[%c0_11, %c0_12], %12 {strides = array<i32>} : memref<32x128xf32, #tpu.memory_space<vmem>>, vector<32x128xf32>,
    } else {
    }
    %c0 = arith.constant 0 : index
    %c0_1 = arith.constant 0 : index
    %3 = vector.load %arg7[%c0, %c0_1] : memref<32x128xf32, #tpu.memory_space<vmem>>, vector<32x128xf32>
    %c0_2 = arith.constant 0 : index
    %c0_3 = arith.constant 0 : index
    %4 = vector.load %arg3[%c0_2, %c0_3] : memref<32x128xbf16, #tpu.memory_space<vmem>>, vector<32x128xbf16>
    %c0_4 = arith.constant 0 : index
    %c0_5 = arith.constant 0 : index
    %5 = vector.load %arg4[%c0_4, %c0_5] : memref<128x128xbf16, #tpu.memory_space<vmem>>, vector<128x128xbf16>
    %cst = arith.constant dense<0.000000e+00> : vector<32x128xf32>
    %6 = tpu.matmul %4, %5, %cst {dimension_numbers = #tpu.dot_dimension_numbers<[1], [0], [0], [1], [0, 0, 1, 1], [], []>} : vector<32x128xbf16>, vector<128x128xbf16>, vector<32x128xf32> -> vector<32x128xf32>
    %7 = arith.addf %3, %6 : vector<32x128xf32>
    %c0_6 = arith.constant 0 : index
    %c0_7 = arith.constant 0 : index
    %8 = vector.load %arg7[%c0_6, %c0_7] : memref<32x128xf32, #tpu.memory_space<vmem>>, vector<32x128xf32>
    tpu.vector_store %arg7[%c0_6, %c0_7], %7 {strides = array<i32>} : memref<32x128xf32, #tpu.memory_space<vmem>>, vector<32x128xf32>,
    %c0_i32_8 = arith.constant 0 : i32
    %9 = arith.cmpi eq, %arg2, %c0_i32_8 : i32
    %10 = arith.extui %9 : i1 to i32
    %c0_i32_9 = arith.constant 0 : i32
    %11 = arith.cmpi ne, %10, %c0_i32_9 : i32
    scf.if %11 {
      %c0_10 = arith.constant 0 : index
      %c0_11 = arith.constant 0 : index
      %12 = vector.load %arg7[%c0_10, %c0_11] : memref<32x128xf32, #tpu.memory_space<vmem>>, vector<32x128xf32>
      %c0_12 = arith.constant 0 : index
      %c0_13 = arith.constant 0 : index
      %13 = vector.load %arg5[%c0_12, %c0_13] : memref<1x128xf32, #tpu.memory_space<vmem>>, vector<1x128xf32>
      %14 = vector.broadcast %13 : vector<1x128xf32> to vector<32x128xf32>
      %15 = arith.addf %12, %14 : vector<32x128xf32>
      %cst_14 = arith.constant 0.000000e+00 : f32
      %16 = vector.broadcast %cst_14 : f32 to vector<32x128xf32>
      %17 = arith.maximumf %15, %16 : vector<32x128xf32>
      %c0_15 = arith.constant 0 : index
      %c0_16 = arith.constant 0 : index
      %18 = vector.load %arg6[%c0_15, %c0_16] : memref<32x128xf32, #tpu.memory_space<vmem>>, vector<32x128xf32>
      tpu.vector_store %arg6[%c0_15, %c0_16], %17 {strides = array<i32>} : memref<32x128xf32, #tpu.memory_space<vmem>>, vector<32x128xf32>,
    } else {
    }
    return
  }
  func.func @transform_0(%arg0: i32, %arg1: i32, %arg2: i32) -> (i32, i32) {
    %c0_i32 = arith.constant 0 : i32
    return %arg0, %arg2 : i32, i32
  }
  func.func @transform_1(%arg0: i32, %arg1: i32, %arg2: i32) -> (i32, i32) {
    %c0_i32 = arith.constant 0 : i32
    return %arg2, %arg1 : i32, i32
  }
  func.func @transform_2(%arg0: i32, %arg1: i32, %arg2: i32) -> (i32, i32) {
    %c0_i32 = arith.constant 0 : i32
    %c0_i32_0 = arith.constant 0 : i32
    return %c0_i32, %arg1 : i32, i32
  }
  func.func @transform_3(%arg0: i32, %arg1: i32, %arg2: i32) -> (i32, i32) {
    %c0_i32 = arith.constant 0 : i32
    return %arg0, %arg1 : i32, i32
  }
}

module attributes {stable_mosaic.version = 11 : i64} {
  func.func @_mm_kernel(%arg0: i32, %arg1: i32, %arg2: i32, %arg3: memref<8x128xbf16, #tpu.memory_space<vmem>>, %arg4: memref<128x128xbf16, #tpu.memory_space<vmem>>, %arg5: memref<1x128xf32, #tpu.memory_space<vmem>>, %arg6: memref<8x128xf32, #tpu.memory_space<vmem>>, %arg7: memref<8x128xf32, #tpu.memory_space<vmem>>) attributes {dimension_semantics = [#tpu.dimension_semantics<parallel>, #tpu.dimension_semantics<parallel>, #tpu.dimension_semantics<arbitrary>], iteration_bounds = array<i64: 1, 1, 1>, scalar_prefetch = 0 : i64, scratch_operands = 1 : i64, tpu.core_type = #tpu.core_type<tc>, window_params = [{transform_indices = @transform_0, window_bounds = array<i64: 8, 128>}, {transform_indices = @transform_1, window_bounds = array<i64: 128, 128>}, {transform_indices = @transform_2, window_bounds = array<i64: 1, 128>}, {transform_indices = @transform_3, window_bounds = array<i64: 8, 128>}]} {
    %c0_i32 = arith.constant 0 : i32
    %0 = arith.cmpi eq, %arg2, %c0_i32 : i32
    %1 = arith.extui %0 : i1 to i32
    %c0_i32_0 = arith.constant 0 : i32
    %2 = arith.cmpi ne, %1, %c0_i32_0 : i32
    scf.if %2 {
      %cst_10 = arith.constant 0.000000e+00 : f32
      %12 = vector.broadcast %cst_10 : f32 to vector<8x128xf32>
      %c0_11 = arith.constant 0 : index
      %c0_12 = arith.constant 0 : index
      %13 = vector.load %arg7[%c0_11, %c0_12] : memref<8x128xf32, #tpu.memory_space<vmem>>, vector<8x128xf32>
      tpu.vector_store %arg7[%c0_11, %c0_12], %12 {strides = array<i32>} : memref<8x128xf32, #tpu.memory_space<vmem>>, vector<8x128xf32>,
    } else {
    }
    %c0 = arith.constant 0 : index
    %c0_1 = arith.constant 0 : index
    %3 = vector.load %arg7[%c0, %c0_1] : memref<8x128xf32, #tpu.memory_space<vmem>>, vector<8x128xf32>
    %c0_2 = arith.constant 0 : index
    %c0_3 = arith.constant 0 : index
    %4 = vector.load %arg3[%c0_2, %c0_3] : memref<8x128xbf16, #tpu.memory_space<vmem>>, vector<8x128xbf16>
    %c0_4 = arith.constant 0 : index
    %c0_5 = arith.constant 0 : index
    %5 = vector.load %arg4[%c0_4, %c0_5] : memref<128x128xbf16, #tpu.memory_space<vmem>>, vector<128x128xbf16>
    %cst = arith.constant dense<0.000000e+00> : vector<8x128xf32>
    %6 = tpu.matmul %4, %5, %cst {dimension_numbers = #tpu.dot_dimension_numbers<[1], [0], [0], [1], [0, 0, 1, 1], [], []>} : vector<8x128xbf16>, vector<128x128xbf16>, vector<8x128xf32> -> vector<8x128xf32>
    %7 = arith.addf %3, %6 : vector<8x128xf32>
    %c0_6 = arith.constant 0 : index
    %c0_7 = arith.constant 0 : index
    %8 = vector.load %arg7[%c0_6, %c0_7] : memref<8x128xf32, #tpu.memory_space<vmem>>, vector<8x128xf32>
    tpu.vector_store %arg7[%c0_6, %c0_7], %7 {strides = array<i32>} : memref<8x128xf32, #tpu.memory_space<vmem>>, vector<8x128xf32>,
    %c0_i32_8 = arith.constant 0 : i32
    %9 = arith.cmpi eq, %arg2, %c0_i32_8 : i32
    %10 = arith.extui %9 : i1 to i32
    %c0_i32_9 = arith.constant 0 : i32
    %11 = arith.cmpi ne, %10, %c0_i32_9 : i32
    scf.if %11 {
      %c0_10 = arith.constant 0 : index
      %c0_11 = arith.constant 0 : index
      %12 = vector.load %arg7[%c0_10, %c0_11] : memref<8x128xf32, #tpu.memory_space<vmem>>, vector<8x128xf32>
      %c0_12 = arith.constant 0 : index
      %c0_13 = arith.constant 0 : index
      %13 = vector.load %arg5[%c0_12, %c0_13] : memref<1x128xf32, #tpu.memory_space<vmem>>, vector<1x128xf32>
      %14 = vector.broadcast %13 : vector<1x128xf32> to vector<8x128xf32>
      %15 = arith.addf %12, %14 : vector<8x128xf32>
      %c0_14 = arith.constant 0 : index
      %c0_15 = arith.constant 0 : index
      %16 = vector.load %arg6[%c0_14, %c0_15] : memref<8x128xf32, #tpu.memory_space<vmem>>, vector<8x128xf32>
      tpu.vector_store %arg6[%c0_14, %c0_15], %15 {strides = array<i32>} : memref<8x128xf32, #tpu.memory_space<vmem>>, vector<8x128xf32>,
    } else {
    }
    return
  }
  func.func @transform_0(%arg0: i32, %arg1: i32, %arg2: i32) -> (i32, i32) {
    %c0_i32 = arith.constant 0 : i32
    return %arg0, %arg2 : i32, i32
  }
  func.func @transform_1(%arg0: i32, %arg1: i32, %arg2: i32) -> (i32, i32) {
    %c0_i32 = arith.constant 0 : i32
    return %arg2, %arg1 : i32, i32
  }
  func.func @transform_2(%arg0: i32, %arg1: i32, %arg2: i32) -> (i32, i32) {
    %c0_i32 = arith.constant 0 : i32
    %c0_i32_0 = arith.constant 0 : i32
    return %c0_i32, %arg1 : i32, i32
  }
  func.func @transform_3(%arg0: i32, %arg1: i32, %arg2: i32) -> (i32, i32) {
    %c0_i32 = arith.constant 0 : i32
    return %arg0, %arg1 : i32, i32
  }
}

module attributes {stable_mosaic.version = 11 : i64} {
  func.func @_mul_pool_kernel(%arg0: i32, %arg1: i32, %arg2: memref<2x16x128xf32, #tpu.memory_space<vmem>>, %arg3: memref<2x16x128xf32, #tpu.memory_space<vmem>>, %arg4: memref<2x128xf32, #tpu.memory_space<vmem>>) attributes {dimension_semantics = [#tpu.dimension_semantics<parallel>, #tpu.dimension_semantics<arbitrary>], iteration_bounds = array<i64: 1, 1>, scalar_prefetch = 0 : i64, scratch_operands = 0 : i64, tpu.core_type = #tpu.core_type<tc>, window_params = [{transform_indices = @transform_0, window_bounds = array<i64: 2, 16, 128>}, {transform_indices = @transform_1, window_bounds = array<i64: 2, 16, 128>}, {transform_indices = @transform_2, window_bounds = array<i64: 2, 128>}]} {
    %c0_i32 = arith.constant 0 : i32
    %0 = arith.cmpi eq, %arg1, %c0_i32 : i32
    %1 = arith.extui %0 : i1 to i32
    %c0_i32_0 = arith.constant 0 : i32
    %2 = arith.cmpi ne, %1, %c0_i32_0 : i32
    scf.if %2 {
      %cst_11 = arith.constant 0.000000e+00 : f32
      %12 = vector.broadcast %cst_11 : f32 to vector<2x128xf32>
      %c0_12 = arith.constant 0 : index
      %c0_13 = arith.constant 0 : index
      %13 = vector.load %arg4[%c0_12, %c0_13] : memref<2x128xf32, #tpu.memory_space<vmem>>, vector<2x128xf32>
      tpu.vector_store %arg4[%c0_12, %c0_13], %12 {strides = array<i32>} : memref<2x128xf32, #tpu.memory_space<vmem>>, vector<2x128xf32>,
    } else {
    }
    %c0 = arith.constant 0 : index
    %c0_1 = arith.constant 0 : index
    %3 = vector.load %arg4[%c0, %c0_1] : memref<2x128xf32, #tpu.memory_space<vmem>>, vector<2x128xf32>
    %c0_2 = arith.constant 0 : index
    %c0_3 = arith.constant 0 : index
    %c0_4 = arith.constant 0 : index
    %4 = vector.load %arg2[%c0_2, %c0_3, %c0_4] : memref<2x16x128xf32, #tpu.memory_space<vmem>>, vector<2x16x128xf32>
    %c0_5 = arith.constant 0 : index
    %c0_6 = arith.constant 0 : index
    %c0_7 = arith.constant 0 : index
    %5 = vector.load %arg3[%c0_5, %c0_6, %c0_7] : memref<2x16x128xf32, #tpu.memory_space<vmem>>, vector<2x16x128xf32>
    %6 = arith.mulf %4, %5 : vector<2x16x128xf32>
    %cst = arith.constant dense<0.000000e+00> : vector<2x128xf32>
    %7 = vector.multi_reduction <add>, %6, %cst [1] : vector<2x16x128xf32> to vector<2x128xf32>
    %cst_8 = arith.constant 6.250000e-02 : f32
    %8 = vector.broadcast %cst_8 : f32 to vector<2x128xf32>
    %9 = arith.mulf %7, %8 : vector<2x128xf32>
    %10 = arith.addf %3, %9 : vector<2x128xf32>
    %c0_9 = arith.constant 0 : index
    %c0_10 = arith.constant 0 : index
    %11 = vector.load %arg4[%c0_9, %c0_10] : memref<2x128xf32, #tpu.memory_space<vmem>>, vector<2x128xf32>
    tpu.vector_store %arg4[%c0_9, %c0_10], %10 {strides = array<i32>} : memref<2x128xf32, #tpu.memory_space<vmem>>, vector<2x128xf32>,
    return
  }
  func.func @transform_0(%arg0: i32, %arg1: i32) -> (i32, i32, i32) {
    %c0_i32 = arith.constant 0 : i32
    %c0_i32_0 = arith.constant 0 : i32
    return %c0_i32, %arg1, %arg0 : i32, i32, i32
  }
  func.func @transform_1(%arg0: i32, %arg1: i32) -> (i32, i32, i32) {
    %c0_i32 = arith.constant 0 : i32
    %c0_i32_0 = arith.constant 0 : i32
    return %c0_i32, %arg1, %arg0 : i32, i32, i32
  }
  func.func @transform_2(%arg0: i32, %arg1: i32) -> (i32, i32) {
    %c0_i32 = arith.constant 0 : i32
    %c0_i32_0 = arith.constant 0 : i32
    return %c0_i32, %arg0 : i32, i32
  }
}

</mosaic_0001>

<llo_original>
// kernel: densenet_multi_att_forward.36
$region0: #{densenet_multi_att_forward.36}
  #allocation0 [shape = 'u32[]', space=smem, size = 0x4, offset = 0x4, fixed_abs, tag = 'smem constant byte address 0x4 - core index']
  #allocation1 [shape = 'u32[144,128]{1,0:T(1,128)}', space=vmem, size = 0x12000, scoped, tag = 'internal scratch']
  %s0 = inlined_call_operand.vmem [shape: f32[512,128], index: 0, kind: input, shape index: {}]
  %s1 = inlined_call_operand.vmem [shape: f32[1,128], index: 1, kind: output, shape index: {0}]
  %s2 = inlined_call_operand.vmem [shape: f32[1,128], index: 2, kind: output, shape index: {1}]
  %3 = xla_tuple %s1, %s2
  %s4 = sld [smem:[#allocation0]]
  $region26: #{densenet_multi_att_forward.36} parent=0
    _
  %s6 = ssub.s32 1, %s4
  %s7 = scalar_select 0, %s6, %s4
  // Predicated region
  $region2: #{densenet_multi_att_forward.36} parent=0 // pred_check
    _
  $region3: #{densenet_multi_att_forward.36} parent=0 // pred_check_branch
    %9 = sbr.rel (0) target = $region5
  $region4: #{densenet_multi_att_forward.36} parent=0 // pred_region
    _
  $region5: #{densenet_multi_att_forward.36} parent=0 // pred_fallthru
    _
  %p10 = scmp.eq.s32.totalorder 0, 0
  // Predicated region
  $region6: #{densenet_multi_att_forward.36} parent=0 // pred_check
    %p11 = pneg %p10
  $region7: #{densenet_multi_att_forward.36} parent=0 // pred_check_branch
    %13 = sbr.rel (%p11) target = $region9
  $region8: #{densenet_multi_att_forward.36} parent=0 // pred_region
    %14 = vst [vmem:[%s1] sm:$0x1] 0.0
    %15 = vst [vmem:[%s2] sm:$0x1] 0.0
  $region9: #{densenet_multi_att_forward.36} parent=0 // pred_fallthru
    _
  %v16 = vld [vmem:[%s0] sm:$0xff]
  %v17 = vld [vmem:[%s0 + $0x8] sm:$0xff]
  %v18 = vld [vmem:[%s0 + $0x10] sm:$0xff]
  %v19 = vld [vmem:[%s0 + $0x18] sm:$0xff]
  %v20 = vld [vmem:[%s0 + $0x20] sm:$0xff]
  %v21 = vld [vmem:[%s0 + $0x28] sm:$0xff]
  %v22 = vld [vmem:[%s0 + $0x30] sm:$0xff]
  %v23 = vld [vmem:[%s0 + $0x38] sm:$0xff]
  %v24 = vld [vmem:[%s0 + $0x40] sm:$0xff]
  %v25 = vld [vmem:[%s0 + $0x48] sm:$0xff]
  %v26 = vld [vmem:[%s0 + $0x50] sm:$0xff]
  %v27 = vld [vmem:[%s0 + $0x58] sm:$0xff]
  %v28 = vld [vmem:[%s0 + $0x60] sm:$0xff]
  %v29 = vld [vmem:[%s0 + $0x68] sm:$0xff]
  %v30 = vld [vmem:[%s0 + $0x70] sm:$0xff]
  %v31 = vld [vmem:[%s0 + $0x78] sm:$0xff]
  %v32 = vld [vmem:[%s0 + $0x80] sm:$0xff]
  %v33 = vld [vmem:[%s0 + $0x88] sm:$0xff]
  %v34 = vld [vmem:[%s0 + $0x90] sm:$0xff]
  %v35 = vld [vmem:[%s0 + $0x98] sm:$0xff]
  %v36 = vld [vmem:[%s0 + $0xa0] sm:$0xff]
  %v37 = vld [vmem:[%s0 + $0xa8] sm:$0xff]
  %v38 = vld [vmem:[%s0 + $0xb0] sm:$0xff]
  %v39 = vld [vmem:[%s0 + $0xb8] sm:$0xff]
  %v40 = vld [vmem:[%s0 + $0xc0] sm:$0xff]
  %v41 = vld [vmem:[%s0 + $0xc8] sm:$0xff]
  %v42 = vld [vmem:[%s0 + $0xd0] sm:$0xff]
  %v43 = vld [vmem:[%s0 + $0xd8] sm:$0xff]
  %v44 = vld [vmem:[%s0 + $0xe0] sm:$0xff]
  %v45 = vld [vmem:[%s0 + $0xe8] sm:$0xff]
  %v46 = vld [vmem:[%s0 + $0xf0] sm:$0xff]
  %v47 = vld [vmem:[%s0 + $0xf8] sm:$0xff]
  %v48 = vld [vmem:[%s0 + $0x100] sm:$0xff]
  %v49 = vld [vmem:[%s0 + $0x108] sm:$0xff]
  %v50 = vld [vmem:[%s0 + $0x110] sm:$0xff]
  %v51 = vld [vmem:[%s0 + $0x118] sm:$0xff]
  %v52 = vld [vmem:[%s0 + $0x120] sm:$0xff]
  %v53 = vld [vmem:[%s0 + $0x128] sm:$0xff]
  %v54 = vld [vmem:[%s0 + $0x130] sm:$0xff]
  %v55 = vld [vmem:[%s0 + $0x138] sm:$0xff]
  %v56 = vld [vmem:[%s0 + $0x140] sm:$0xff]
  %v57 = vld [vmem:[%s0 + $0x148] sm:$0xff]
  %v58 = vld [vmem:[%s0 + $0x150] sm:$0xff]
  %v59 = vld [vmem:[%s0 + $0x158] sm:$0xff]
  %v60 = vld [vmem:[%s0 + $0x160] sm:$0xff]
  %v61 = vld [vmem:[%s0 + $0x168] sm:$0xff]
  %v62 = vld [vmem:[%s0 + $0x170] sm:$0xff]
  %v63 = vld [vmem:[%s0 + $0x178] sm:$0xff]
  %v64 = vld [vmem:[%s0 + $0x180] sm:$0xff]
  %v65 = vld [vmem:[%s0 + $0x188] sm:$0xff]
  %v66 = vld [vmem:[%s0 + $0x190] sm:$0xff]
  %v67 = vld [vmem:[%s0 + $0x198] sm:$0xff]
  %v68 = vld [vmem:[%s0 + $0x1a0] sm:$0xff]
  %v69 = vld [vmem:[%s0 + $0x1a8] sm:$0xff]
  %v70 = vld [vmem:[%s0 + $0x1b0] sm:$0xff]
  %v71 = vld [vmem:[%s0 + $0x1b8] sm:$0xff]
  %v72 = vld [vmem:[%s0 + $0x1c0] sm:$0xff]
  %v73 = vld [vmem:[%s0 + $0x1c8] sm:$0xff]
  %v74 = vld [vmem:[%s0 + $0x1d0] sm:$0xff]
  %v75 = vld [vmem:[%s0 + $0x1d8] sm:$0xff]
  %v76 = vld [vmem:[%s0 + $0x1e0] sm:$0xff]
  %v77 = vld [vmem:[%s0 + $0x1e8] sm:$0xff]
  %v78 = vld [vmem:[%s0 + $0x1f0] sm:$0xff]
  %v79 = vld [vmem:[%s0 + $0x1f8] sm:$0xff]
  %v80 = vld [vmem:[%s1] sm:$0x1]
  %v81 = vadd.f32 %v16, %v17
  %v82 = vadd.f32 %v81, %v18
  %v83 = vadd.f32 %v82, %v19
  %v84 = vadd.f32 %v83, %v20
  %v85 = vadd.f32 %v84, %v21
  %v86 = vadd.f32 %v85, %v22
  %v87 = vadd.f32 %v86, %v23
  %v88 = vadd.f32 %v87, %v24
  %v89 = vadd.f32 %v88, %v25
  %v90 = vadd.f32 %v89, %v26
  %v91 = vadd.f32 %v90, %v27
  %v92 = vadd.f32 %v91, %v28
  %v93 = vadd.f32 %v92, %v29
  %v94 = vadd.f32 %v93, %v30
  %v95 = vadd.f32 %v94, %v31
  %v96 = vadd.f32 %v95, %v32
  %v97 = vadd.f32 %v96, %v33
  %v98 = vadd.f32 %v97, %v34
  %v99 = vadd.f32 %v98, %v35
  %v100 = vadd.f32 %v99, %v36
  %v101 = vadd.f32 %v100, %v37
  %v102 = vadd.f32 %v101, %v38
  %v103 = vadd.f32 %v102, %v39
  %v104 = vadd.f32 %v103, %v40
  %v105 = vadd.f32 %v104, %v41
  %v106 = vadd.f32 %v105, %v42
  %v107 = vadd.f32 %v106, %v43
  %v108 = vadd.f32 %v107, %v44
  %v109 = vadd.f32 %v108, %v45
  %v110 = vadd.f32 %v109, %v46
  %v111 = vadd.f32 %v110, %v47
  %v112 = vadd.f32 %v111, %v48
  %v113 = vadd.f32 %v112, %v49
  %v114 = vadd.f32 %v113, %v50
  %v115 = vadd.f32 %v114, %v51
  %v116 = vadd.f32 %v115, %v52
  %v117 = vadd.f32 %v116, %v53
  %v118 = vadd.f32 %v117, %v54
  %v119 = vadd.f32 %v118, %v55
  %v120 = vadd.f32 %v119, %v56
  %v121 = vadd.f32 %v120, %v57
  %v122 = vadd.f32 %v121, %v58
  %v123 = vadd.f32 %v122, %v59
  %v124 = vadd.f32 %v123, %v60
  %v125 = vadd.f32 %v124, %v61
  %v126 = vadd.f32 %v125, %v62
  %v127 = vadd.f32 %v126, %v63
  %v128 = vadd.f32 %v127, %v64
  %v129 = vadd.f32 %v128, %v65
  %v130 = vadd.f32 %v129, %v66
  %v131 = vadd.f32 %v130, %v67
  %v132 = vadd.f32 %v131, %v68
  %v133 = vadd.f32 %v132, %v69
  %v134 = vadd.f32 %v133, %v70
  %v135 = vadd.f32 %v134, %v71
  %v136 = vadd.f32 %v135, %v72
  %v137 = vadd.f32 %v136, %v73
  %v138 = vadd.f32 %v137, %v74
  %v139 = vadd.f32 %v138, %v75
  %v140 = vadd.f32 %v139, %v76
  %v141 = vadd.f32 %v140, %v77
  %v142 = vadd.f32 %v141, %v78
  %v143 = vadd.f32 %v142, %v79
  %v144 = vrot.slane %v143, 4
  %v145 = vadd.f32 %v143, %v144
  %v146 = vrot.slane %v145, 2
  %v147 = vadd.f32 %v145, %v146
  %v148 = vrot.slane %v147, 1
  %v149 = vadd.f32 %v147, %v148
  %v150 = vadd.f32 %v80, %v149
  %151 = vst [vmem:[%s1] sm:$0x1] %v150
  %v152 = vld [vmem:[%s2] sm:$0x1]
  %v153 = vmul.f32 %v16, %v16
  %v154 = vmul.f32 %v17, %v17
  %v155 = vmul.f32 %v18, %v18
  %v156 = vmul.f32 %v19, %v19
  %v157 = vmul.f32 %v20, %v20
  %v158 = vmul.f32 %v21, %v21
  %v159 = vmul.f32 %v22, %v22
  %v160 = vmul.f32 %v23, %v23
  %v161 = vmul.f32 %v24, %v24
  %v162 = vmul.f32 %v25, %v25
  %v163 = vmul.f32 %v26, %v26
  %v164 = vmul.f32 %v27, %v27
  %v165 = vmul.f32 %v28, %v28
  %v166 = vmul.f32 %v29, %v29
  %v167 = vmul.f32 %v30, %v30
  %v168 = vmul.f32 %v31, %v31
  %v169 = vmul.f32 %v32, %v32
  %v170 = vmul.f32 %v33, %v33
  %v171 = vmul.f32 %v34, %v34
  %v172 = vmul.f32 %v35, %v35
  %v173 = vmul.f32 %v36, %v36
  %v174 = vmul.f32 %v37, %v37
  %v175 = vmul.f32 %v38, %v38
  %v176 = vmul.f32 %v39, %v39
  %v177 = vmul.f32 %v40, %v40
  %v178 = vmul.f32 %v41, %v41
  %v179 = vmul.f32 %v42, %v42
  %v180 = vmul.f32 %v43, %v43
  %v181 = vmul.f32 %v44, %v44
  %v182 = vmul.f32 %v45, %v45
  %v183 = vmul.f32 %v46, %v46
  %v184 = vmul.f32 %v47, %v47
  %v185 = vmul.f32 %v48, %v48
  %v186 = vmul.f32 %v49, %v49
  %v187 = vmul.f32 %v50, %v50
  %v188 = vmul.f32 %v51, %v51
  %v189 = vmul.f32 %v52, %v52
  %v190 = vmul.f32 %v53, %v53
  %v191 = vmul.f32 %v54, %v54
  %v192 = vmul.f32 %v55, %v55
  %v193 = vmul.f32 %v56, %v56
  %v194 = vmul.f32 %v57, %v57
  %v195 = vmul.f32 %v58, %v58
  %v196 = vmul.f32 %v59, %v59
  %v197 = vmul.f32 %v60, %v60
  %v198 = vmul.f32 %v61, %v61
  %v199 = vmul.f32 %v62, %v62
  %v200 = vmul.f32 %v63, %v63
  %v201 = vmul.f32 %v64, %v64
  %v202 = vmul.f32 %v65, %v65
  %v203 = vmul.f32 %v66, %v66
  %v204 = vmul.f32 %v67, %v67
  %v205 = vmul.f32 %v68, %v68
  %v206 = vmul.f32 %v69, %v69
  %v207 = vmul.f32 %v70, %v70
  %v208 = vmul.f32 %v71, %v71
  %v209 = vmul.f32 %v72, %v72
  %v210 = vmul.f32 %v73, %v73
  %v211 = vmul.f32 %v74, %v74
  %v212 = vmul.f32 %v75, %v75
  %v213 = vmul.f32 %v76, %v76
  %v214 = vmul.f32 %v77, %v77
  %v215 = vmul.f32 %v78, %v78
  %v216 = vmul.f32 %v79, %v79
  %v217 = vadd.f32 %v153, %v154
  %v218 = vadd.f32 %v217, %v155
  %v219 = vadd.f32 %v218, %v156
  %v220 = vadd.f32 %v219, %v157
  %v221 = vadd.f32 %v220, %v158
  %v222 = vadd.f32 %v221, %v159
  %v223 = vadd.f32 %v222, %v160
  %v224 = vadd.f32 %v223, %v161
  %v225 = vadd.f32 %v224, %v162
  %v226 = vadd.f32 %v225, %v163
  %v227 = vadd.f32 %v226, %v164
  %v228 = vadd.f32 %v227, %v165
  %v229 = vadd.f32 %v228, %v166
  %v230 = vadd.f32 %v229, %v167
  %v231 = vadd.f32 %v230, %v168
  %v232 = vadd.f32 %v231, %v169
  %v233 = vadd.f32 %v232, %v170
  %v234 = vadd.f32 %v233, %v171
  %v235 = vadd.f32 %v234, %v172
  %v236 = vadd.f32 %v235, %v173
  %v237 = vadd.f32 %v236, %v174
  %v238 = vadd.f32 %v237, %v175
  %v239 = vadd.f32 %v238, %v176
  %v240 = vadd.f32 %v239, %v177
  %v241 = vadd.f32 %v240, %v178
  %v242 = vadd.f32 %v241, %v179
  %v243 = vadd.f32 %v242, %v180
  %v244 = vadd.f32 %v243, %v181
  %v245 = vadd.f32 %v244, %v182
  %v246 = vadd.f32 %v245, %v183
  %v247 = vadd.f32 %v246, %v184
  %v248 = vadd.f32 %v247, %v185
  %v249 = vadd.f32 %v248, %v186
  %v250 = vadd.f32 %v249, %v187
  %v251 = vadd.f32 %v250, %v188
  %v252 = vadd.f32 %v251, %v189
  %v253 = vadd.f32 %v252, %v190
  %v254 = vadd.f32 %v253, %v191
  %v255 = vadd.f32 %v254, %v192
  %v256 = vadd.f32 %v255, %v193
  %v257 = vadd.f32 %v256, %v194
  %v258 = vadd.f32 %v257, %v195
  %v259 = vadd.f32 %v258, %v196
  %v260 = vadd.f32 %v259, %v197
  %v261 = vadd.f32 %v260, %v198
  %v262 = vadd.f32 %v261, %v199
  %v263 = vadd.f32 %v262, %v200
  %v264 = vadd.f32 %v263, %v201
  %v265 = vadd.f32 %v264, %v202
  %v266 = vadd.f32 %v265, %v203
  %v267 = vadd.f32 %v266, %v204
  %v268 = vadd.f32 %v267, %v205
  %v269 = vadd.f32 %v268, %v206
  %v270 = vadd.f32 %v269, %v207
  %v271 = vadd.f32 %v270, %v208
  %v272 = vadd.f32 %v271, %v209
  %v273 = vadd.f32 %v272, %v210
  %v274 = vadd.f32 %v273, %v211
  %v275 = vadd.f32 %v274, %v212
  %v276 = vadd.f32 %v275, %v213
  %v277 = vadd.f32 %v276, %v214
  %v278 = vadd.f32 %v277, %v215
  %v279 = vadd.f32 %v278, %v216
  %v280 = vrot.slane %v279, 4
  %v281 = vadd.f32 %v279, %v280
  %v282 = vrot.slane %v281, 2
  %v283 = vadd.f32 %v281, %v282
  %v284 = vrot.slane %v283, 1
  %v285 = vadd.f32 %v283, %v284
  %v286 = vadd.f32 %v152, %v285
  %287 = vst [vmem:[%s2] sm:$0x1] %v286
  // Predicated region
  $region10: #{densenet_multi_att_forward.36} parent=0 // pred_check
    _
  $region11: #{densenet_multi_att_forward.36} parent=0 // pred_check_branch
    %289 = sbr.rel (0) target = $region13
  $region12: #{densenet_multi_att_forward.36} parent=0 // pred_region
    _
  $region13: #{densenet_multi_att_forward.36} parent=0 // pred_fallthru
    _
  // Predicated region
  $region14: #{densenet_multi_att_forward.36} parent=0 // pred_check
    _
  $region15: #{densenet_multi_att_forward.36} parent=0 // pred_check_branch
    %291 = sbr.rel (0) target = $region17
  $region16: #{densenet_multi_att_forward.36} parent=0 // pred_region
    _
  $region17: #{densenet_multi_att_forward.36} parent=0 // pred_fallthru
    _
  // Predicated region
  $region18: #{densenet_multi_att_forward.36} parent=0 // pred_check
    _
  $region19: #{densenet_multi_att_forward.36} parent=0 // pred_check_branch
    %293 = sbr.rel (0) target = $region21
  $region20: #{densenet_multi_att_forward.36} parent=0 // pred_region
    _
  $region21: #{densenet_multi_att_forward.36} parent=0 // pred_fallthru
    _
  // Predicated region
  $region22: #{densenet_multi_att_forward.36} parent=0 // pred_check
    _
  $region23: #{densenet_multi_att_forward.36} parent=0 // pred_check_branch
    %295 = sbr.rel (0) target = $region25
  $region24: #{densenet_multi_att_forward.36} parent=0 // pred_region
    _
  $region25: #{densenet_multi_att_forward.36} parent=0 // pred_fallthru
    _

// kernel: densenet_multi_att_forward.37
$region0: #{densenet_multi_att_forward.37}
  #allocation0 [shape = 'u32[]', space=smem, size = 0x4, offset = 0x4, fixed_abs, tag = 'smem constant byte address 0x4 - core index']
  #allocation1 [shape = 'u32[144,128]{1,0:T(1,128)}', space=vmem, size = 0x12000, scoped, tag = 'internal scratch']
  %s0 = inlined_call_operand.vmem [shape: f32[512,128], index: 0, kind: input, shape index: {}]
  %s1 = inlined_call_operand.vmem [shape: f32[1,128], index: 1, kind: input, shape index: {}]
  %s2 = inlined_call_operand.vmem [shape: f32[1,128], index: 2, kind: input, shape index: {}]
  %s3 = inlined_call_operand.vmem [shape: f32[512,128], index: 3, kind: output, shape index: {}]
  %s4 = sld [smem:[#allocation0]]
  $region22: #{densenet_multi_att_forward.37} parent=0
    _
  %s6 = ssub.s32 1, %s4
  %s7 = scalar_select 0, %s6, %s4
  // Predicated region
  $region2: #{densenet_multi_att_forward.37} parent=0 // pred_check
    _
  $region3: #{densenet_multi_att_forward.37} parent=0 // pred_check_branch
    %9 = sbr.rel (0) target = $region5
  $region4: #{densenet_multi_att_forward.37} parent=0 // pred_region
    _
  $region5: #{densenet_multi_att_forward.37} parent=0 // pred_fallthru
    _
  // Predicated region
  $region6: #{densenet_multi_att_forward.37} parent=0 // pred_check
    _
  $region7: #{densenet_multi_att_forward.37} parent=0 // pred_check_branch
    %11 = sbr.rel (0) target = $region9
  $region8: #{densenet_multi_att_forward.37} parent=0 // pred_region
    _
  $region9: #{densenet_multi_att_forward.37} parent=0 // pred_fallthru
    _
  // Predicated region
  $region10: #{densenet_multi_att_forward.37} parent=0 // pred_check
    _
  $region11: #{densenet_multi_att_forward.37} parent=0 // pred_check_branch
    %13 = sbr.rel (0) target = $region13
  $region12: #{densenet_multi_att_forward.37} parent=0 // pred_region
    _
  $region13: #{densenet_multi_att_forward.37} parent=0 // pred_fallthru
    _
  %v14 = vld [vmem:[%s0] sm:$0xff]
  %v15 = vld [vmem:[%s0 + $0x8] sm:$0xff]
  %v16 = vld [vmem:[%s0 + $0x10] sm:$0xff]
  %v17 = vld [vmem:[%s0 + $0x18] sm:$0xff]
  %v18 = vld [vmem:[%s0 + $0x20] sm:$0xff]
  %v19 = vld [vmem:[%s0 + $0x28] sm:$0xff]
  %v20 = vld [vmem:[%s0 + $0x30] sm:$0xff]
  %v21 = vld [vmem:[%s0 + $0x38] sm:$0xff]
  %v22 = vld [vmem:[%s0 + $0x40] sm:$0xff]
  %v23 = vld [vmem:[%s0 + $0x48] sm:$0xff]
  %v24 = vld [vmem:[%s0 + $0x50] sm:$0xff]
  %v25 = vld [vmem:[%s0 + $0x58] sm:$0xff]
  %v26 = vld [vmem:[%s0 + $0x60] sm:$0xff]
  %v27 = vld [vmem:[%s0 + $0x68] sm:$0xff]
  %v28 = vld [vmem:[%s0 + $0x70] sm:$0xff]
  %v29 = vld [vmem:[%s0 + $0x78] sm:$0xff]
  %v30 = vld [vmem:[%s0 + $0x80] sm:$0xff]
  %v31 = vld [vmem:[%s0 + $0x88] sm:$0xff]
  %v32 = vld [vmem:[%s0 + $0x90] sm:$0xff]
  %v33 = vld [vmem:[%s0 + $0x98] sm:$0xff]
  %v34 = vld [vmem:[%s0 + $0xa0] sm:$0xff]
  %v35 = vld [vmem:[%s0 + $0xa8] sm:$0xff]
  %v36 = vld [vmem:[%s0 + $0xb0] sm:$0xff]
  %v37 = vld [vmem:[%s0 + $0xb8] sm:$0xff]
  %v38 = vld [vmem:[%s0 + $0xc0] sm:$0xff]
  %v39 = vld [vmem:[%s0 + $0xc8] sm:$0xff]
  %v40 = vld [vmem:[%s0 + $0xd0] sm:$0xff]
  %v41 = vld [vmem:[%s0 + $0xd8] sm:$0xff]
  %v42 = vld [vmem:[%s0 + $0xe0] sm:$0xff]
  %v43 = vld [vmem:[%s0 + $0xe8] sm:$0xff]
  %v44 = vld [vmem:[%s0 + $0xf0] sm:$0xff]
  %v45 = vld [vmem:[%s0 + $0xf8] sm:$0xff]
  %v46 = vld [vmem:[%s0 + $0x100] sm:$0xff]
  %v47 = vld [vmem:[%s0 + $0x108] sm:$0xff]
  %v48 = vld [vmem:[%s0 + $0x110] sm:$0xff]
  %v49 = vld [vmem:[%s0 + $0x118] sm:$0xff]
  %v50 = vld [vmem:[%s0 + $0x120] sm:$0xff]
  %v51 = vld [vmem:[%s0 + $0x128] sm:$0xff]
  %v52 = vld [vmem:[%s0 + $0x130] sm:$0xff]
  %v53 = vld [vmem:[%s0 + $0x138] sm:$0xff]
  %v54 = vld [vmem:[%s0 + $0x140] sm:$0xff]
  %v55 = vld [vmem:[%s0 + $0x148] sm:$0xff]
  %v56 = vld [vmem:[%s0 + $0x150] sm:$0xff]
  %v57 = vld [vmem:[%s0 + $0x158] sm:$0xff]
  %v58 = vld [vmem:[%s0 + $0x160] sm:$0xff]
  %v59 = vld [vmem:[%s0 + $0x168] sm:$0xff]
  %v60 = vld [vmem:[%s0 + $0x170] sm:$0xff]
  %v61 = vld [vmem:[%s0 + $0x178] sm:$0xff]
  %v62 = vld [vmem:[%s0 + $0x180] sm:$0xff]
  %v63 = vld [vmem:[%s0 + $0x188] sm:$0xff]
  %v64 = vld [vmem:[%s0 + $0x190] sm:$0xff]
  %v65 = vld [vmem:[%s0 + $0x198] sm:$0xff]
  %v66 = vld [vmem:[%s0 + $0x1a0] sm:$0xff]
  %v67 = vld [vmem:[%s0 + $0x1a8] sm:$0xff]
  %v68 = vld [vmem:[%s0 + $0x1b0] sm:$0xff]
  %v69 = vld [vmem:[%s0 + $0x1b8] sm:$0xff]
  %v70 = vld [vmem:[%s0 + $0x1c0] sm:$0xff]
  %v71 = vld [vmem:[%s0 + $0x1c8] sm:$0xff]
  %v72 = vld [vmem:[%s0 + $0x1d0] sm:$0xff]
  %v73 = vld [vmem:[%s0 + $0x1d8] sm:$0xff]
  %v74 = vld [vmem:[%s0 + $0x1e0] sm:$0xff]
  %v75 = vld [vmem:[%s0 + $0x1e8] sm:$0xff]
  %v76 = vld [vmem:[%s0 + $0x1f0] sm:$0xff]
  %v77 = vld [vmem:[%s0 + $0x1f8] sm:$0xff]
  %v78 = vld [vmem:[%s1] sm:$0x1]
  %v80 = vlaneseq
  %v81 = vshrl.u32 %v80, 7
  %v82 = vsub.s32 0, %v81
  %v83 = vrot.slane %v78, %v82
  %v85 = vmul.f32 %v14, %v83
  %v86 = vmul.f32 %v15, %v83
  %v87 = vmul.f32 %v16, %v83
  %v88 = vmul.f32 %v17, %v83
  %v89 = vmul.f32 %v18, %v83
  %v90 = vmul.f32 %v19, %v83
  %v91 = vmul.f32 %v20, %v83
  %v92 = vmul.f32 %v21, %v83
  %v93 = vmul.f32 %v22, %v83
  %v94 = vmul.f32 %v23, %v83
  %v95 = vmul.f32 %v24, %v83
  %v96 = vmul.f32 %v25, %v83
  %v97 = vmul.f32 %v26, %v83
  %v98 = vmul.f32 %v27, %v83
  %v99 = vmul.f32 %v28, %v83
  %v100 = vmul.f32 %v29, %v83
  %v101 = vmul.f32 %v30, %v83
  %v102 = vmul.f32 %v31, %v83
  %v103 = vmul.f32 %v32, %v83
  %v104 = vmul.f32 %v33, %v83
  %v105 = vmul.f32 %v34, %v83
  %v106 = vmul.f32 %v35, %v83
  %v107 = vmul.f32 %v36, %v83
  %v108 = vmul.f32 %v37, %v83
  %v109 = vmul.f32 %v38, %v83
  %v110 = vmul.f32 %v39, %v83
  %v111 = vmul.f32 %v40, %v83
  %v112 = vmul.f32 %v41, %v83
  %v113 = vmul.f32 %v42, %v83
  %v114 = vmul.f32 %v43, %v83
  %v115 = vmul.f32 %v44, %v83
  %v116 = vmul.f32 %v45, %v83
  %v117 = vmul.f32 %v46, %v83
  %v118 = vmul.f32 %v47, %v83
  %v119 = vmul.f32 %v48, %v83
  %v120 = vmul.f32 %v49, %v83
  %v121 = vmul.f32 %v50, %v83
  %v122 = vmul.f32 %v51, %v83
  %v123 = vmul.f32 %v52, %v83
  %v124 = vmul.f32 %v53, %v83
  %v125 = vmul.f32 %v54, %v83
  %v126 = vmul.f32 %v55, %v83
  %v127 = vmul.f32 %v56, %v83
  %v128 = vmul.f32 %v57, %v83
  %v129 = vmul.f32 %v58, %v83
  %v130 = vmul.f32 %v59, %v83
  %v131 = vmul.f32 %v60, %v83
  %v132 = vmul.f32 %v61, %v83
  %v133 = vmul.f32 %v62, %v83
  %v134 = vmul.f32 %v63, %v83
  %v135 = vmul.f32 %v64, %v83
  %v136 = vmul.f32 %v65, %v83
  %v137 = vmul.f32 %v66, %v83
  %v138 = vmul.f32 %v67, %v83
  %v139 = vmul.f32 %v68, %v83
  %v140 = vmul.f32 %v69, %v83
  %v141 = vmul.f32 %v70, %v83
  %v142 = vmul.f32 %v71, %v83
  %v143 = vmul.f32 %v72, %v83
  %v144 = vmul.f32 %v73, %v83
  %v145 = vmul.f32 %v74, %v83
  %v146 = vmul.f32 %v75, %v83
  %v147 = vmul.f32 %v76, %v83
  %v148 = vmul.f32 %v77, %v83
  %v149 = vld [vmem:[%s2] sm:$0x1]
  %v151 = vlaneseq
  %v152 = vshrl.u32 %v151, 7
  %v153 = vsub.s32 0, %v152
  %v154 = vrot.slane %v149, %v153
  %v156 = vadd.f32 %v85, %v154
  %v157 = vadd.f32 %v86, %v154
  %v158 = vadd.f32 %v87, %v154
  %v159 = vadd.f32 %v88, %v154
  %v160 = vadd.f32 %v89, %v154
  %v161 = vadd.f32 %v90, %v154
  %v162 = vadd.f32 %v91, %v154
  %v163 = vadd.f32 %v92, %v154
  %v164 = vadd.f32 %v93, %v154
  %v165 = vadd.f32 %v94, %v154
  %v166 = vadd.f32 %v95, %v154
  %v167 = vadd.f32 %v96, %v154
  %v168 = vadd.f32 %v97, %v154
  %v169 = vadd.f32 %v98, %v154
  %v170 = vadd.f32 %v99, %v154
  %v171 = vadd.f32 %v100, %v154
  %v172 = vadd.f32 %v101, %v154
  %v173 = vadd.f32 %v102, %v154
  %v174 = vadd.f32 %v103, %v154
  %v175 = vadd.f32 %v104, %v154
  %v176 = vadd.f32 %v105, %v154
  %v177 = vadd.f32 %v106, %v154
  %v178 = vadd.f32 %v107, %v154
  %v179 = vadd.f32 %v108, %v154
  %v180 = vadd.f32 %v109, %v154
  %v181 = vadd.f32 %v110, %v154
  %v182 = vadd.f32 %v111, %v154
  %v183 = vadd.f32 %v112, %v154
  %v184 = vadd.f32 %v113, %v154
  %v185 = vadd.f32 %v114, %v154
  %v186 = vadd.f32 %v115, %v154
  %v187 = vadd.f32 %v116, %v154
  %v188 = vadd.f32 %v117, %v154
  %v189 = vadd.f32 %v118, %v154
  %v190 = vadd.f32 %v119, %v154
  %v191 = vadd.f32 %v120, %v154
  %v192 = vadd.f32 %v121, %v154
  %v193 = vadd.f32 %v122, %v154
  %v194 = vadd.f32 %v123, %v154
  %v195 = vadd.f32 %v124, %v154
  %v196 = vadd.f32 %v125, %v154
  %v197 = vadd.f32 %v126, %v154
  %v198 = vadd.f32 %v127, %v154
  %v199 = vadd.f32 %v128, %v154
  %v200 = vadd.f32 %v129, %v154
  %v201 = vadd.f32 %v130, %v154
  %v202 = vadd.f32 %v131, %v154
  %v203 = vadd.f32 %v132, %v154
  %v204 = vadd.f32 %v133, %v154
  %v205 = vadd.f32 %v134, %v154
  %v206 = vadd.f32 %v135, %v154
  %v207 = vadd.f32 %v136, %v154
  %v208 = vadd.f32 %v137, %v154
  %v209 = vadd.f32 %v138, %v154
  %v210 = vadd.f32 %v139, %v154
  %v211 = vadd.f32 %v140, %v154
  %v212 = vadd.f32 %v141, %v154
  %v213 = vadd.f32 %v142, %v154
  %v214 = vadd.f32 %v143, %v154
  %v215 = vadd.f32 %v144, %v154
  %v216 = vadd.f32 %v145, %v154
  %v217 = vadd.f32 %v146, %v154
  %v218 = vadd.f32 %v147, %v154
  %v219 = vadd.f32 %v148, %v154
  %v220 = vmax.f32 %v156, 0.0
  %v221 = vmax.f32 %v157, 0.0
  %v222 = vmax.f32 %v158, 0.0
  %v223 = vmax.f32 %v159, 0.0
  %v224 = vmax.f32 %v160, 0.0
  %v225 = vmax.f32 %v161, 0.0
  %v226 = vmax.f32 %v162, 0.0
  %v227 = vmax.f32 %v163, 0.0
  %v228 = vmax.f32 %v164, 0.0
  %v229 = vmax.f32 %v165, 0.0
  %v230 = vmax.f32 %v166, 0.0
  %v231 = vmax.f32 %v167, 0.0
  %v232 = vmax.f32 %v168, 0.0
  %v233 = vmax.f32 %v169, 0.0
  %v234 = vmax.f32 %v170, 0.0
  %v235 = vmax.f32 %v171, 0.0
  %v236 = vmax.f32 %v172, 0.0
  %v237 = vmax.f32 %v173, 0.0
  %v238 = vmax.f32 %v174, 0.0
  %v239 = vmax.f32 %v175, 0.0
  %v240 = vmax.f32 %v176, 0.0
  %v241 = vmax.f32 %v177, 0.0
  %v242 = vmax.f32 %v178, 0.0
  %v243 = vmax.f32 %v179, 0.0
  %v244 = vmax.f32 %v180, 0.0
  %v245 = vmax.f32 %v181, 0.0
  %v246 = vmax.f32 %v182, 0.0
  %v247 = vmax.f32 %v183, 0.0
  %v248 = vmax.f32 %v184, 0.0
  %v249 = vmax.f32 %v185, 0.0
  %v250 = vmax.f32 %v186, 0.0
  %v251 = vmax.f32 %v187, 0.0
  %v252 = vmax.f32 %v188, 0.0
  %v253 = vmax.f32 %v189, 0.0
  %v254 = vmax.f32 %v190, 0.0
  %v255 = vmax.f32 %v191, 0.0
  %v256 = vmax.f32 %v192, 0.0
  %v257 = vmax.f32 %v193, 0.0
  %v258 = vmax.f32 %v194, 0.0
  %v259 = vmax.f32 %v195, 0.0
  %v260 = vmax.f32 %v196, 0.0
  %v261 = vmax.f32 %v197, 0.0
  %v262 = vmax.f32 %v198, 0.0
  %v263 = vmax.f32 %v199, 0.0
  %v264 = vmax.f32 %v200, 0.0
  %v265 = vmax.f32 %v201, 0.0
  %v266 = vmax.f32 %v202, 0.0
  %v267 = vmax.f32 %v203, 0.0
  %v268 = vmax.f32 %v204, 0.0
  %v269 = vmax.f32 %v205, 0.0
  %v270 = vmax.f32 %v206, 0.0
  %v271 = vmax.f32 %v207, 0.0
  %v272 = vmax.f32 %v208, 0.0
  %v273 = vmax.f32 %v209, 0.0
  %v274 = vmax.f32 %v210, 0.0
  %v275 = vmax.f32 %v211, 0.0
  %v276 = vmax.f32 %v212, 0.0
  %v277 = vmax.f32 %v213, 0.0
  %v278 = vmax.f32 %v214, 0.0
  %v279 = vmax.f32 %v215, 0.0
  %v280 = vmax.f32 %v216, 0.0
  %v281 = vmax.f32 %v217, 0.0
  %v282 = vmax.f32 %v218, 0.0
  %v283 = vmax.f32 %v219, 0.0
  %284 = vst [vmem:[%s3] sm:$0xff] %v220
  %285 = vst [vmem:[%s3 + $0x8] sm:$0xff] %v221
  %286 = vst [vmem:[%s3 + $0x10] sm:$0xff] %v222
  %287 = vst [vmem:[%s3 + $0x18] sm:$0xff] %v223
  %288 = vst [vmem:[%s3 + $0x20] sm:$0xff] %v224
  %289 = vst [vmem:[%s3 + $0x28] sm:$0xff] %v225
  %290 = vst [vmem:[%s3 + $0x30] sm:$0xff] %v226
  %291 = vst [vmem:[%s3 + $0x38] sm:$0xff] %v227
  %292 = vst [vmem:[%s3 + $0x40] sm:$0xff] %v228
  %293 = vst [vmem:[%s3 + $0x48] sm:$0xff] %v229
  %294 = vst [vmem:[%s3 + $0x50] sm:$0xff] %v230
  %295 = vst [vmem:[%s3 + $0x58] sm:$0xff] %v231
  %296 = vst [vmem:[%s3 + $0x60] sm:$0xff] %v232
  %297 = vst [vmem:[%s3 + $0x68] sm:$0xff] %v233
  %298 = vst [vmem:[%s3 + $0x70] sm:$0xff] %v234
  %299 = vst [vmem:[%s3 + $0x78] sm:$0xff] %v235
  %300 = vst [vmem:[%s3 + $0x80] sm:$0xff] %v236
  %301 = vst [vmem:[%s3 + $0x88] sm:$0xff] %v237
  %302 = vst [vmem:[%s3 + $0x90] sm:$0xff] %v238
  %303 = vst [vmem:[%s3 + $0x98] sm:$0xff] %v239
  %304 = vst [vmem:[%s3 + $0xa0] sm:$0xff] %v240
  %305 = vst [vmem:[%s3 + $0xa8] sm:$0xff] %v241
  %306 = vst [vmem:[%s3 + $0xb0] sm:$0xff] %v242
  %307 = vst [vmem:[%s3 + $0xb8] sm:$0xff] %v243
  %308 = vst [vmem:[%s3 + $0xc0] sm:$0xff] %v244
  %309 = vst [vmem:[%s3 + $0xc8] sm:$0xff] %v245
  %310 = vst [vmem:[%s3 + $0xd0] sm:$0xff] %v246
  %311 = vst [vmem:[%s3 + $0xd8] sm:$0xff] %v247
  %312 = vst [vmem:[%s3 + $0xe0] sm:$0xff] %v248
  %313 = vst [vmem:[%s3 + $0xe8] sm:$0xff] %v249
  %314 = vst [vmem:[%s3 + $0xf0] sm:$0xff] %v250
  %315 = vst [vmem:[%s3 + $0xf8] sm:$0xff] %v251
  %316 = vst [vmem:[%s3 + $0x100] sm:$0xff] %v252
  %317 = vst [vmem:[%s3 + $0x108] sm:$0xff] %v253
  %318 = vst [vmem:[%s3 + $0x110] sm:$0xff] %v254
  %319 = vst [vmem:[%s3 + $0x118] sm:$0xff] %v255
  %320 = vst [vmem:[%s3 + $0x120] sm:$0xff] %v256
  %321 = vst [vmem:[%s3 + $0x128] sm:$0xff] %v257
  %322 = vst [vmem:[%s3 + $0x130] sm:$0xff] %v258
  %323 = vst [vmem:[%s3 + $0x138] sm:$0xff] %v259
  %324 = vst [vmem:[%s3 + $0x140] sm:$0xff] %v260
  %325 = vst [vmem:[%s3 + $0x148] sm:$0xff] %v261
  %326 = vst [vmem:[%s3 + $0x150] sm:$0xff] %v262
  %327 = vst [vmem:[%s3 + $0x158] sm:$0xff] %v263
  %328 = vst [vmem:[%s3 + $0x160] sm:$0xff] %v264
  %329 = vst [vmem:[%s3 + $0x168] sm:$0xff] %v265
  %330 = vst [vmem:[%s3 + $0x170] sm:$0xff] %v266
  %331 = vst [vmem:[%s3 + $0x178] sm:$0xff] %v267
  %332 = vst [vmem:[%s3 + $0x180] sm:$0xff] %v268
  %333 = vst [vmem:[%s3 + $0x188] sm:$0xff] %v269
  %334 = vst [vmem:[%s3 + $0x190] sm:$0xff] %v270
  %335 = vst [vmem:[%s3 + $0x198] sm:$0xff] %v271
  %336 = vst [vmem:[%s3 + $0x1a0] sm:$0xff] %v272
  %337 = vst [vmem:[%s3 + $0x1a8] sm:$0xff] %v273
  %338 = vst [vmem:[%s3 + $0x1b0] sm:$0xff] %v274
  %339 = vst [vmem:[%s3 + $0x1b8] sm:$0xff] %v275
  %340 = vst [vmem:[%s3 + $0x1c0] sm:$0xff] %v276
  %341 = vst [vmem:[%s3 + $0x1c8] sm:$0xff] %v277
  %342 = vst [vmem:[%s3 + $0x1d0] sm:$0xff] %v278
  %343 = vst [vmem:[%s3 + $0x1d8] sm:$0xff] %v279
  %344 = vst [vmem:[%s3 + $0x1e0] sm:$0xff] %v280
  %345 = vst [vmem:[%s3 + $0x1e8] sm:$0xff] %v281
  %346 = vst [vmem:[%s3 + $0x1f0] sm:$0xff] %v282
  %347 = vst [vmem:[%s3 + $0x1f8] sm:$0xff] %v283
  // Predicated region
  $region14: #{densenet_multi_att_forward.37} parent=0 // pred_check
    _
  $region15: #{densenet_multi_att_forward.37} parent=0 // pred_check_branch
    %349 = sbr.rel (0) target = $region17
  $region16: #{densenet_multi_att_forward.37} parent=0 // pred_region
    _
  $region17: #{densenet_multi_att_forward.37} parent=0 // pred_fallthru
    _
  // Predicated region
  $region18: #{densenet_multi_att_forward.37} parent=0 // pred_check
    _
  $region19: #{densenet_multi_att_forward.37} parent=0 // pred_check_branch
    %351 = sbr.rel (0) target = $region21
  $region20: #{densenet_multi_att_forward.37} parent=0 // pred_region
    _
  $region21: #{densenet_multi_att_forward.37} parent=0 // pred_fallthru
    _

// kernel: densenet_multi_att_forward.35
$region0: #{densenet_multi_att_forward.35}
  #allocation0 [shape = 'u32[]', space=smem, size = 0x4, offset = 0x4, fixed_abs, tag = 'smem constant byte address 0x4 - core index']
  #allocation1 [shape = 'u32[144,128]{1,0:T(1,128)}', space=vmem, size = 0x12000, scoped, tag = 'internal scratch']
  #allocation2 [shape = 'f32[256,128]{1,0:T(8,128)}', space=vmem, size = 0x20000, scoped, tag = 'scratch operand']
  %s0 = inlined_call_operand.vmem [shape: bf16[512,256], index: 0, kind: input, shape index: {}]
  %s1 = inlined_call_operand.vmem [shape: bf16[256,128], index: 1, kind: input, shape index: {}]
  %s2 = inlined_call_operand.vmem [shape: f32[1,128], index: 2, kind: input, shape index: {}]
  %s3 = inlined_call_operand.vmem [shape: f32[512,128], index: 3, kind: output, shape index: {}]
  %s4 = sld [smem:[#allocation0]]
  $region53: #{densenet_multi_att_forward.35} parent=0
    _
  %s6 = ssub.s32 1, %s4
  %s7 = scalar_select 0, %s6, %s4
  loop: start=0, step=1, limit=4
  $region2: #{densenet_multi_att_forward.35} parent=0 // loop_pre_header
    _
  $region3: #{densenet_multi_att_forward.35} parent=0 // loop_header
    %s9 = sphi 0, %s13
    %p10 = scmp.ge.s32.totalorder %s9, 4
    %s16 = sphi 0, %s35
    %s17 = sphi 0, %s31
    %s18 = sphi 0, %s27
    %s19 = sphi 0, %s16
    %s20 = sphi 0, %s17
    %s21 = sphi 0, %s18
    %s22 = sphi 0, %s19
    %s23 = sphi 0, %s20
    %s24 = sphi 0, %s21
    %s40 = sphi 0, %s42
    %s43 = sphi 0, %s40
    %s44 = sphi 0, %s43
    %s60 = sphi 0, %s44
    %s68 = sphi 0, %s70
    %s71 = sphi 0, %s68
    %s72 = sphi 0, %s71
    %s88 = sphi 0, %s72
    %s94 = sphi 0, %s96
    %s97 = sphi 0, %s94
    %s98 = sphi 0, %s97
    %s114 = sphi 0, %s98
    %s122 = sphi 0, %s124
    %s125 = sphi 0, %s122
    %s126 = sphi 0, %s125
    %s142 = sphi 0, %s126
  $region4: #{densenet_multi_att_forward.35} parent=0 // loop_header_branch
    %12 = sbr.rel (%p10) target = $region8
  $region5: #{densenet_multi_att_forward.35} parent=0 // loop_body
    %s14 = ssub.s32 %s9, 1
    %s15 = ssub.s32 %s9, 2
    %s25 = sadd.s32 1, %s18
    %p26 = scmp.ge.s32.totalorder %s25, 1
    %s27 = scalar_select %p26, 0, %s25
    %s28 = sadd.s32 1, %s17
    %s29 = scalar_select %p26, %s28, %s17
    %p30 = scmp.ge.s32.totalorder %s29, 1
    %s31 = scalar_select %p30, 0, %s29
    %s32 = sadd.s32 1, %s16
    %s33 = scalar_select %p30, %s32, %s16
    %p34 = scmp.ge.s32.totalorder %s33, 2
    %s35 = scalar_select %p34, 0, %s33
    %s36 = ssub.s32 %s16, %s35
    %s37 = ssub.s32 %s18, %s27
    %s38 = sor.u32 %s36, %s37
    %p39 = scmp.eq.s32.totalorder %s38, 0
    %s41 = sadd.s32 %s40, 1
    %s42 = scalar_select %p39, %s40, %s41
    %p45 = pneg %p39
    %p46 = scmp.eq.s32.totalorder %s9, 1
    %p47 = por %p45, %p46
    %p48 = scmp.ne.s32.totalorder %s40, %s43
    %p49 = scmp.eq.s32.totalorder %s9, 0
    %p50 = por %p48, %p49
    %p51 = scmp.ne.s32.totalorder %s40, %s43
    %p52 = scmp.eq.s32.totalorder %s14, 1
    %p53 = por %p51, %p52
    %p54 = scmp.ne.s32.totalorder %s43, %s44
    %p55 = scmp.eq.s32.totalorder %s14, 0
    %p56 = por %p54, %p55
    %p57 = scmp.ne.s32.totalorder %s43, %s44
    %p58 = scmp.eq.s32.totalorder %s15, 1
    %p59 = por %p57, %p58
    %p61 = scmp.ne.s32.totalorder %s44, %s60
    %p62 = scmp.eq.s32.totalorder %s15, 0
    %p63 = por %p61, %p62
    %s64 = ssub.s32 %s18, %s27
    %s65 = ssub.s32 %s17, %s31
    %s66 = sor.u32 %s64, %s65
    %p67 = scmp.eq.s32.totalorder %s66, 0
    %s69 = sadd.s32 %s68, 1
    %s70 = scalar_select %p67, %s68, %s69
    %p73 = pneg %p67
    %p74 = scmp.eq.s32.totalorder %s9, 1
    %p75 = por %p73, %p74
    %p76 = scmp.ne.s32.totalorder %s68, %s71
    %p77 = scmp.eq.s32.totalorder %s9, 0
    %p78 = por %p76, %p77
    %p79 = scmp.ne.s32.totalorder %s68, %s71
    %p80 = scmp.eq.s32.totalorder %s14, 1
    %p81 = por %p79, %p80
    %p82 = scmp.ne.s32.totalorder %s71, %s72
    %p83 = scmp.eq.s32.totalorder %s14, 0
    %p84 = por %p82, %p83
    %p85 = scmp.ne.s32.totalorder %s71, %s72
    %p86 = scmp.eq.s32.totalorder %s15, 1
    %p87 = por %p85, %p86
    %p89 = scmp.ne.s32.totalorder %s72, %s88
    %p90 = scmp.eq.s32.totalorder %s15, 0
    %p91 = por %p89, %p90
    %s92 = ssub.s32 %s17, %s31
    %p93 = scmp.eq.s32.totalorder %s92, 0
    %s95 = sadd.s32 %s94, 1
    %s96 = scalar_select %p93, %s94, %s95
    %p99 = pneg %p93
    %p100 = scmp.eq.s32.totalorder %s9, 1
    %p101 = por %p99, %p100
    %p102 = scmp.ne.s32.totalorder %s94, %s97
    %p103 = scmp.eq.s32.totalorder %s9, 0
    %p104 = por %p102, %p103
    %p105 = scmp.ne.s32.totalorder %s94, %s97
    %p106 = scmp.eq.s32.totalorder %s14, 1
    %p107 = por %p105, %p106
    %p108 = scmp.ne.s32.totalorder %s97, %s98
    %p109 = scmp.eq.s32.totalorder %s14, 0
    %p110 = por %p108, %p109
    %p111 = scmp.ne.s32.totalorder %s97, %s98
    %p112 = scmp.eq.s32.totalorder %s15, 1
    %p113 = por %p111, %p112
    %p115 = scmp.ne.s32.totalorder %s98, %s114
    %p116 = scmp.eq.s32.totalorder %s15, 0
    %p117 = por %p115, %p116
    %s118 = ssub.s32 %s16, %s35
    %s119 = ssub.s32 %s17, %s31
    %s120 = sor.u32 %s118, %s119
    %p121 = scmp.eq.s32.totalorder %s120, 0
    %s123 = sadd.s32 %s122, 1
    %s124 = scalar_select %p121, %s122, %s123
    %p127 = pneg %p121
    %p128 = scmp.eq.s32.totalorder %s9, 1
    %p129 = por %p127, %p128
    %p130 = scmp.ne.s32.totalorder %s122, %s125
    %p131 = scmp.eq.s32.totalorder %s9, 0
    %p132 = por %p130, %p131
    %p133 = scmp.ne.s32.totalorder %s122, %s125
    %p134 = scmp.eq.s32.totalorder %s14, 1
    %p135 = por %p133, %p134
    %p136 = scmp.ne.s32.totalorder %s125, %s126
    %p137 = scmp.eq.s32.totalorder %s14, 0
    %p138 = por %p136, %p137
    %p139 = scmp.ne.s32.totalorder %s125, %s126
    %p140 = scmp.eq.s32.totalorder %s15, 1
    %p141 = por %p139, %p140
    %p143 = scmp.ne.s32.totalorder %s126, %s142
    %p144 = scmp.eq.s32.totalorder %s15, 0
    %p145 = por %p143, %p144
    %p146 = scmp.le.s32.totalorder 1, %s9
    %p147 = scmp.lt.s32.totalorder %s9, 3
    %p148 = pnand %p146, %p147
    %p149 = pneg %p148
    // Predicated region
    $region9: #{densenet_multi_att_forward.35} parent=5 // pred_check
      _
    $region10: #{densenet_multi_att_forward.35} parent=5 // pred_check_branch
      %151 = sbr.rel (%p148) target = $region12
    $region11: #{densenet_multi_att_forward.35} parent=5 // pred_region
      %s152 = ssub.s32 %s9, 1
      // Predicated region
      $region13: #{densenet_multi_att_forward.35} parent=11 // pred_check
        %p153 = pneg %p84
      $region14: #{densenet_multi_att_forward.35} parent=11 // pred_check_branch
        %155 = sbr.rel (%p153) target = $region16
      $region15: #{densenet_multi_att_forward.35} parent=11 // pred_region
        %s156 = smul.u32 32, %s21
        %p157 = scmp.lt.s32.totalorder %s156, 31
        %s158 = scalar_select %p157, %s156, 31
        %p159 = scmp.lt.s32.totalorder %s20, 0
        %s160 = scalar_select %p159, %s20, 0
        %s161 = sadd.s32 %s160, %s158
        %s162 = smul.addr %s161, 4
        %s163 = scalar_lea.vmem %s1, %s162
        %s164 = smul.u32 32, %s21
      $region16: #{densenet_multi_att_forward.35} parent=11 // pred_fallthru
        _
      // Predicated region
      $region17: #{densenet_multi_att_forward.35} parent=11 // pred_check
        %p165 = pneg %p110
      $region18: #{densenet_multi_att_forward.35} parent=11 // pred_check_branch
        %167 = sbr.rel (%p165) target = $region20
      $region19: #{densenet_multi_att_forward.35} parent=11 // pred_region
        %p168 = scmp.lt.s32.totalorder %s20, 0
        %s169 = scalar_select %p168, %s20, 0
        %s170 = scalar_lea.vmem %s2, %s169
      $region20: #{densenet_multi_att_forward.35} parent=11 // pred_fallthru
        _
    $region12: #{densenet_multi_att_forward.35} parent=5 // pred_fallthru
      _
    %p171 = scmp.lt.s32.totalorder %s9, 2
    // Predicated region
    $region21: #{densenet_multi_att_forward.35} parent=5 // pred_check
      %p172 = pneg %p171
    $region22: #{densenet_multi_att_forward.35} parent=5 // pred_check_branch
      %174 = sbr.rel (%p172) target = $region24
    $region23: #{densenet_multi_att_forward.35} parent=5 // pred_region
      // Predicated region
      $region25: #{densenet_multi_att_forward.35} parent=23 // pred_check
        %p175 = pneg %p50
      $region26: #{densenet_multi_att_forward.35} parent=23 // pred_check_branch
        %177 = sbr.rel (%p175) target = $region28
      $region27: #{densenet_multi_att_forward.35} parent=23 // pred_region
        %s178 = smul.u32 32, %s16
        %s179 = smul.u32 2, %s18
        %p180 = scmp.lt.s32.totalorder %s178, 63
        %s181 = scalar_select %p180, %s178, 63
        %p182 = scmp.lt.s32.totalorder %s179, 1
        %s183 = scalar_select %p182, %s179, 1
        %s184 = smul.addr %s181, 2
        %s185 = sadd.s32 %s183, %s184
        %s186 = smul.addr %s185, 4
        %s187 = scalar_lea.vmem %s0, %s186
        %s188 = smul.u32 32, %s16
        %s189 = smul.u32 2, %s18
      $region28: #{densenet_multi_att_forward.35} parent=23 // pred_fallthru
        _
    $region24: #{densenet_multi_att_forward.35} parent=5 // pred_fallthru
      _
    %p190 = scmp.le.s32.totalorder 1, %s9
    %p191 = scmp.lt.s32.totalorder %s9, 3
    %p192 = pnand %p190, %p191
    %p193 = pneg %p192
    // Predicated region
    $region29: #{densenet_multi_att_forward.35} parent=5 // pred_check
      _
    $region30: #{densenet_multi_att_forward.35} parent=5 // pred_check_branch
      %195 = sbr.rel (%p192) target = $region32
    $region31: #{densenet_multi_att_forward.35} parent=5 // pred_region
      %s196 = ssub.s32 %s9, 1
      %s197 = smul.u32 32, %s19
      %s198 = smul.u32 2, %s21
      %p199 = scmp.lt.s32.totalorder %s197, 63
      %s200 = scalar_select %p199, %s197, 63
      %p201 = scmp.lt.s32.totalorder %s198, 1
      %s202 = scalar_select %p201, %s198, 1
      %s203 = smul.addr %s200, 2
      %s204 = sadd.s32 %s202, %s203
      %s205 = smul.addr %s204, 4
      %s206 = scalar_lea.vmem %s0, %s205
      %p207 = pneg %p56
      %p208 = pneg %p53
      %s209 = smul.u32 32, %s21
      %p210 = scmp.lt.s32.totalorder %s209, 31
      %s211 = scalar_select %p210, %s209, 31
      %p212 = scmp.lt.s32.totalorder %s20, 0
      %s213 = scalar_select %p212, %s20, 0
      %s214 = sadd.s32 %s213, %s211
      %s215 = smul.addr %s214, 4
      %s216 = scalar_lea.vmem %s1, %s215
      %p217 = pneg %p84
      %p218 = pneg %p81
      %p219 = scmp.lt.s32.totalorder %s20, 0
      %s220 = scalar_select %p219, %s20, 0
      %s221 = scalar_lea.vmem %s2, %s220
      %p222 = pneg %p110
      %p223 = pneg %p107
      %p224 = pneg %p138
      %p225 = pneg %p135
      %s226 = smul.u32 32, %s19
      %p227 = scmp.lt.s32.totalorder %s226, 63
      %s228 = scalar_select %p227, %s226, 63
      %p229 = scmp.lt.s32.totalorder %s20, 0
      %s230 = scalar_select %p229, %s20, 0
      %s231 = sadd.s32 %s230, %s228
      %s232 = smul.addr %s231, 8
      %s233 = scalar_lea.vmem %s3, %s232
      %s234 = smul.u32 32, %s19
      %s235 = smul.u32 2, %s21
      %p236 = scmp.lt.s32.totalorder %s234, 63
      %s237 = scalar_select %p236, %s234, 63
      %p238 = scmp.lt.s32.totalorder %s235, 1
      %s239 = scalar_select %p238, %s235, 1
      %s240 = smul.addr %s237, 2
      %s241 = sadd.s32 %s239, %s240
      %s242 = smul.addr %s241, 4
      %s243 = scalar_lea.vmem %s0, %s242
      %s244 = smul.u32 32, %s19
      %s245 = smul.u32 2, %s21
      %s246 = smul.u32 32, %s21
      %p247 = scmp.lt.s32.totalorder %s246, 31
      %s248 = scalar_select %p247, %s246, 31
      %p249 = scmp.lt.s32.totalorder %s20, 0
      %s250 = scalar_select %p249, %s20, 0
      %s251 = sadd.s32 %s250, %s248
      %s252 = smul.addr %s251, 4
      %s253 = scalar_lea.vmem %s1, %s252
      %s254 = smul.u32 32, %s21
      %p255 = scmp.lt.s32.totalorder %s20, 0
      %s256 = scalar_select %p255, %s20, 0
      %s257 = scalar_lea.vmem %s2, %s256
      %s258 = smul.u32 32, %s19
      %p259 = scmp.lt.s32.totalorder %s258, 63
      %s260 = scalar_select %p259, %s258, 63
      %p261 = scmp.lt.s32.totalorder %s20, 0
      %s262 = scalar_select %p261, %s20, 0
      %s263 = sadd.s32 %s262, %s260
      %s264 = smul.addr %s263, 8
      %s265 = scalar_lea.vmem %s3, %s264
      %s266 = smul.u32 32, %s19
      %p268 = scmp.eq.s32.totalorder %s21, 0
      // Predicated region
      $region33: #{densenet_multi_att_forward.35} parent=31 // pred_check
        %p269 = pneg %p268
      $region34: #{densenet_multi_att_forward.35} parent=31 // pred_check_branch
        %271 = sbr.rel (%p269) target = $region36
      $region35: #{densenet_multi_att_forward.35} parent=31 // pred_region
        %272 = vst [vmem:[#allocation2] sm:$0xff] 0.0
        %273 = vst [vmem:[#allocation2 + $0x8] sm:$0xff] 0.0
        %274 = vst [vmem:[#allocation2 + $0x10] sm:$0xff] 0.0
        %275 = vst [vmem:[#allocation2 + $0x18] sm:$0xff] 0.0
        %276 = vst [vmem:[#allocation2 + $0x20] sm:$0xff] 0.0
        %277 = vst [vmem:[#allocation2 + $0x28] sm:$0xff] 0.0
        %278 = vst [vmem:[#allocation2 + $0x30] sm:$0xff] 0.0
        %279 = vst [vmem:[#allocation2 + $0x38] sm:$0xff] 0.0
        %280 = vst [vmem:[#allocation2 + $0x40] sm:$0xff] 0.0
        %281 = vst [vmem:[#allocation2 + $0x48] sm:$0xff] 0.0
        %282 = vst [vmem:[#allocation2 + $0x50] sm:$0xff] 0.0
        %283 = vst [vmem:[#allocation2 + $0x58] sm:$0xff] 0.0
        %284 = vst [vmem:[#allocation2 + $0x60] sm:$0xff] 0.0
        %285 = vst [vmem:[#allocation2 + $0x68] sm:$0xff] 0.0
        %286 = vst [vmem:[#allocation2 + $0x70] sm:$0xff] 0.0
        %287 = vst [vmem:[#allocation2 + $0x78] sm:$0xff] 0.0
        %288 = vst [vmem:[#allocation2 + $0x80] sm:$0xff] 0.0
        %289 = vst [vmem:[#allocation2 + $0x88] sm:$0xff] 0.0
        %290 = vst [vmem:[#allocation2 + $0x90] sm:$0xff] 0.0
        %291 = vst [vmem:[#allocation2 + $0x98] sm:$0xff] 0.0
        %292 = vst [vmem:[#allocation2 + $0xa0] sm:$0xff] 0.0
        %293 = vst [vmem:[#allocation2 + $0xa8] sm:$0xff] 0.0
        %294 = vst [vmem:[#allocation2 + $0xb0] sm:$0xff] 0.0
        %295 = vst [vmem:[#allocation2 + $0xb8] sm:$0xff] 0.0
        %296 = vst [vmem:[#allocation2 + $0xc0] sm:$0xff] 0.0
        %297 = vst [vmem:[#allocation2 + $0xc8] sm:$0xff] 0.0
        %298 = vst [vmem:[#allocation2 + $0xd0] sm:$0xff] 0.0
        %299 = vst [vmem:[#allocation2 + $0xd8] sm:$0xff] 0.0
        %300 = vst [vmem:[#allocation2 + $0xe0] sm:$0xff] 0.0
        %301 = vst [vmem:[#allocation2 + $0xe8] sm:$0xff] 0.0
        %302 = vst [vmem:[#allocation2 + $0xf0] sm:$0xff] 0.0
        %303 = vst [vmem:[#allocation2 + $0xf8] sm:$0xff] 0.0
      $region36: #{densenet_multi_att_forward.35} parent=31 // pred_fallthru
        _
      %v304 = vld [vmem:[#allocation2] sm:$0xff]
      %v305 = vld [vmem:[#allocation2 + $0x8] sm:$0xff]
      %v306 = vld [vmem:[#allocation2 + $0x10] sm:$0xff]
      %v307 = vld [vmem:[#allocation2 + $0x18] sm:$0xff]
      %v308 = vld [vmem:[#allocation2 + $0x20] sm:$0xff]
      %v309 = vld [vmem:[#allocation2 + $0x28] sm:$0xff]
      %v310 = vld [vmem:[#allocation2 + $0x30] sm:$0xff]
      %v311 = vld [vmem:[#allocation2 + $0x38] sm:$0xff]
      %v312 = vld [vmem:[#allocation2 + $0x40] sm:$0xff]
      %v313 = vld [vmem:[#allocation2 + $0x48] sm:$0xff]
      %v314 = vld [vmem:[#allocation2 + $0x50] sm:$0xff]
      %v315 = vld [vmem:[#allocation2 + $0x58] sm:$0xff]
      %v316 = vld [vmem:[#allocation2 + $0x60] sm:$0xff]
      %v317 = vld [vmem:[#allocation2 + $0x68] sm:$0xff]
      %v318 = vld [vmem:[#allocation2 + $0x70] sm:$0xff]
      %v319 = vld [vmem:[#allocation2 + $0x78] sm:$0xff]
      %v320 = vld [vmem:[#allocation2 + $0x80] sm:$0xff]
      %v321 = vld [vmem:[#allocation2 + $0x88] sm:$0xff]
      %v322 = vld [vmem:[#allocation2 + $0x90] sm:$0xff]
      %v323 = vld [vmem:[#allocation2 + $0x98] sm:$0xff]
      %v324 = vld [vmem:[#allocation2 + $0xa0] sm:$0xff]
      %v325 = vld [vmem:[#allocation2 + $0xa8] sm:$0xff]
      %v326 = vld [vmem:[#allocation2 + $0xb0] sm:$0xff]
      %v327 = vld [vmem:[#allocation2 + $0xb8] sm:$0xff]
      %v328 = vld [vmem:[#allocation2 + $0xc0] sm:$0xff]
      %v329 = vld [vmem:[#allocation2 + $0xc8] sm:$0xff]
      %v330 = vld [vmem:[#allocation2 + $0xd0] sm:$0xff]
      %v331 = vld [vmem:[#allocation2 + $0xd8] sm:$0xff]
      %v332 = vld [vmem:[#allocation2 + $0xe0] sm:$0xff]
      %v333 = vld [vmem:[#allocation2 + $0xe8] sm:$0xff]
      %v334 = vld [vmem:[#allocation2 + $0xf0] sm:$0xff]
      %v335 = vld [vmem:[#allocation2 + $0xf8] sm:$0xff]
      %v336 = vld [vmem:[%s243] sm:$0xff]
      %v337 = vld [vmem:[%s243 + $0x8] sm:$0xff]
      %v338 = vld [vmem:[%s243 + $0x10] sm:$0xff]
      %v339 = vld [vmem:[%s243 + $0x18] sm:$0xff]
      %v340 = vld [vmem:[%s243 + $0x20] sm:$0xff]
      %v341 = vld [vmem:[%s243 + $0x28] sm:$0xff]
      %v342 = vld [vmem:[%s243 + $0x30] sm:$0xff]
      %v343 = vld [vmem:[%s243 + $0x38] sm:$0xff]
      %v344 = vld [vmem:[%s243 + $0x40] sm:$0xff]
      %v345 = vld [vmem:[%s243 + $0x48] sm:$0xff]
      %v346 = vld [vmem:[%s243 + $0x50] sm:$0xff]
      %v347 = vld [vmem:[%s243 + $0x58] sm:$0xff]
      %v348 = vld [vmem:[%s243 + $0x60] sm:$0xff]
      %v349 = vld [vmem:[%s243 + $0x68] sm:$0xff]
      %v350 = vld [vmem:[%s243 + $0x70] sm:$0xff]
      %v351 = vld [vmem:[%s243 + $0x78] sm:$0xff]
      %v352 = vld [vmem:[%s243 + $0x80] sm:$0xff]
      %v353 = vld [vmem:[%s243 + $0x88] sm:$0xff]
      %v354 = vld [vmem:[%s243 + $0x90] sm:$0xff]
      %v355 = vld [vmem:[%s243 + $0x98] sm:$0xff]
      %v356 = vld [vmem:[%s243 + $0xa0] sm:$0xff]
      %v357 = vld [vmem:[%s243 + $0xa8] sm:$0xff]
      %v358 = vld [vmem:[%s243 + $0xb0] sm:$0xff]
      %v359 = vld [vmem:[%s243 + $0xb8] sm:$0xff]
      %v360 = vld [vmem:[%s243 + $0xc0] sm:$0xff]
      %v361 = vld [vmem:[%s243 + $0xc8] sm:$0xff]
      %v362 = vld [vmem:[%s243 + $0xd0] sm:$0xff]
      %v363 = vld [vmem:[%s243 + $0xd8] sm:$0xff]
      %v364 = vld [vmem:[%s243 + $0xe0] sm:$0xff]
      %v365 = vld [vmem:[%s243 + $0xe8] sm:$0xff]
      %v366 = vld [vmem:[%s243 + $0xf0] sm:$0xff]
      %v367 = vld [vmem:[%s243 + $0xf8] sm:$0xff]
      %v368 = vld [vmem:[%s253] sm:$0xf]
      %v369 = vld [vmem:[%s253 + $0x4] sm:$0xf]
      %v370 = vld [vmem:[%s253 + $0x8] sm:$0xf]
      %v371 = vld [vmem:[%s253 + $0xc] sm:$0xf]
      %v372 = vld [vmem:[%s253 + $0x10] sm:$0xf]
      %v373 = vld [vmem:[%s253 + $0x14] sm:$0xf]
      %v374 = vld [vmem:[%s253 + $0x18] sm:$0xf]
      %v375 = vld [vmem:[%s253 + $0x1c] sm:$0xf]
      %v376 = vld [vmem:[%s253 + $0x20] sm:$0xf]
      %v377 = vld [vmem:[%s253 + $0x24] sm:$0xf]
      %v378 = vld [vmem:[%s253 + $0x28] sm:$0xf]
      %v379 = vld [vmem:[%s253 + $0x2c] sm:$0xf]
      %v380 = vld [vmem:[%s253 + $0x30] sm:$0xf]
      %v381 = vld [vmem:[%s253 + $0x34] sm:$0xf]
      %v382 = vld [vmem:[%s253 + $0x38] sm:$0xf]
      %v383 = vld [vmem:[%s253 + $0x3c] sm:$0xf]
      %v384 = vld [vmem:[%s253 + $0x40] sm:$0xf]
      %v385 = vld [vmem:[%s253 + $0x44] sm:$0xf]
      %v386 = vld [vmem:[%s253 + $0x48] sm:$0xf]
      %v387 = vld [vmem:[%s253 + $0x4c] sm:$0xf]
      %v388 = vld [vmem:[%s253 + $0x50] sm:$0xf]
      %v389 = vld [vmem:[%s253 + $0x54] sm:$0xf]
      %v390 = vld [vmem:[%s253 + $0x58] sm:$0xf]
      %v391 = vld [vmem:[%s253 + $0x5c] sm:$0xf]
      %v392 = vld [vmem:[%s253 + $0x60] sm:$0xf]
      %v393 = vld [vmem:[%s253 + $0x64] sm:$0xf]
      %v394 = vld [vmem:[%s253 + $0x68] sm:$0xf]
      %v395 = vld [vmem:[%s253 + $0x6c] sm:$0xf]
      %v396 = vld [vmem:[%s253 + $0x70] sm:$0xf]
      %v397 = vld [vmem:[%s253 + $0x74] sm:$0xf]
      %v398 = vld [vmem:[%s253 + $0x78] sm:$0xf]
      %v399 = vld [vmem:[%s253 + $0x7c] sm:$0xf]
      %v432 = vunpack.c.l.b16 %v336
      %v433 = vunpack.c.h.b16 %v336
      %v434 = vunpack.c.l.b16 %v337
      %v435 = vunpack.c.h.b16 %v337
      %v436 = vunpack.c.l.b16 %v338
      %v437 = vunpack.c.h.b16 %v338
      %v438 = vunpack.c.l.b16 %v339
      %v439 = vunpack.c.h.b16 %v339
      %v440 = vunpack.c.l.b16 %v340
      %v441 = vunpack.c.h.b16 %v340
      %v442 = vunpack.c.l.b16 %v341
      %v443 = vunpack.c.h.b16 %v341
      %v444 = vunpack.c.l.b16 %v342
      %v445 = vunpack.c.h.b16 %v342
      %v446 = vunpack.c.l.b16 %v343
      %v447 = vunpack.c.h.b16 %v343
      %v448 = vunpack.c.l.b16 %v344
      %v449 = vunpack.c.h.b16 %v344
      %v450 = vunpack.c.l.b16 %v345
      %v451 = vunpack.c.h.b16 %v345
      %v452 = vunpack.c.l.b16 %v346
      %v453 = vunpack.c.h.b16 %v346
      %v454 = vunpack.c.l.b16 %v347
      %v455 = vunpack.c.h.b16 %v347
      %v456 = vunpack.c.l.b16 %v348
      %v457 = vunpack.c.h.b16 %v348
      %v458 = vunpack.c.l.b16 %v349
      %v459 = vunpack.c.h.b16 %v349
      %v460 = vunpack.c.l.b16 %v350
      %v461 = vunpack.c.h.b16 %v350
      %v462 = vunpack.c.l.b16 %v351
      %v463 = vunpack.c.h.b16 %v351
      %v464 = vunpack.c.l.b16 %v352
      %v465 = vunpack.c.h.b16 %v352
      %v466 = vunpack.c.l.b16 %v353
      %v467 = vunpack.c.h.b16 %v353
      %v468 = vunpack.c.l.b16 %v354
      %v469 = vunpack.c.h.b16 %v354
      %v470 = vunpack.c.l.b16 %v355
      %v471 = vunpack.c.h.b16 %v355
      %v472 = vunpack.c.l.b16 %v356
      %v473 = vunpack.c.h.b16 %v356
      %v474 = vunpack.c.l.b16 %v357
      %v475 = vunpack.c.h.b16 %v357
      %v476 = vunpack.c.l.b16 %v358
      %v477 = vunpack.c.h.b16 %v358
      %v478 = vunpack.c.l.b16 %v359
      %v479 = vunpack.c.h.b16 %v359
      %v480 = vunpack.c.l.b16 %v360
      %v481 = vunpack.c.h.b16 %v360
      %v482 = vunpack.c.l.b16 %v361
      %v483 = vunpack.c.h.b16 %v361
      %v484 = vunpack.c.l.b16 %v362
      %v485 = vunpack.c.h.b16 %v362
      %v486 = vunpack.c.l.b16 %v363
      %v487 = vunpack.c.h.b16 %v363
      %v488 = vunpack.c.l.b16 %v364
      %v489 = vunpack.c.h.b16 %v364
      %v490 = vunpack.c.l.b16 %v365
      %v491 = vunpack.c.h.b16 %v365
      %v492 = vunpack.c.l.b16 %v366
      %v493 = vunpack.c.h.b16 %v366
      %v494 = vunpack.c.l.b16 %v367
      %v495 = vunpack.c.h.b16 %v367
      %v496 = vpack.c.b16 %v434, %v432
      %v497 = vpack.c.b16 %v435, %v433
      %v498 = vpack.c.b16 %v438, %v436
      %v499 = vpack.c.b16 %v439, %v437
      %v500 = vpack.c.b16 %v442, %v440
      %v501 = vpack.c.b16 %v443, %v441
      %v502 = vpack.c.b16 %v446, %v444
      %v503 = vpack.c.b16 %v447, %v445
      %v504 = vpack.c.b16 %v450, %v448
      %v505 = vpack.c.b16 %v451, %v449
      %v506 = vpack.c.b16 %v454, %v452
      %v507 = vpack.c.b16 %v455, %v453
      %v508 = vpack.c.b16 %v458, %v456
      %v509 = vpack.c.b16 %v459, %v457
      %v510 = vpack.c.b16 %v462, %v460
      %v511 = vpack.c.b16 %v463, %v461
      %v512 = vpack.c.b16 %v466, %v464
      %v513 = vpack.c.b16 %v467, %v465
      %v514 = vpack.c.b16 %v470, %v468
      %v515 = vpack.c.b16 %v471, %v469
      %v516 = vpack.c.b16 %v474, %v472
      %v517 = vpack.c.b16 %v475, %v473
      %v518 = vpack.c.b16 %v478, %v476
      %v519 = vpack.c.b16 %v479, %v477
      %v520 = vpack.c.b16 %v482, %v480
      %v521 = vpack.c.b16 %v483, %v481
      %v522 = vpack.c.b16 %v486, %v484
      %v523 = vpack.c.b16 %v487, %v485
      %v524 = vpack.c.b16 %v490, %v488
      %v525 = vpack.c.b16 %v491, %v489
      %v526 = vpack.c.b16 %v494, %v492
      %v527 = vpack.c.b16 %v495, %v493
      %v592 = vunpack.c.l.b16 %v368
      %v593 = vunpack.c.l.b16 %v369
      %v594 = vunpack.c.l.b16 %v370
      %v595 = vunpack.c.l.b16 %v371
      %v596 = vunpack.c.l.b16 %v372
      %v597 = vunpack.c.l.b16 %v373
      %v598 = vunpack.c.l.b16 %v374
      %v599 = vunpack.c.l.b16 %v375
      %v600 = vunpack.c.l.b16 %v376
      %v601 = vunpack.c.l.b16 %v377
      %v602 = vunpack.c.l.b16 %v378
      %v603 = vunpack.c.l.b16 %v379
      %v604 = vunpack.c.l.b16 %v380
      %v605 = vunpack.c.l.b16 %v381
      %v606 = vunpack.c.l.b16 %v382
      %v607 = vunpack.c.l.b16 %v383
      %v608 = vunpack.c.l.b16 %v384
      %v609 = vunpack.c.l.b16 %v385
      %v610 = vunpack.c.l.b16 %v386
      %v611 = vunpack.c.l.b16 %v387
      %v612 = vunpack.c.l.b16 %v388
      %v613 = vunpack.c.l.b16 %v389
      %v614 = vunpack.c.l.b16 %v390
      %v615 = vunpack.c.l.b16 %v391
      %v616 = vunpack.c.l.b16 %v392
      %v617 = vunpack.c.l.b16 %v393
      %v618 = vunpack.c.l.b16 %v394
      %v619 = vunpack.c.l.b16 %v395
      %v620 = vunpack.c.l.b16 %v396
      %v621 = vunpack.c.l.b16 %v397
      %v622 = vunpack.c.l.b16 %v398
      %v623 = vunpack.c.l.b16 %v399
      %v624 = vpack.c.b16 %v593, %v592
      %v625 = vpack.c.b16 %v595, %v594
      %v626 = vpack.c.b16 %v597, %v596
      %v627 = vpack.c.b16 %v599, %v598
      %v628 = vpack.c.b16 %v601, %v600
      %v629 = vpack.c.b16 %v603, %v602
      %v630 = vpack.c.b16 %v605, %v604
      %v631 = vpack.c.b16 %v607, %v606
      %v632 = vpack.c.b16 %v609, %v608
      %v633 = vpack.c.b16 %v611, %v610
      %v634 = vpack.c.b16 %v613, %v612
      %v635 = vpack.c.b16 %v615, %v614
      %v636 = vpack.c.b16 %v617, %v616
      %v637 = vpack.c.b16 %v619, %v618
      %v638 = vpack.c.b16 %v621, %v620
      %v639 = vpack.c.b16 %v623, %v622
      %656 = vmatprep.subr.bf16.mxu0 0
      %657 = vmatpush1.bf16.msra.mxu0 %v624
      %658 = vmatprep.subr.bf16.mxu0 0
      %659 = vmatpush1.bf16.msra.mxu0 %v625
      %660 = vmatprep.subr.bf16.mxu0 0
      %661 = vmatpush1.bf16.msra.mxu0 %v626
      %662 = vmatprep.subr.bf16.mxu0 0
      %663 = vmatpush1.bf16.msra.mxu0 %v627
      %664 = vmatprep.subr.bf16.mxu0 0
      %665 = vmatpush1.bf16.msra.mxu0 %v628
      %666 = vmatprep.subr.bf16.mxu0 0
      %667 = vmatpush1.bf16.msra.mxu0 %v629
      %668 = vmatprep.subr.bf16.mxu0 0
      %669 = vmatpush1.bf16.msra.mxu0 %v630
      %670 = vmatprep.subr.bf16.mxu0 0
      %671 = vmatpush1.bf16.msra.mxu0 %v631
      %672 = vmatprep.subr.bf16.mxu0 0
      %673 = vmatpush1.bf16.msra.mxu0 %v632
      %674 = vmatprep.subr.bf16.mxu0 0
      %675 = vmatpush1.bf16.msra.mxu0 %v633
      %676 = vmatprep.subr.bf16.mxu0 0
      %677 = vmatpush1.bf16.msra.mxu0 %v634
      %678 = vmatprep.subr.bf16.mxu0 0
      %679 = vmatpush1.bf16.msra.mxu0 %v635
      %680 = vmatprep.subr.bf16.mxu0 0
      %681 = vmatpush1.bf16.msra.mxu0 %v636
      %682 = vmatprep.subr.bf16.mxu0 0
      %683 = vmatpush1.bf16.msra.mxu0 %v637
      %684 = vmatprep.subr.bf16.mxu0 0
      %685 = vmatpush1.bf16.msra.mxu0 %v638
      %686 = vmatprep.subr.bf16.mxu0 0
      %687 = vmatpush1.bf16.msra.mxu0 %v639
      %688 = vmatprep.mubr.bf16.mxu0 %v497
      %689 = vmatmul.mubr.bf16.gmra.mrb[0].mxu0 %v496
      %v690 = vpop.f32.mrb[0].mxu0
      %v691 = vadd.f32 0.0, %v690
      %v692 = vpop.f32.mrb[0].mxu0
      %v693 = vpop.f32.mrb[0].mxu0
      %v694 = vadd.f32 0.0, %v693
      %v695 = vpop.f32.mrb[0].mxu0
      %696 = vmatprep.mubr.bf16.mxu0 %v499
      %697 = vmatmul.mubr.bf16.gmra.mrb[0].mxu0 %v498
      %v698 = vpop.f32.mrb[0].mxu0
      %v699 = vadd.f32 0.0, %v698
      %v700 = vpop.f32.mrb[0].mxu0
      %v701 = vpop.f32.mrb[0].mxu0
      %v702 = vadd.f32 0.0, %v701
      %v703 = vpop.f32.mrb[0].mxu0
      %704 = vmatprep.mubr.bf16.mxu0 %v501
      %705 = vmatmul.mubr.bf16.gmra.mrb[0].mxu0 %v500
      %v706 = vpop.f32.mrb[0].mxu0
      %v707 = vadd.f32 0.0, %v706
      %v708 = vpop.f32.mrb[0].mxu0
      %v709 = vpop.f32.mrb[0].mxu0
      %v710 = vadd.f32 0.0, %v709
      %v711 = vpop.f32.mrb[0].mxu0
      %712 = vmatprep.mubr.bf16.mxu0 %v503
      %713 = vmatmul.mubr.bf16.gmra.mrb[0].mxu0 %v502
      %v714 = vpop.f32.mrb[0].mxu0
      %v715 = vadd.f32 0.0, %v714
      %v716 = vpop.f32.mrb[0].mxu0
      %v717 = vpop.f32.mrb[0].mxu0
      %v718 = vadd.f32 0.0, %v717
      %v719 = vpop.f32.mrb[0].mxu0
      %720 = vmatprep.mubr.bf16.mxu0 %v505
      %721 = vmatmul.mubr.bf16.gmra.mrb[0].mxu0 %v504
      %v722 = vpop.f32.mrb[0].mxu0
      %v723 = vadd.f32 0.0, %v722
      %v724 = vpop.f32.mrb[0].mxu0
      %v725 = vpop.f32.mrb[0].mxu0
      %v726 = vadd.f32 0.0, %v725
      %v727 = vpop.f32.mrb[0].mxu0
      %728 = vmatprep.mubr.bf16.mxu0 %v507
      %729 = vmatmul.mubr.bf16.gmra.mrb[0].mxu0 %v506
      %v730 = vpop.f32.mrb[0].mxu0
      %v731 = vadd.f32 0.0, %v730
      %v732 = vpop.f32.mrb[0].mxu0
      %v733 = vpop.f32.mrb[0].mxu0
      %v734 = vadd.f32 0.0, %v733
      %v735 = vpop.f32.mrb[0].mxu0
      %736 = vmatprep.mubr.bf16.mxu0 %v509
      %737 = vmatmul.mubr.bf16.gmra.mrb[0].mxu0 %v508
      %v738 = vpop.f32.mrb[0].mxu0
      %v739 = vadd.f32 0.0, %v738
      %v740 = vpop.f32.mrb[0].mxu0
      %v741 = vpop.f32.mrb[0].mxu0
      %v742 = vadd.f32 0.0, %v741
      %v743 = vpop.f32.mrb[0].mxu0
      %744 = vmatprep.mubr.bf16.mxu0 %v511
      %745 = vmatmul.mubr.bf16.gmra.mrb[0].mxu0 %v510
      %v746 = vpop.f32.mrb[0].mxu0
      %v747 = vadd.f32 0.0, %v746
      %v748 = vpop.f32.mrb[0].mxu0
      %v749 = vpop.f32.mrb[0].mxu0
      %v750 = vadd.f32 0.0, %v749
      %v751 = vpop.f32.mrb[0].mxu0
      %752 = vmatprep.mubr.bf16.mxu0 %v513
      %753 = vmatmul.mubr.bf16.gmra.mrb[0].mxu0 %v512
      %v754 = vpop.f32.mrb[0].mxu0
      %v755 = vadd.f32 0.0, %v754
      %v756 = vpop.f32.mrb[0].mxu0
      %v757 = vpop.f32.mrb[0].mxu0
      %v758 = vadd.f32 0.0, %v757
      %v759 = vpop.f32.mrb[0].mxu0
      %760 = vmatprep.mubr.bf16.mxu0 %v515
      %761 = vmatmul.mubr.bf16.gmra.mrb[0].mxu0 %v514
      %v762 = vpop.f32.mrb[0].mxu0
      %v763 = vadd.f32 0.0, %v762
      %v764 = vpop.f32.mrb[0].mxu0
      %v765 = vpop.f32.mrb[0].mxu0
      %v766 = vadd.f32 0.0, %v765
      %v767 = vpop.f32.mrb[0].mxu0
      %768 = vmatprep.mubr.bf16.mxu0 %v517
      %769 = vmatmul.mubr.bf16.gmra.mrb[0].mxu0 %v516
      %v770 = vpop.f32.mrb[0].mxu0
      %v771 = vadd.f32 0.0, %v770
      %v772 = vpop.f32.mrb[0].mxu0
      %v773 = vpop.f32.mrb[0].mxu0
      %v774 = vadd.f32 0.0, %v773
      %v775 = vpop.f32.mrb[0].mxu0
      %776 = vmatprep.mubr.bf16.mxu0 %v519
      %777 = vmatmul.mubr.bf16.gmra.mrb[0].mxu0 %v518
      %v778 = vpop.f32.mrb[0].mxu0
      %v779 = vadd.f32 0.0, %v778
      %v780 = vpop.f32.mrb[0].mxu0
      %v781 = vpop.f32.mrb[0].mxu0
      %v782 = vadd.f32 0.0, %v781
      %v783 = vpop.f32.mrb[0].mxu0
      %784 = vmatprep.mubr.bf16.mxu0 %v521
      %785 = vmatmul.mubr.bf16.gmra.mrb[0].mxu0 %v520
      %v786 = vpop.f32.mrb[0].mxu0
      %v787 = vadd.f32 0.0, %v786
      %v788 = vpop.f32.mrb[0].mxu0
      %v789 = vpop.f32.mrb[0].mxu0
      %v790 = vadd.f32 0.0, %v789
      %v791 = vpop.f32.mrb[0].mxu0
      %792 = vmatprep.mubr.bf16.mxu0 %v523
      %793 = vmatmul.mubr.bf16.gmra.mrb[0].mxu0 %v522
      %v794 = vpop.f32.mrb[0].mxu0
      %v795 = vadd.f32 0.0, %v794
      %v796 = vpop.f32.mrb[0].mxu0
      %v797 = vpop.f32.mrb[0].mxu0
      %v798 = vadd.f32 0.0, %v797
      %v799 = vpop.f32.mrb[0].mxu0
      %800 = vmatprep.mubr.bf16.mxu0 %v525
      %801 = vmatmul.mubr.bf16.gmra.mrb[0].mxu0 %v524
      %v802 = vpop.f32.mrb[0].mxu0
      %v803 = vadd.f32 0.0, %v802
      %v804 = vpop.f32.mrb[0].mxu0
      %v805 = vpop.f32.mrb[0].mxu0
      %v806 = vadd.f32 0.0, %v805
      %v807 = vpop.f32.mrb[0].mxu0
      %808 = vmatprep.mubr.bf16.mxu0 %v527
      %809 = vmatmul.mubr.bf16.gmra.mrb[0].mxu0 %v526
      %v810 = vpop.f32.mrb[0].mxu0
      %v811 = vadd.f32 0.0, %v810
      %v812 = vpop.f32.mrb[0].mxu0
      %v813 = vpop.f32.mrb[0].mxu0
      %v814 = vadd.f32 0.0, %v813
      %v815 = vpop.f32.mrb[0].mxu0
      %816 = vdwg.mxu0
      %v817 = vadd.f32 %v304, %v691
      %v818 = vadd.f32 %v305, %v694
      %v819 = vadd.f32 %v306, %v699
      %v820 = vadd.f32 %v307, %v702
      %v821 = vadd.f32 %v308, %v707
      %v822 = vadd.f32 %v309, %v710
      %v823 = vadd.f32 %v310, %v715
      %v824 = vadd.f32 %v311, %v718
      %v825 = vadd.f32 %v312, %v723
      %v826 = vadd.f32 %v313, %v726
      %v827 = vadd.f32 %v314, %v731
      %v828 = vadd.f32 %v315, %v734
      %v829 = vadd.f32 %v316, %v739
      %v830 = vadd.f32 %v317, %v742
      %v831 = vadd.f32 %v318, %v747
      %v832 = vadd.f32 %v319, %v750
      %v833 = vadd.f32 %v320, %v755
      %v834 = vadd.f32 %v321, %v758
      %v835 = vadd.f32 %v322, %v763
      %v836 = vadd.f32 %v323, %v766
      %v837 = vadd.f32 %v324, %v771
      %v838 = vadd.f32 %v325, %v774
      %v839 = vadd.f32 %v326, %v779
      %v840 = vadd.f32 %v327, %v782
      %v841 = vadd.f32 %v328, %v787
      %v842 = vadd.f32 %v329, %v790
      %v843 = vadd.f32 %v330, %v795
      %v844 = vadd.f32 %v331, %v798
      %v845 = vadd.f32 %v332, %v803
      %v846 = vadd.f32 %v333, %v806
      %v847 = vadd.f32 %v334, %v811
      %v848 = vadd.f32 %v335, %v814
      %849 = vst [vmem:[#allocation2] sm:$0xff] %v817
      %850 = vst [vmem:[#allocation2 + $0x8] sm:$0xff] %v818
      %851 = vst [vmem:[#allocation2 + $0x10] sm:$0xff] %v819
      %852 = vst [vmem:[#allocation2 + $0x18] sm:$0xff] %v820
      %853 = vst [vmem:[#allocation2 + $0x20] sm:$0xff] %v821
      %854 = vst [vmem:[#allocation2 + $0x28] sm:$0xff] %v822
      %855 = vst [vmem:[#allocation2 + $0x30] sm:$0xff] %v823
      %856 = vst [vmem:[#allocation2 + $0x38] sm:$0xff] %v824
      %857 = vst [vmem:[#allocation2 + $0x40] sm:$0xff] %v825
      %858 = vst [vmem:[#allocation2 + $0x48] sm:$0xff] %v826
      %859 = vst [vmem:[#allocation2 + $0x50] sm:$0xff] %v827
      %860 = vst [vmem:[#allocation2 + $0x58] sm:$0xff] %v828
      %861 = vst [vmem:[#allocation2 + $0x60] sm:$0xff] %v829
      %862 = vst [vmem:[#allocation2 + $0x68] sm:$0xff] %v830
      %863 = vst [vmem:[#allocation2 + $0x70] sm:$0xff] %v831
      %864 = vst [vmem:[#allocation2 + $0x78] sm:$0xff] %v832
      %865 = vst [vmem:[#allocation2 + $0x80] sm:$0xff] %v833
      %866 = vst [vmem:[#allocation2 + $0x88] sm:$0xff] %v834
      %867 = vst [vmem:[#allocation2 + $0x90] sm:$0xff] %v835
      %868 = vst [vmem:[#allocation2 + $0x98] sm:$0xff] %v836
      %869 = vst [vmem:[#allocation2 + $0xa0] sm:$0xff] %v837
      %870 = vst [vmem:[#allocation2 + $0xa8] sm:$0xff] %v838
      %871 = vst [vmem:[#allocation2 + $0xb0] sm:$0xff] %v839
      %872 = vst [vmem:[#allocation2 + $0xb8] sm:$0xff] %v840
      %873 = vst [vmem:[#allocation2 + $0xc0] sm:$0xff] %v841
      %874 = vst [vmem:[#allocation2 + $0xc8] sm:$0xff] %v842
      %875 = vst [vmem:[#allocation2 + $0xd0] sm:$0xff] %v843
      %876 = vst [vmem:[#allocation2 + $0xd8] sm:$0xff] %v844
      %877 = vst [vmem:[#allocation2 + $0xe0] sm:$0xff] %v845
      %878 = vst [vmem:[#allocation2 + $0xe8] sm:$0xff] %v846
      %879 = vst [vmem:[#allocation2 + $0xf0] sm:$0xff] %v847
      %880 = vst [vmem:[#allocation2 + $0xf8] sm:$0xff] %v848
      // Predicated region
      $region37: #{densenet_multi_att_forward.35} parent=31 // pred_check
        %p881 = pneg %p268
      $region38: #{densenet_multi_att_forward.35} parent=31 // pred_check_branch
        %883 = sbr.rel (%p881) target = $region40
      $region39: #{densenet_multi_att_forward.35} parent=31 // pred_region
        %v884 = vld [vmem:[#allocation2] sm:$0xff]
        %v885 = vld [vmem:[#allocation2 + $0x8] sm:$0xff]
        %v886 = vld [vmem:[#allocation2 + $0x10] sm:$0xff]
        %v887 = vld [vmem:[#allocation2 + $0x18] sm:$0xff]
        %v888 = vld [vmem:[#allocation2 + $0x20] sm:$0xff]
        %v889 = vld [vmem:[#allocation2 + $0x28] sm:$0xff]
        %v890 = vld [vmem:[#allocation2 + $0x30] sm:$0xff]
        %v891 = vld [vmem:[#allocation2 + $0x38] sm:$0xff]
        %v892 = vld [vmem:[#allocation2 + $0x40] sm:$0xff]
        %v893 = vld [vmem:[#allocation2 + $0x48] sm:$0xff]
        %v894 = vld [vmem:[#allocation2 + $0x50] sm:$0xff]
        %v895 = vld [vmem:[#allocation2 + $0x58] sm:$0xff]
        %v896 = vld [vmem:[#allocation2 + $0x60] sm:$0xff]
        %v897 = vld [vmem:[#allocation2 + $0x68] sm:$0xff]
        %v898 = vld [vmem:[#allocation2 + $0x70] sm:$0xff]
        %v899 = vld [vmem:[#allocation2 + $0x78] sm:$0xff]
        %v900 = vld [vmem:[#allocation2 + $0x80] sm:$0xff]
        %v901 = vld [vmem:[#allocation2 + $0x88] sm:$0xff]
        %v902 = vld [vmem:[#allocation2 + $0x90] sm:$0xff]
        %v903 = vld [vmem:[#allocation2 + $0x98] sm:$0xff]
        %v904 = vld [vmem:[#allocation2 + $0xa0] sm:$0xff]
        %v905 = vld [vmem:[#allocation2 + $0xa8] sm:$0xff]
        %v906 = vld [vmem:[#allocation2 + $0xb0] sm:$0xff]
        %v907 = vld [vmem:[#allocation2 + $0xb8] sm:$0xff]
        %v908 = vld [vmem:[#allocation2 + $0xc0] sm:$0xff]
        %v909 = vld [vmem:[#allocation2 + $0xc8] sm:$0xff]
        %v910 = vld [vmem:[#allocation2 + $0xd0] sm:$0xff]
        %v911 = vld [vmem:[#allocation2 + $0xd8] sm:$0xff]
        %v912 = vld [vmem:[#allocation2 + $0xe0] sm:$0xff]
        %v913 = vld [vmem:[#allocation2 + $0xe8] sm:$0xff]
        %v914 = vld [vmem:[#allocation2 + $0xf0] sm:$0xff]
        %v915 = vld [vmem:[#allocation2 + $0xf8] sm:$0xff]
        %v916 = vld [vmem:[%s257] sm:$0x1]
        %v918 = vlaneseq
        %v919 = vshrl.u32 %v918, 7
        %v920 = vsub.s32 0, %v919
        %v921 = vrot.slane %v916, %v920
        %v923 = vadd.f32 %v884, %v921
        %v924 = vadd.f32 %v885, %v921
        %v925 = vadd.f32 %v886, %v921
        %v926 = vadd.f32 %v887, %v921
        %v927 = vadd.f32 %v888, %v921
        %v928 = vadd.f32 %v889, %v921
        %v929 = vadd.f32 %v890, %v921
        %v930 = vadd.f32 %v891, %v921
        %v931 = vadd.f32 %v892, %v921
        %v932 = vadd.f32 %v893, %v921
        %v933 = vadd.f32 %v894, %v921
        %v934 = vadd.f32 %v895, %v921
        %v935 = vadd.f32 %v896, %v921
        %v936 = vadd.f32 %v897, %v921
        %v937 = vadd.f32 %v898, %v921
        %v938 = vadd.f32 %v899, %v921
        %v939 = vadd.f32 %v900, %v921
        %v940 = vadd.f32 %v901, %v921
        %v941 = vadd.f32 %v902, %v921
        %v942 = vadd.f32 %v903, %v921
        %v943 = vadd.f32 %v904, %v921
        %v944 = vadd.f32 %v905, %v921
        %v945 = vadd.f32 %v906, %v921
        %v946 = vadd.f32 %v907, %v921
        %v947 = vadd.f32 %v908, %v921
        %v948 = vadd.f32 %v909, %v921
        %v949 = vadd.f32 %v910, %v921
        %v950 = vadd.f32 %v911, %v921
        %v951 = vadd.f32 %v912, %v921
        %v952 = vadd.f32 %v913, %v921
        %v953 = vadd.f32 %v914, %v921
        %v954 = vadd.f32 %v915, %v921
        %955 = vst [vmem:[%s265] sm:$0xff] %v923
        %956 = vst [vmem:[%s265 + $0x8] sm:$0xff] %v924
        %957 = vst [vmem:[%s265 + $0x10] sm:$0xff] %v925
        %958 = vst [vmem:[%s265 + $0x18] sm:$0xff] %v926
        %959 = vst [vmem:[%s265 + $0x20] sm:$0xff] %v927
        %960 = vst [vmem:[%s265 + $0x28] sm:$0xff] %v928
        %961 = vst [vmem:[%s265 + $0x30] sm:$0xff] %v929
        %962 = vst [vmem:[%s265 + $0x38] sm:$0xff] %v930
        %963 = vst [vmem:[%s265 + $0x40] sm:$0xff] %v931
        %964 = vst [vmem:[%s265 + $0x48] sm:$0xff] %v932
        %965 = vst [vmem:[%s265 + $0x50] sm:$0xff] %v933
        %966 = vst [vmem:[%s265 + $0x58] sm:$0xff] %v934
        %967 = vst [vmem:[%s265 + $0x60] sm:$0xff] %v935
        %968 = vst [vmem:[%s265 + $0x68] sm:$0xff] %v936
        %969 = vst [vmem:[%s265 + $0x70] sm:$0xff] %v937
        %970 = vst [vmem:[%s265 + $0x78] sm:$0xff] %v938
        %971 = vst [vmem:[%s265 + $0x80] sm:$0xff] %v939
        %972 = vst [vmem:[%s265 + $0x88] sm:$0xff] %v940
        %973 = vst [vmem:[%s265 + $0x90] sm:$0xff] %v941
        %974 = vst [vmem:[%s265 + $0x98] sm:$0xff] %v942
        %975 = vst [vmem:[%s265 + $0xa0] sm:$0xff] %v943
        %976 = vst [vmem:[%s265 + $0xa8] sm:$0xff] %v944
        %977 = vst [vmem:[%s265 + $0xb0] sm:$0xff] %v945
        %978 = vst [vmem:[%s265 + $0xb8] sm:$0xff] %v946
        %979 = vst [vmem:[%s265 + $0xc0] sm:$0xff] %v947
        %980 = vst [vmem:[%s265 + $0xc8] sm:$0xff] %v948
        %981 = vst [vmem:[%s265 + $0xd0] sm:$0xff] %v949
        %982 = vst [vmem:[%s265 + $0xd8] sm:$0xff] %v950
        %983 = vst [vmem:[%s265 + $0xe0] sm:$0xff] %v951
        %984 = vst [vmem:[%s265 + $0xe8] sm:$0xff] %v952
        %985 = vst [vmem:[%s265 + $0xf0] sm:$0xff] %v953
        %986 = vst [vmem:[%s265 + $0xf8] sm:$0xff] %v954
      $region40: #{densenet_multi_att_forward.35} parent=31 // pred_fallthru
        _
      %s987 = smul.u32 32, %s19
      %p988 = scmp.lt.s32.totalorder %s987, 63
      %s989 = scalar_select %p988, %s987, 63
      %p990 = scmp.lt.s32.totalorder %s20, 0
      %s991 = scalar_select %p990, %s20, 0
      %s992 = sadd.s32 %s991, %s989
      %s993 = smul.addr %s992, 8
      %s994 = scalar_lea.vmem %s3, %s993
      // Predicated region
      $region41: #{densenet_multi_att_forward.35} parent=31 // pred_check
        %p995 = pneg %p135
      $region42: #{densenet_multi_att_forward.35} parent=31 // pred_check_branch
        %997 = sbr.rel (%p995) target = $region44
      $region43: #{densenet_multi_att_forward.35} parent=31 // pred_region
        %s998 = smul.u32 32, %s19
      $region44: #{densenet_multi_att_forward.35} parent=31 // pred_fallthru
        _
    $region32: #{densenet_multi_att_forward.35} parent=5 // pred_fallthru
      _
    %p999 = scmp.le.s32.totalorder 2, %s9
    // Predicated region
    $region45: #{densenet_multi_att_forward.35} parent=5 // pred_check
      %p1000 = pneg %p999
    $region46: #{densenet_multi_att_forward.35} parent=5 // pred_check_branch
      %1002 = sbr.rel (%p1000) target = $region48
    $region47: #{densenet_multi_att_forward.35} parent=5 // pred_region
      %s1003 = ssub.s32 %s9, 2
      // Predicated region
      $region49: #{densenet_multi_att_forward.35} parent=47 // pred_check
        %p1004 = pneg %p141
      $region50: #{densenet_multi_att_forward.35} parent=47 // pred_check_branch
        %1006 = sbr.rel (%p1004) target = $region52
      $region51: #{densenet_multi_att_forward.35} parent=47 // pred_region
        %s1007 = smul.u32 32, %s22
        %p1008 = scmp.lt.s32.totalorder %s1007, 63
        %s1009 = scalar_select %p1008, %s1007, 63
        %p1010 = scmp.lt.s32.totalorder %s23, 0
        %s1011 = scalar_select %p1010, %s23, 0
        %s1012 = sadd.s32 %s1011, %s1009
        %s1013 = smul.addr %s1012, 8
        %s1014 = scalar_lea.vmem %s3, %s1013
      $region52: #{densenet_multi_att_forward.35} parent=47 // pred_fallthru
        _
    $region48: #{densenet_multi_att_forward.35} parent=5 // pred_fallthru
      _
  $region6: #{densenet_multi_att_forward.35} parent=0 // loop_footer
    %s13 = sadd.s32 1, %s9
  $region7: #{densenet_multi_att_forward.35} parent=0 // loop_footer_branch
    %8 = sbr.rel target = $region3
  $region8: #{densenet_multi_att_forward.35} parent=0 // loop_exit
    _

// kernel: densenet_multi_att_forward.41
$region0: #{densenet_multi_att_forward.41}
  #allocation0 [shape = 'u32[]', space=smem, size = 0x4, offset = 0x4, fixed_abs, tag = 'smem constant byte address 0x4 - core index']
  #allocation1 [shape = 'u32[144,128]{1,0:T(1,128)}', space=vmem, size = 0x12000, scoped, tag = 'internal scratch']
  %s0 = inlined_call_operand.vmem [shape: f32[128,128], index: 0, kind: input, shape index: {}]
  %s1 = inlined_call_operand.vmem [shape: f32[1,128], index: 1, kind: input, shape index: {}]
  %s2 = inlined_call_operand.vmem [shape: f32[1,128], index: 2, kind: input, shape index: {}]
  %s3 = inlined_call_operand.vmem [shape: f32[128,128], index: 3, kind: output, shape index: {}]
  %s4 = sld [smem:[#allocation0]]
  $region22: #{densenet_multi_att_forward.41} parent=0
    _
  %s6 = ssub.s32 1, %s4
  %s7 = scalar_select 0, %s6, %s4
  // Predicated region
  $region2: #{densenet_multi_att_forward.41} parent=0 // pred_check
    _
  $region3: #{densenet_multi_att_forward.41} parent=0 // pred_check_branch
    %9 = sbr.rel (0) target = $region5
  $region4: #{densenet_multi_att_forward.41} parent=0 // pred_region
    _
  $region5: #{densenet_multi_att_forward.41} parent=0 // pred_fallthru
    _
  // Predicated region
  $region6: #{densenet_multi_att_forward.41} parent=0 // pred_check
    _
  $region7: #{densenet_multi_att_forward.41} parent=0 // pred_check_branch
    %11 = sbr.rel (0) target = $region9
  $region8: #{densenet_multi_att_forward.41} parent=0 // pred_region
    _
  $region9: #{densenet_multi_att_forward.41} parent=0 // pred_fallthru
    _
  // Predicated region
  $region10: #{densenet_multi_att_forward.41} parent=0 // pred_check
    _
  $region11: #{densenet_multi_att_forward.41} parent=0 // pred_check_branch
    %13 = sbr.rel (0) target = $region13
  $region12: #{densenet_multi_att_forward.41} parent=0 // pred_region
    _
  $region13: #{densenet_multi_att_forward.41} parent=0 // pred_fallthru
    _
  %v14 = vld [vmem:[%s0] sm:$0xff]
  %v15 = vld [vmem:[%s0 + $0x8] sm:$0xff]
  %v16 = vld [vmem:[%s0 + $0x10] sm:$0xff]
  %v17 = vld [vmem:[%s0 + $0x18] sm:$0xff]
  %v18 = vld [vmem:[%s0 + $0x20] sm:$0xff]
  %v19 = vld [vmem:[%s0 + $0x28] sm:$0xff]
  %v20 = vld [vmem:[%s0 + $0x30] sm:$0xff]
  %v21 = vld [vmem:[%s0 + $0x38] sm:$0xff]
  %v22 = vld [vmem:[%s0 + $0x40] sm:$0xff]
  %v23 = vld [vmem:[%s0 + $0x48] sm:$0xff]
  %v24 = vld [vmem:[%s0 + $0x50] sm:$0xff]
  %v25 = vld [vmem:[%s0 + $0x58] sm:$0xff]
  %v26 = vld [vmem:[%s0 + $0x60] sm:$0xff]
  %v27 = vld [vmem:[%s0 + $0x68] sm:$0xff]
  %v28 = vld [vmem:[%s0 + $0x70] sm:$0xff]
  %v29 = vld [vmem:[%s0 + $0x78] sm:$0xff]
  %v30 = vld [vmem:[%s1] sm:$0x1]
  %v32 = vlaneseq
  %v33 = vshrl.u32 %v32, 7
  %v34 = vsub.s32 0, %v33
  %v35 = vrot.slane %v30, %v34
  %v37 = vmul.f32 %v14, %v35
  %v38 = vmul.f32 %v15, %v35
  %v39 = vmul.f32 %v16, %v35
  %v40 = vmul.f32 %v17, %v35
  %v41 = vmul.f32 %v18, %v35
  %v42 = vmul.f32 %v19, %v35
  %v43 = vmul.f32 %v20, %v35
  %v44 = vmul.f32 %v21, %v35
  %v45 = vmul.f32 %v22, %v35
  %v46 = vmul.f32 %v23, %v35
  %v47 = vmul.f32 %v24, %v35
  %v48 = vmul.f32 %v25, %v35
  %v49 = vmul.f32 %v26, %v35
  %v50 = vmul.f32 %v27, %v35
  %v51 = vmul.f32 %v28, %v35
  %v52 = vmul.f32 %v29, %v35
  %v53 = vld [vmem:[%s2] sm:$0x1]
  %v55 = vlaneseq
  %v56 = vshrl.u32 %v55, 7
  %v57 = vsub.s32 0, %v56
  %v58 = vrot.slane %v53, %v57
  %v60 = vadd.f32 %v37, %v58
  %v61 = vadd.f32 %v38, %v58
  %v62 = vadd.f32 %v39, %v58
  %v63 = vadd.f32 %v40, %v58
  %v64 = vadd.f32 %v41, %v58
  %v65 = vadd.f32 %v42, %v58
  %v66 = vadd.f32 %v43, %v58
  %v67 = vadd.f32 %v44, %v58
  %v68 = vadd.f32 %v45, %v58
  %v69 = vadd.f32 %v46, %v58
  %v70 = vadd.f32 %v47, %v58
  %v71 = vadd.f32 %v48, %v58
  %v72 = vadd.f32 %v49, %v58
  %v73 = vadd.f32 %v50, %v58
  %v74 = vadd.f32 %v51, %v58
  %v75 = vadd.f32 %v52, %v58
  %v76 = vmax.f32 %v60, 0.0
  %v77 = vmax.f32 %v61, 0.0
  %v78 = vmax.f32 %v62, 0.0
  %v79 = vmax.f32 %v63, 0.0
  %v80 = vmax.f32 %v64, 0.0
  %v81 = vmax.f32 %v65, 0.0
  %v82 = vmax.f32 %v66, 0.0
  %v83 = vmax.f32 %v67, 0.0
  %v84 = vmax.f32 %v68, 0.0
  %v85 = vmax.f32 %v69, 0.0
  %v86 = vmax.f32 %v70, 0.0
  %v87 = vmax.f32 %v71, 0.0
  %v88 = vmax.f32 %v72, 0.0
  %v89 = vmax.f32 %v73, 0.0
  %v90 = vmax.f32 %v74, 0.0
  %v91 = vmax.f32 %v75, 0.0
  %92 = vst [vmem:[%s3] sm:$0xff] %v76
  %93 = vst [vmem:[%s3 + $0x8] sm:$0xff] %v77
  %94 = vst [vmem:[%s3 + $0x10] sm:$0xff] %v78
  %95 = vst [vmem:[%s3 + $0x18] sm:$0xff] %v79
  %96 = vst [vmem:[%s3 + $0x20] sm:$0xff] %v80
  %97 = vst [vmem:[%s3 + $0x28] sm:$0xff] %v81
  %98 = vst [vmem:[%s3 + $0x30] sm:$0xff] %v82
  %99 = vst [vmem:[%s3 + $0x38] sm:$0xff] %v83
  %100 = vst [vmem:[%s3 + $0x40] sm:$0xff] %v84
  %101 = vst [vmem:[%s3 + $0x48] sm:$0xff] %v85
  %102 = vst [vmem:[%s3 + $0x50] sm:$0xff] %v86
  %103 = vst [vmem:[%s3 + $0x58] sm:$0xff] %v87
  %104 = vst [vmem:[%s3 + $0x60] sm:$0xff] %v88
  %105 = vst [vmem:[%s3 + $0x68] sm:$0xff] %v89
  %106 = vst [vmem:[%s3 + $0x70] sm:$0xff] %v90
  %107 = vst [vmem:[%s3 + $0x78] sm:$0xff] %v91
  // Predicated region
  $region14: #{densenet_multi_att_forward.41} parent=0 // pred_check
    _
  $region15: #{densenet_multi_att_forward.41} parent=0 // pred_check_branch
    %109 = sbr.rel (0) target = $region17
  $region16: #{densenet_multi_att_forward.41} parent=0 // pred_region
    _
  $region17: #{densenet_multi_att_forward.41} parent=0 // pred_fallthru
    _
  // Predicated region
  $region18: #{densenet_multi_att_forward.41} parent=0 // pred_check
    _
  $region19: #{densenet_multi_att_forward.41} parent=0 // pred_check_branch
    %111 = sbr.rel (0) target = $region21
  $region20: #{densenet_multi_att_forward.41} parent=0 // pred_region
    _
  $region21: #{densenet_multi_att_forward.41} parent=0 // pred_fallthru
    _

// kernel: densenet_multi_att_forward.38
$region0: #{densenet_multi_att_forward.38}
  #allocation0 [shape = 'u32[]', space=smem, size = 0x4, offset = 0x4, fixed_abs, tag = 'smem constant byte address 0x4 - core index']
  #allocation1 [shape = 'u32[144,128]{1,0:T(1,128)}', space=vmem, size = 0x12000, scoped, tag = 'internal scratch']
  %s0 = inlined_call_operand.vmem [shape: f32[128,128], index: 0, kind: input, shape index: {}]
  %s1 = inlined_call_operand.vmem [shape: f32[1,128], index: 1, kind: output, shape index: {0}]
  %s2 = inlined_call_operand.vmem [shape: f32[1,128], index: 2, kind: output, shape index: {1}]
  %3 = xla_tuple %s1, %s2
  %s4 = sld [smem:[#allocation0]]
  $region26: #{densenet_multi_att_forward.38} parent=0
    _
  %s6 = ssub.s32 1, %s4
  %s7 = scalar_select 0, %s6, %s4
  // Predicated region
  $region2: #{densenet_multi_att_forward.38} parent=0 // pred_check
    _
  $region3: #{densenet_multi_att_forward.38} parent=0 // pred_check_branch
    %9 = sbr.rel (0) target = $region5
  $region4: #{densenet_multi_att_forward.38} parent=0 // pred_region
    _
  $region5: #{densenet_multi_att_forward.38} parent=0 // pred_fallthru
    _
  %p10 = scmp.eq.s32.totalorder 0, 0
  // Predicated region
  $region6: #{densenet_multi_att_forward.38} parent=0 // pred_check
    %p11 = pneg %p10
  $region7: #{densenet_multi_att_forward.38} parent=0 // pred_check_branch
    %13 = sbr.rel (%p11) target = $region9
  $region8: #{densenet_multi_att_forward.38} parent=0 // pred_region
    %14 = vst [vmem:[%s1] sm:$0x1] 0.0
    %15 = vst [vmem:[%s2] sm:$0x1] 0.0
  $region9: #{densenet_multi_att_forward.38} parent=0 // pred_fallthru
    _
  %v16 = vld [vmem:[%s0] sm:$0xff]
  %v17 = vld [vmem:[%s0 + $0x8] sm:$0xff]
  %v18 = vld [vmem:[%s0 + $0x10] sm:$0xff]
  %v19 = vld [vmem:[%s0 + $0x18] sm:$0xff]
  %v20 = vld [vmem:[%s0 + $0x20] sm:$0xff]
  %v21 = vld [vmem:[%s0 + $0x28] sm:$0xff]
  %v22 = vld [vmem:[%s0 + $0x30] sm:$0xff]
  %v23 = vld [vmem:[%s0 + $0x38] sm:$0xff]
  %v24 = vld [vmem:[%s0 + $0x40] sm:$0xff]
  %v25 = vld [vmem:[%s0 + $0x48] sm:$0xff]
  %v26 = vld [vmem:[%s0 + $0x50] sm:$0xff]
  %v27 = vld [vmem:[%s0 + $0x58] sm:$0xff]
  %v28 = vld [vmem:[%s0 + $0x60] sm:$0xff]
  %v29 = vld [vmem:[%s0 + $0x68] sm:$0xff]
  %v30 = vld [vmem:[%s0 + $0x70] sm:$0xff]
  %v31 = vld [vmem:[%s0 + $0x78] sm:$0xff]
  %v32 = vld [vmem:[%s1] sm:$0x1]
  %v33 = vadd.f32 %v16, %v17
  %v34 = vadd.f32 %v33, %v18
  %v35 = vadd.f32 %v34, %v19
  %v36 = vadd.f32 %v35, %v20
  %v37 = vadd.f32 %v36, %v21
  %v38 = vadd.f32 %v37, %v22
  %v39 = vadd.f32 %v38, %v23
  %v40 = vadd.f32 %v39, %v24
  %v41 = vadd.f32 %v40, %v25
  %v42 = vadd.f32 %v41, %v26
  %v43 = vadd.f32 %v42, %v27
  %v44 = vadd.f32 %v43, %v28
  %v45 = vadd.f32 %v44, %v29
  %v46 = vadd.f32 %v45, %v30
  %v47 = vadd.f32 %v46, %v31
  %v48 = vrot.slane %v47, 4
  %v49 = vadd.f32 %v47, %v48
  %v50 = vrot.slane %v49, 2
  %v51 = vadd.f32 %v49, %v50
  %v52 = vrot.slane %v51, 1
  %v53 = vadd.f32 %v51, %v52
  %v54 = vadd.f32 %v32, %v53
  %55 = vst [vmem:[%s1] sm:$0x1] %v54
  %v56 = vld [vmem:[%s2] sm:$0x1]
  %v57 = vmul.f32 %v16, %v16
  %v58 = vmul.f32 %v17, %v17
  %v59 = vmul.f32 %v18, %v18
  %v60 = vmul.f32 %v19, %v19
  %v61 = vmul.f32 %v20, %v20
  %v62 = vmul.f32 %v21, %v21
  %v63 = vmul.f32 %v22, %v22
  %v64 = vmul.f32 %v23, %v23
  %v65 = vmul.f32 %v24, %v24
  %v66 = vmul.f32 %v25, %v25
  %v67 = vmul.f32 %v26, %v26
  %v68 = vmul.f32 %v27, %v27
  %v69 = vmul.f32 %v28, %v28
  %v70 = vmul.f32 %v29, %v29
  %v71 = vmul.f32 %v30, %v30
  %v72 = vmul.f32 %v31, %v31
  %v73 = vadd.f32 %v57, %v58
  %v74 = vadd.f32 %v73, %v59
  %v75 = vadd.f32 %v74, %v60
  %v76 = vadd.f32 %v75, %v61
  %v77 = vadd.f32 %v76, %v62
  %v78 = vadd.f32 %v77, %v63
  %v79 = vadd.f32 %v78, %v64
  %v80 = vadd.f32 %v79, %v65
  %v81 = vadd.f32 %v80, %v66
  %v82 = vadd.f32 %v81, %v67
  %v83 = vadd.f32 %v82, %v68
  %v84 = vadd.f32 %v83, %v69
  %v85 = vadd.f32 %v84, %v70
  %v86 = vadd.f32 %v85, %v71
  %v87 = vadd.f32 %v86, %v72
  %v88 = vrot.slane %v87, 4
  %v89 = vadd.f32 %v87, %v88
  %v90 = vrot.slane %v89, 2
  %v91 = vadd.f32 %v89, %v90
  %v92 = vrot.slane %v91, 1
  %v93 = vadd.f32 %v91, %v92
  %v94 = vadd.f32 %v56, %v93
  %95 = vst [vmem:[%s2] sm:$0x1] %v94
  // Predicated region
  $region10: #{densenet_multi_att_forward.38} parent=0 // pred_check
    _
  $region11: #{densenet_multi_att_forward.38} parent=0 // pred_check_branch
    %97 = sbr.rel (0) target = $region13
  $region12: #{densenet_multi_att_forward.38} parent=0 // pred_region
    _
  $region13: #{densenet_multi_att_forward.38} parent=0 // pred_fallthru
    _
  // Predicated region
  $region14: #{densenet_multi_att_forward.38} parent=0 // pred_check
    _
  $region15: #{densenet_multi_att_forward.38} parent=0 // pred_check_branch
    %99 = sbr.rel (0) target = $region17
  $region16: #{densenet_multi_att_forward.38} parent=0 // pred_region
    _
  $region17: #{densenet_multi_att_forward.38} parent=0 // pred_fallthru
    _
  // Predicated region
  $region18: #{densenet_multi_att_forward.38} parent=0 // pred_check
    _
  $region19: #{densenet_multi_att_forward.38} parent=0 // pred_check_branch
    %101 = sbr.rel (0) target = $region21
  $region20: #{densenet_multi_att_forward.38} parent=0 // pred_region
    _
  $region21: #{densenet_multi_att_forward.38} parent=0 // pred_fallthru
    _
  // Predicated region
  $region22: #{densenet_multi_att_forward.38} parent=0 // pred_check
    _
  $region23: #{densenet_multi_att_forward.38} parent=0 // pred_check_branch
    %103 = sbr.rel (0) target = $region25
  $region24: #{densenet_multi_att_forward.38} parent=0 // pred_region
    _
  $region25: #{densenet_multi_att_forward.38} parent=0 // pred_fallthru
    _

// kernel: densenet_multi_att_forward.39
$region0: #{densenet_multi_att_forward.39}
  #allocation0 [shape = 'u32[]', space=smem, size = 0x4, offset = 0x4, fixed_abs, tag = 'smem constant byte address 0x4 - core index']
  #allocation1 [shape = 'u32[144,128]{1,0:T(1,128)}', space=vmem, size = 0x12000, scoped, tag = 'internal scratch']
  #allocation2 [shape = 'f32[128,128]{1,0:T(8,128)}', space=vmem, size = 0x10000, scoped, tag = 'scratch operand']
  %s0 = inlined_call_operand.vmem [shape: f32[128,128], index: 0, kind: input, shape index: {}]
  %s1 = inlined_call_operand.vmem [shape: f32[1,128], index: 1, kind: input, shape index: {}]
  %s2 = inlined_call_operand.vmem [shape: f32[1,128], index: 2, kind: input, shape index: {}]
  %s3 = inlined_call_operand.vmem [shape: bf16[128,128], index: 3, kind: input, shape index: {}]
  %s4 = inlined_call_operand.vmem [shape: f32[1,128], index: 4, kind: input, shape index: {}]
  %s5 = inlined_call_operand.vmem [shape: f32[128,128], index: 5, kind: output, shape index: {}]
  %s6 = sld [smem:[#allocation0]]
  $region38: #{densenet_multi_att_forward.39} parent=0
    _
  %s8 = ssub.s32 1, %s6
  %s9 = scalar_select 0, %s8, %s6
  // Predicated region
  $region2: #{densenet_multi_att_forward.39} parent=0 // pred_check
    _
  $region3: #{densenet_multi_att_forward.39} parent=0 // pred_check_branch
    %11 = sbr.rel (0) target = $region5
  $region4: #{densenet_multi_att_forward.39} parent=0 // pred_region
    _
  $region5: #{densenet_multi_att_forward.39} parent=0 // pred_fallthru
    _
  // Predicated region
  $region6: #{densenet_multi_att_forward.39} parent=0 // pred_check
    _
  $region7: #{densenet_multi_att_forward.39} parent=0 // pred_check_branch
    %13 = sbr.rel (0) target = $region9
  $region8: #{densenet_multi_att_forward.39} parent=0 // pred_region
    _
  $region9: #{densenet_multi_att_forward.39} parent=0 // pred_fallthru
    _
  // Predicated region
  $region10: #{densenet_multi_att_forward.39} parent=0 // pred_check
    _
  $region11: #{densenet_multi_att_forward.39} parent=0 // pred_check_branch
    %15 = sbr.rel (0) target = $region13
  $region12: #{densenet_multi_att_forward.39} parent=0 // pred_region
    _
  $region13: #{densenet_multi_att_forward.39} parent=0 // pred_fallthru
    _
  // Predicated region
  $region14: #{densenet_multi_att_forward.39} parent=0 // pred_check
    _
  $region15: #{densenet_multi_att_forward.39} parent=0 // pred_check_branch
    %17 = sbr.rel (0) target = $region17
  $region16: #{densenet_multi_att_forward.39} parent=0 // pred_region
    _
  $region17: #{densenet_multi_att_forward.39} parent=0 // pred_fallthru
    _
  // Predicated region
  $region18: #{densenet_multi_att_forward.39} parent=0 // pred_check
    _
  $region19: #{densenet_multi_att_forward.39} parent=0 // pred_check_branch
    %19 = sbr.rel (0) target = $region21
  $region20: #{densenet_multi_att_forward.39} parent=0 // pred_region
    _
  $region21: #{densenet_multi_att_forward.39} parent=0 // pred_fallthru
    _
  %p21 = scmp.eq.s32.totalorder 0, 0
  // Predicated region
  $region22: #{densenet_multi_att_forward.39} parent=0 // pred_check
    %p22 = pneg %p21
  $region23: #{densenet_multi_att_forward.39} parent=0 // pred_check_branch
    %24 = sbr.rel (%p22) target = $region25
  $region24: #{densenet_multi_att_forward.39} parent=0 // pred_region
    %25 = vst [vmem:[#allocation2] sm:$0xff] 0.0
    %26 = vst [vmem:[#allocation2 + $0x8] sm:$0xff] 0.0
    %27 = vst [vmem:[#allocation2 + $0x10] sm:$0xff] 0.0
    %28 = vst [vmem:[#allocation2 + $0x18] sm:$0xff] 0.0
    %29 = vst [vmem:[#allocation2 + $0x20] sm:$0xff] 0.0
    %30 = vst [vmem:[#allocation2 + $0x28] sm:$0xff] 0.0
    %31 = vst [vmem:[#allocation2 + $0x30] sm:$0xff] 0.0
    %32 = vst [vmem:[#allocation2 + $0x38] sm:$0xff] 0.0
    %33 = vst [vmem:[#allocation2 + $0x40] sm:$0xff] 0.0
    %34 = vst [vmem:[#allocation2 + $0x48] sm:$0xff] 0.0
    %35 = vst [vmem:[#allocation2 + $0x50] sm:$0xff] 0.0
    %36 = vst [vmem:[#allocation2 + $0x58] sm:$0xff] 0.0
    %37 = vst [vmem:[#allocation2 + $0x60] sm:$0xff] 0.0
    %38 = vst [vmem:[#allocation2 + $0x68] sm:$0xff] 0.0
    %39 = vst [vmem:[#allocation2 + $0x70] sm:$0xff] 0.0
    %40 = vst [vmem:[#allocation2 + $0x78] sm:$0xff] 0.0
  $region25: #{densenet_multi_att_forward.39} parent=0 // pred_fallthru
    _
  %v41 = vld [vmem:[%s0] sm:$0xff]
  %v42 = vld [vmem:[%s0 + $0x8] sm:$0xff]
  %v43 = vld [vmem:[%s0 + $0x10] sm:$0xff]
  %v44 = vld [vmem:[%s0 + $0x18] sm:$0xff]
  %v45 = vld [vmem:[%s0 + $0x20] sm:$0xff]
  %v46 = vld [vmem:[%s0 + $0x28] sm:$0xff]
  %v47 = vld [vmem:[%s0 + $0x30] sm:$0xff]
  %v48 = vld [vmem:[%s0 + $0x38] sm:$0xff]
  %v49 = vld [vmem:[%s0 + $0x40] sm:$0xff]
  %v50 = vld [vmem:[%s0 + $0x48] sm:$0xff]
  %v51 = vld [vmem:[%s0 + $0x50] sm:$0xff]
  %v52 = vld [vmem:[%s0 + $0x58] sm:$0xff]
  %v53 = vld [vmem:[%s0 + $0x60] sm:$0xff]
  %v54 = vld [vmem:[%s0 + $0x68] sm:$0xff]
  %v55 = vld [vmem:[%s0 + $0x70] sm:$0xff]
  %v56 = vld [vmem:[%s0 + $0x78] sm:$0xff]
  %v57 = vld [vmem:[%s1] sm:$0x1]
  %v59 = vlaneseq
  %v60 = vshrl.u32 %v59, 7
  %v61 = vsub.s32 0, %v60
  %v62 = vrot.slane %v57, %v61
  %v64 = vmul.f32 %v41, %v62
  %v65 = vmul.f32 %v42, %v62
  %v66 = vmul.f32 %v43, %v62
  %v67 = vmul.f32 %v44, %v62
  %v68 = vmul.f32 %v45, %v62
  %v69 = vmul.f32 %v46, %v62
  %v70 = vmul.f32 %v47, %v62
  %v71 = vmul.f32 %v48, %v62
  %v72 = vmul.f32 %v49, %v62
  %v73 = vmul.f32 %v50, %v62
  %v74 = vmul.f32 %v51, %v62
  %v75 = vmul.f32 %v52, %v62
  %v76 = vmul.f32 %v53, %v62
  %v77 = vmul.f32 %v54, %v62
  %v78 = vmul.f32 %v55, %v62
  %v79 = vmul.f32 %v56, %v62
  %v80 = vld [vmem:[%s2] sm:$0x1]
  %v82 = vlaneseq
  %v83 = vshrl.u32 %v82, 7
  %v84 = vsub.s32 0, %v83
  %v85 = vrot.slane %v80, %v84
  %v87 = vadd.f32 %v64, %v85
  %v88 = vadd.f32 %v65, %v85
  %v89 = vadd.f32 %v66, %v85
  %v90 = vadd.f32 %v67, %v85
  %v91 = vadd.f32 %v68, %v85
  %v92 = vadd.f32 %v69, %v85
  %v93 = vadd.f32 %v70, %v85
  %v94 = vadd.f32 %v71, %v85
  %v95 = vadd.f32 %v72, %v85
  %v96 = vadd.f32 %v73, %v85
  %v97 = vadd.f32 %v74, %v85
  %v98 = vadd.f32 %v75, %v85
  %v99 = vadd.f32 %v76, %v85
  %v100 = vadd.f32 %v77, %v85
  %v101 = vadd.f32 %v78, %v85
  %v102 = vadd.f32 %v79, %v85
  %v103 = vmax.f32 %v87, 0.0
  %v104 = vmax.f32 %v88, 0.0
  %v105 = vmax.f32 %v89, 0.0
  %v106 = vmax.f32 %v90, 0.0
  %v107 = vmax.f32 %v91, 0.0
  %v108 = vmax.f32 %v92, 0.0
  %v109 = vmax.f32 %v93, 0.0
  %v110 = vmax.f32 %v94, 0.0
  %v111 = vmax.f32 %v95, 0.0
  %v112 = vmax.f32 %v96, 0.0
  %v113 = vmax.f32 %v97, 0.0
  %v114 = vmax.f32 %v98, 0.0
  %v115 = vmax.f32 %v99, 0.0
  %v116 = vmax.f32 %v100, 0.0
  %v117 = vmax.f32 %v101, 0.0
  %v118 = vmax.f32 %v102, 0.0
  %v119 = vld [vmem:[#allocation2] sm:$0xff]
  %v120 = vld [vmem:[#allocation2 + $0x8] sm:$0xff]
  %v121 = vld [vmem:[#allocation2 + $0x10] sm:$0xff]
  %v122 = vld [vmem:[#allocation2 + $0x18] sm:$0xff]
  %v123 = vld [vmem:[#allocation2 + $0x20] sm:$0xff]
  %v124 = vld [vmem:[#allocation2 + $0x28] sm:$0xff]
  %v125 = vld [vmem:[#allocation2 + $0x30] sm:$0xff]
  %v126 = vld [vmem:[#allocation2 + $0x38] sm:$0xff]
  %v127 = vld [vmem:[#allocation2 + $0x40] sm:$0xff]
  %v128 = vld [vmem:[#allocation2 + $0x48] sm:$0xff]
  %v129 = vld [vmem:[#allocation2 + $0x50] sm:$0xff]
  %v130 = vld [vmem:[#allocation2 + $0x58] sm:$0xff]
  %v131 = vld [vmem:[#allocation2 + $0x60] sm:$0xff]
  %v132 = vld [vmem:[#allocation2 + $0x68] sm:$0xff]
  %v133 = vld [vmem:[#allocation2 + $0x70] sm:$0xff]
  %v134 = vld [vmem:[#allocation2 + $0x78] sm:$0xff]
  %v135 = vpack.c.bf16 %v104, %v103
  %v136 = vpack.c.bf16 %v106, %v105
  %v137 = vpack.c.bf16 %v108, %v107
  %v138 = vpack.c.bf16 %v110, %v109
  %v139 = vpack.c.bf16 %v112, %v111
  %v140 = vpack.c.bf16 %v114, %v113
  %v141 = vpack.c.bf16 %v116, %v115
  %v142 = vpack.c.bf16 %v118, %v117
  %v143 = vld [vmem:[%s3] sm:$0xf]
  %v144 = vld [vmem:[%s3 + $0x4] sm:$0xf]
  %v145 = vld [vmem:[%s3 + $0x8] sm:$0xf]
  %v146 = vld [vmem:[%s3 + $0xc] sm:$0xf]
  %v147 = vld [vmem:[%s3 + $0x10] sm:$0xf]
  %v148 = vld [vmem:[%s3 + $0x14] sm:$0xf]
  %v149 = vld [vmem:[%s3 + $0x18] sm:$0xf]
  %v150 = vld [vmem:[%s3 + $0x1c] sm:$0xf]
  %v151 = vld [vmem:[%s3 + $0x20] sm:$0xf]
  %v152 = vld [vmem:[%s3 + $0x24] sm:$0xf]
  %v153 = vld [vmem:[%s3 + $0x28] sm:$0xf]
  %v154 = vld [vmem:[%s3 + $0x2c] sm:$0xf]
  %v155 = vld [vmem:[%s3 + $0x30] sm:$0xf]
  %v156 = vld [vmem:[%s3 + $0x34] sm:$0xf]
  %v157 = vld [vmem:[%s3 + $0x38] sm:$0xf]
  %v158 = vld [vmem:[%s3 + $0x3c] sm:$0xf]
  %v175 = vunpack.c.l.b16 %v143
  %v176 = vunpack.c.l.b16 %v144
  %v177 = vunpack.c.l.b16 %v145
  %v178 = vunpack.c.l.b16 %v146
  %v179 = vunpack.c.l.b16 %v147
  %v180 = vunpack.c.l.b16 %v148
  %v181 = vunpack.c.l.b16 %v149
  %v182 = vunpack.c.l.b16 %v150
  %v183 = vunpack.c.l.b16 %v151
  %v184 = vunpack.c.l.b16 %v152
  %v185 = vunpack.c.l.b16 %v153
  %v186 = vunpack.c.l.b16 %v154
  %v187 = vunpack.c.l.b16 %v155
  %v188 = vunpack.c.l.b16 %v156
  %v189 = vunpack.c.l.b16 %v157
  %v190 = vunpack.c.l.b16 %v158
  %v191 = vpack.c.b16 %v176, %v175
  %v192 = vpack.c.b16 %v178, %v177
  %v193 = vpack.c.b16 %v180, %v179
  %v194 = vpack.c.b16 %v182, %v181
  %v195 = vpack.c.b16 %v184, %v183
  %v196 = vpack.c.b16 %v186, %v185
  %v197 = vpack.c.b16 %v188, %v187
  %v198 = vpack.c.b16 %v190, %v189
  %207 = vmatprep.subr.bf16.mxu0 0
  %208 = vmatpush1.bf16.msra.mxu0 %v191
  %209 = vmatprep.subr.bf16.mxu0 0
  %210 = vmatpush1.bf16.msra.mxu0 %v192
  %211 = vmatprep.subr.bf16.mxu0 0
  %212 = vmatpush1.bf16.msra.mxu0 %v193
  %213 = vmatprep.subr.bf16.mxu0 0
  %214 = vmatpush1.bf16.msra.mxu0 %v194
  %215 = vmatprep.subr.bf16.mxu0 0
  %216 = vmatpush1.bf16.msra.mxu0 %v195
  %217 = vmatprep.subr.bf16.mxu0 0
  %218 = vmatpush1.bf16.msra.mxu0 %v196
  %219 = vmatprep.subr.bf16.mxu0 0
  %220 = vmatpush1.bf16.msra.mxu0 %v197
  %221 = vmatprep.subr.bf16.mxu0 0
  %222 = vmatpush1.bf16.msra.mxu0 %v198
  %223 = vmatprep.subr.bf16.mxu0 0
  %224 = vmatpush1.bf16.msra.mxu0 0
  %225 = vmatprep.subr.bf16.mxu0 0
  %226 = vmatpush1.bf16.msra.mxu0 0
  %227 = vmatprep.subr.bf16.mxu0 0
  %228 = vmatpush1.bf16.msra.mxu0 0
  %229 = vmatprep.subr.bf16.mxu0 0
  %230 = vmatpush1.bf16.msra.mxu0 0
  %231 = vmatprep.subr.bf16.mxu0 0
  %232 = vmatpush1.bf16.msra.mxu0 0
  %233 = vmatprep.subr.bf16.mxu0 0
  %234 = vmatpush1.bf16.msra.mxu0 0
  %235 = vmatprep.subr.bf16.mxu0 0
  %236 = vmatpush1.bf16.msra.mxu0 0
  %237 = vmatprep.subr.bf16.mxu0 0
  %238 = vmatpush1.bf16.msra.mxu0 0
  %239 = vmatprep.mubr.bf16.mxu0 0
  %240 = vmatmul.mubr.bf16.gmra.mrb[0].mxu0 %v135
  %v241 = vpop.f32.mrb[0].mxu0
  %v242 = vadd.f32 0.0, %v241
  %v243 = vpop.f32.mrb[0].mxu0
  %v244 = vpop.f32.mrb[0].mxu0
  %v245 = vadd.f32 0.0, %v244
  %v246 = vpop.f32.mrb[0].mxu0
  %247 = vmatprep.mubr.bf16.mxu0 0
  %248 = vmatmul.mubr.bf16.gmra.mrb[0].mxu0 %v136
  %v249 = vpop.f32.mrb[0].mxu0
  %v250 = vadd.f32 0.0, %v249
  %v251 = vpop.f32.mrb[0].mxu0
  %v252 = vpop.f32.mrb[0].mxu0
  %v253 = vadd.f32 0.0, %v252
  %v254 = vpop.f32.mrb[0].mxu0
  %255 = vmatprep.mubr.bf16.mxu0 0
  %256 = vmatmul.mubr.bf16.gmra.mrb[0].mxu0 %v137
  %v257 = vpop.f32.mrb[0].mxu0
  %v258 = vadd.f32 0.0, %v257
  %v259 = vpop.f32.mrb[0].mxu0
  %v260 = vpop.f32.mrb[0].mxu0
  %v261 = vadd.f32 0.0, %v260
  %v262 = vpop.f32.mrb[0].mxu0
  %263 = vmatprep.mubr.bf16.mxu0 0
  %264 = vmatmul.mubr.bf16.gmra.mrb[0].mxu0 %v138
  %v265 = vpop.f32.mrb[0].mxu0
  %v266 = vadd.f32 0.0, %v265
  %v267 = vpop.f32.mrb[0].mxu0
  %v268 = vpop.f32.mrb[0].mxu0
  %v269 = vadd.f32 0.0, %v268
  %v270 = vpop.f32.mrb[0].mxu0
  %271 = vmatprep.mubr.bf16.mxu0 0
  %272 = vmatmul.mubr.bf16.gmra.mrb[0].mxu0 %v139
  %v273 = vpop.f32.mrb[0].mxu0
  %v274 = vadd.f32 0.0, %v273
  %v275 = vpop.f32.mrb[0].mxu0
  %v276 = vpop.f32.mrb[0].mxu0
  %v277 = vadd.f32 0.0, %v276
  %v278 = vpop.f32.mrb[0].mxu0
  %279 = vmatprep.mubr.bf16.mxu0 0
  %280 = vmatmul.mubr.bf16.gmra.mrb[0].mxu0 %v140
  %v281 = vpop.f32.mrb[0].mxu0
  %v282 = vadd.f32 0.0, %v281
  %v283 = vpop.f32.mrb[0].mxu0
  %v284 = vpop.f32.mrb[0].mxu0
  %v285 = vadd.f32 0.0, %v284
  %v286 = vpop.f32.mrb[0].mxu0
  %287 = vmatprep.mubr.bf16.mxu0 0
  %288 = vmatmul.mubr.bf16.gmra.mrb[0].mxu0 %v141
  %v289 = vpop.f32.mrb[0].mxu0
  %v290 = vadd.f32 0.0, %v289
  %v291 = vpop.f32.mrb[0].mxu0
  %v292 = vpop.f32.mrb[0].mxu0
  %v293 = vadd.f32 0.0, %v292
  %v294 = vpop.f32.mrb[0].mxu0
  %295 = vmatprep.mubr.bf16.mxu0 0
  %296 = vmatmul.mubr.bf16.gmra.mrb[0].mxu0 %v142
  %v297 = vpop.f32.mrb[0].mxu0
  %v298 = vadd.f32 0.0, %v297
  %v299 = vpop.f32.mrb[0].mxu0
  %v300 = vpop.f32.mrb[0].mxu0
  %v301 = vadd.f32 0.0, %v300
  %v302 = vpop.f32.mrb[0].mxu0
  %303 = vdwg.mxu0
  %v304 = vadd.f32 %v119, %v242
  %v305 = vadd.f32 %v120, %v245
  %v306 = vadd.f32 %v121, %v250
  %v307 = vadd.f32 %v122, %v253
  %v308 = vadd.f32 %v123, %v258
  %v309 = vadd.f32 %v124, %v261
  %v310 = vadd.f32 %v125, %v266
  %v311 = vadd.f32 %v126, %v269
  %v312 = vadd.f32 %v127, %v274
  %v313 = vadd.f32 %v128, %v277
  %v314 = vadd.f32 %v129, %v282
  %v315 = vadd.f32 %v130, %v285
  %v316 = vadd.f32 %v131, %v290
  %v317 = vadd.f32 %v132, %v293
  %v318 = vadd.f32 %v133, %v298
  %v319 = vadd.f32 %v134, %v301
  %320 = vst [vmem:[#allocation2] sm:$0xff] %v304
  %321 = vst [vmem:[#allocation2 + $0x8] sm:$0xff] %v305
  %322 = vst [vmem:[#allocation2 + $0x10] sm:$0xff] %v306
  %323 = vst [vmem:[#allocation2 + $0x18] sm:$0xff] %v307
  %324 = vst [vmem:[#allocation2 + $0x20] sm:$0xff] %v308
  %325 = vst [vmem:[#allocation2 + $0x28] sm:$0xff] %v309
  %326 = vst [vmem:[#allocation2 + $0x30] sm:$0xff] %v310
  %327 = vst [vmem:[#allocation2 + $0x38] sm:$0xff] %v311
  %328 = vst [vmem:[#allocation2 + $0x40] sm:$0xff] %v312
  %329 = vst [vmem:[#allocation2 + $0x48] sm:$0xff] %v313
  %330 = vst [vmem:[#allocation2 + $0x50] sm:$0xff] %v314
  %331 = vst [vmem:[#allocation2 + $0x58] sm:$0xff] %v315
  %332 = vst [vmem:[#allocation2 + $0x60] sm:$0xff] %v316
  %333 = vst [vmem:[#allocation2 + $0x68] sm:$0xff] %v317
  %334 = vst [vmem:[#allocation2 + $0x70] sm:$0xff] %v318
  %335 = vst [vmem:[#allocation2 + $0x78] sm:$0xff] %v319
  // Predicated region
  $region26: #{densenet_multi_att_forward.39} parent=0 // pred_check
    %p336 = pneg %p21
  $region27: #{densenet_multi_att_forward.39} parent=0 // pred_check_branch
    %338 = sbr.rel (%p336) target = $region29
  $region28: #{densenet_multi_att_forward.39} parent=0 // pred_region
    %v339 = vld [vmem:[#allocation2] sm:$0xff]
    %v340 = vld [vmem:[#allocation2 + $0x8] sm:$0xff]
    %v341 = vld [vmem:[#allocation2 + $0x10] sm:$0xff]
    %v342 = vld [vmem:[#allocation2 + $0x18] sm:$0xff]
    %v343 = vld [vmem:[#allocation2 + $0x20] sm:$0xff]
    %v344 = vld [vmem:[#allocation2 + $0x28] sm:$0xff]
    %v345 = vld [vmem:[#allocation2 + $0x30] sm:$0xff]
    %v346 = vld [vmem:[#allocation2 + $0x38] sm:$0xff]
    %v347 = vld [vmem:[#allocation2 + $0x40] sm:$0xff]
    %v348 = vld [vmem:[#allocation2 + $0x48] sm:$0xff]
    %v349 = vld [vmem:[#allocation2 + $0x50] sm:$0xff]
    %v350 = vld [vmem:[#allocation2 + $0x58] sm:$0xff]
    %v351 = vld [vmem:[#allocation2 + $0x60] sm:$0xff]
    %v352 = vld [vmem:[#allocation2 + $0x68] sm:$0xff]
    %v353 = vld [vmem:[#allocation2 + $0x70] sm:$0xff]
    %v354 = vld [vmem:[#allocation2 + $0x78] sm:$0xff]
    %v355 = vld [vmem:[%s4] sm:$0x1]
    %v357 = vlaneseq
    %v358 = vshrl.u32 %v357, 7
    %v359 = vsub.s32 0, %v358
    %v360 = vrot.slane %v355, %v359
    %v362 = vadd.f32 %v339, %v360
    %v363 = vadd.f32 %v340, %v360
    %v364 = vadd.f32 %v341, %v360
    %v365 = vadd.f32 %v342, %v360
    %v366 = vadd.f32 %v343, %v360
    %v367 = vadd.f32 %v344, %v360
    %v368 = vadd.f32 %v345, %v360
    %v369 = vadd.f32 %v346, %v360
    %v370 = vadd.f32 %v347, %v360
    %v371 = vadd.f32 %v348, %v360
    %v372 = vadd.f32 %v349, %v360
    %v373 = vadd.f32 %v350, %v360
    %v374 = vadd.f32 %v351, %v360
    %v375 = vadd.f32 %v352, %v360
    %v376 = vadd.f32 %v353, %v360
    %v377 = vadd.f32 %v354, %v360
    %378 = vst [vmem:[%s5] sm:$0xff] %v362
    %379 = vst [vmem:[%s5 + $0x8] sm:$0xff] %v363
    %380 = vst [vmem:[%s5 + $0x10] sm:$0xff] %v364
    %381 = vst [vmem:[%s5 + $0x18] sm:$0xff] %v365
    %382 = vst [vmem:[%s5 + $0x20] sm:$0xff] %v366
    %383 = vst [vmem:[%s5 + $0x28] sm:$0xff] %v367
    %384 = vst [vmem:[%s5 + $0x30] sm:$0xff] %v368
    %385 = vst [vmem:[%s5 + $0x38] sm:$0xff] %v369
    %386 = vst [vmem:[%s5 + $0x40] sm:$0xff] %v370
    %387 = vst [vmem:[%s5 + $0x48] sm:$0xff] %v371
    %388 = vst [vmem:[%s5 + $0x50] sm:$0xff] %v372
    %389 = vst [vmem:[%s5 + $0x58] sm:$0xff] %v373
    %390 = vst [vmem:[%s5 + $0x60] sm:$0xff] %v374
    %391 = vst [vmem:[%s5 + $0x68] sm:$0xff] %v375
    %392 = vst [vmem:[%s5 + $0x70] sm:$0xff] %v376
    %393 = vst [vmem:[%s5 + $0x78] sm:$0xff] %v377
  $region29: #{densenet_multi_att_forward.39} parent=0 // pred_fallthru
    _
  // Predicated region
  $region30: #{densenet_multi_att_forward.39} parent=0 // pred_check
    _
  $region31: #{densenet_multi_att_forward.39} parent=0 // pred_check_branch
    %395 = sbr.rel (0) target = $region33
  $region32: #{densenet_multi_att_forward.39} parent=0 // pred_region
    _
  $region33: #{densenet_multi_att_forward.39} parent=0 // pred_fallthru
    _
  // Predicated region
  $region34: #{densenet_multi_att_forward.39} parent=0 // pred_check
    _
  $region35: #{densenet_multi_att_forward.39} parent=0 // pred_check_branch
    %397 = sbr.rel (0) target = $region37
  $region36: #{densenet_multi_att_forward.39} parent=0 // pred_region
    _
  $region37: #{densenet_multi_att_forward.39} parent=0 // pred_fallthru
    _

// kernel: densenet_multi_att_forward.50
$region0: #{densenet_multi_att_forward.50}
  #allocation0 [shape = 'u32[]', space=smem, size = 0x4, offset = 0x4, fixed_abs, tag = 'smem constant byte address 0x4 - core index']
  #allocation1 [shape = 'u32[144,128]{1,0:T(1,128)}', space=vmem, size = 0x12000, scoped, tag = 'internal scratch']
  %s0 = inlined_call_operand.vmem [shape: f32[32,128], index: 0, kind: input, shape index: {}]
  %s1 = inlined_call_operand.vmem [shape: f32[1,128], index: 1, kind: output, shape index: {0}]
  %s2 = inlined_call_operand.vmem [shape: f32[1,128], index: 2, kind: output, shape index: {1}]
  %3 = xla_tuple %s1, %s2
  %s4 = sld [smem:[#allocation0]]
  $region26: #{densenet_multi_att_forward.50} parent=0
    _
  %s6 = ssub.s32 1, %s4
  %s7 = scalar_select 0, %s6, %s4
  // Predicated region
  $region2: #{densenet_multi_att_forward.50} parent=0 // pred_check
    _
  $region3: #{densenet_multi_att_forward.50} parent=0 // pred_check_branch
    %9 = sbr.rel (0) target = $region5
  $region4: #{densenet_multi_att_forward.50} parent=0 // pred_region
    _
  $region5: #{densenet_multi_att_forward.50} parent=0 // pred_fallthru
    _
  %p10 = scmp.eq.s32.totalorder 0, 0
  // Predicated region
  $region6: #{densenet_multi_att_forward.50} parent=0 // pred_check
    %p11 = pneg %p10
  $region7: #{densenet_multi_att_forward.50} parent=0 // pred_check_branch
    %13 = sbr.rel (%p11) target = $region9
  $region8: #{densenet_multi_att_forward.50} parent=0 // pred_region
    %14 = vst [vmem:[%s1] sm:$0x1] 0.0
    %15 = vst [vmem:[%s2] sm:$0x1] 0.0
  $region9: #{densenet_multi_att_forward.50} parent=0 // pred_fallthru
    _
  %v16 = vld [vmem:[%s0] sm:$0xff]
  %v17 = vld [vmem:[%s0 + $0x8] sm:$0xff]
  %v18 = vld [vmem:[%s0 + $0x10] sm:$0xff]
  %v19 = vld [vmem:[%s0 + $0x18] sm:$0xff]
  %v20 = vld [vmem:[%s1] sm:$0x1]
  %v21 = vadd.f32 %v16, %v17
  %v22 = vadd.f32 %v21, %v18
  %v23 = vadd.f32 %v22, %v19
  %v24 = vrot.slane %v23, 4
  %v25 = vadd.f32 %v23, %v24
  %v26 = vrot.slane %v25, 2
  %v27 = vadd.f32 %v25, %v26
  %v28 = vrot.slane %v27, 1
  %v29 = vadd.f32 %v27, %v28
  %v30 = vadd.f32 %v20, %v29
  %31 = vst [vmem:[%s1] sm:$0x1] %v30
  %v32 = vld [vmem:[%s2] sm:$0x1]
  %v33 = vmul.f32 %v16, %v16
  %v34 = vmul.f32 %v17, %v17
  %v35 = vmul.f32 %v18, %v18
  %v36 = vmul.f32 %v19, %v19
  %v37 = vadd.f32 %v33, %v34
  %v38 = vadd.f32 %v37, %v35
  %v39 = vadd.f32 %v38, %v36
  %v40 = vrot.slane %v39, 4
  %v41 = vadd.f32 %v39, %v40
  %v42 = vrot.slane %v41, 2
  %v43 = vadd.f32 %v41, %v42
  %v44 = vrot.slane %v43, 1
  %v45 = vadd.f32 %v43, %v44
  %v46 = vadd.f32 %v32, %v45
  %47 = vst [vmem:[%s2] sm:$0x1] %v46
  // Predicated region
  $region10: #{densenet_multi_att_forward.50} parent=0 // pred_check
    _
  $region11: #{densenet_multi_att_forward.50} parent=0 // pred_check_branch
    %49 = sbr.rel (0) target = $region13
  $region12: #{densenet_multi_att_forward.50} parent=0 // pred_region
    _
  $region13: #{densenet_multi_att_forward.50} parent=0 // pred_fallthru
    _
  // Predicated region
  $region14: #{densenet_multi_att_forward.50} parent=0 // pred_check
    _
  $region15: #{densenet_multi_att_forward.50} parent=0 // pred_check_branch
    %51 = sbr.rel (0) target = $region17
  $region16: #{densenet_multi_att_forward.50} parent=0 // pred_region
    _
  $region17: #{densenet_multi_att_forward.50} parent=0 // pred_fallthru
    _
  // Predicated region
  $region18: #{densenet_multi_att_forward.50} parent=0 // pred_check
    _
  $region19: #{densenet_multi_att_forward.50} parent=0 // pred_check_branch
    %53 = sbr.rel (0) target = $region21
  $region20: #{densenet_multi_att_forward.50} parent=0 // pred_region
    _
  $region21: #{densenet_multi_att_forward.50} parent=0 // pred_fallthru
    _
  // Predicated region
  $region22: #{densenet_multi_att_forward.50} parent=0 // pred_check
    _
  $region23: #{densenet_multi_att_forward.50} parent=0 // pred_check_branch
    %55 = sbr.rel (0) target = $region25
  $region24: #{densenet_multi_att_forward.50} parent=0 // pred_region
    _
  $region25: #{densenet_multi_att_forward.50} parent=0 // pred_fallthru
    _

// kernel: densenet_multi_att_forward.42
$region0: #{densenet_multi_att_forward.42}
  #allocation0 [shape = 'u32[]', space=smem, size = 0x4, offset = 0x4, fixed_abs, tag = 'smem constant byte address 0x4 - core index']
  #allocation1 [shape = 'u32[144,128]{1,0:T(1,128)}', space=vmem, size = 0x12000, scoped, tag = 'internal scratch']
  #allocation2 [shape = 'f32[128,128]{1,0:T(8,128)}', space=vmem, size = 0x10000, scoped, tag = 'scratch operand']
  %s0 = inlined_call_operand.vmem [shape: bf16[128,256], index: 0, kind: input, shape index: {}]
  %s1 = inlined_call_operand.vmem [shape: bf16[256,128], index: 1, kind: input, shape index: {}]
  %s2 = inlined_call_operand.vmem [shape: f32[1,128], index: 2, kind: input, shape index: {}]
  %s3 = inlined_call_operand.vmem [shape: f32[128,128], index: 3, kind: output, shape index: {}]
  %s4 = sld [smem:[#allocation0]]
  $region30: #{densenet_multi_att_forward.42} parent=0
    _
  %s6 = ssub.s32 1, %s4
  %s7 = scalar_select 0, %s6, %s4
  // Predicated region
  $region2: #{densenet_multi_att_forward.42} parent=0 // pred_check
    _
  $region3: #{densenet_multi_att_forward.42} parent=0 // pred_check_branch
    %9 = sbr.rel (0) target = $region5
  $region4: #{densenet_multi_att_forward.42} parent=0 // pred_region
    _
  $region5: #{densenet_multi_att_forward.42} parent=0 // pred_fallthru
    _
  // Predicated region
  $region6: #{densenet_multi_att_forward.42} parent=0 // pred_check
    _
  $region7: #{densenet_multi_att_forward.42} parent=0 // pred_check_branch
    %11 = sbr.rel (0) target = $region9
  $region8: #{densenet_multi_att_forward.42} parent=0 // pred_region
    _
  $region9: #{densenet_multi_att_forward.42} parent=0 // pred_fallthru
    _
  // Predicated region
  $region10: #{densenet_multi_att_forward.42} parent=0 // pred_check
    _
  $region11: #{densenet_multi_att_forward.42} parent=0 // pred_check_branch
    %13 = sbr.rel (0) target = $region13
  $region12: #{densenet_multi_att_forward.42} parent=0 // pred_region
    _
  $region13: #{densenet_multi_att_forward.42} parent=0 // pred_fallthru
    _
  %p15 = scmp.eq.s32.totalorder 0, 0
  // Predicated region
  $region14: #{densenet_multi_att_forward.42} parent=0 // pred_check
    %p16 = pneg %p15
  $region15: #{densenet_multi_att_forward.42} parent=0 // pred_check_branch
    %18 = sbr.rel (%p16) target = $region17
  $region16: #{densenet_multi_att_forward.42} parent=0 // pred_region
    %19 = vst [vmem:[#allocation2] sm:$0xff] 0.0
    %20 = vst [vmem:[#allocation2 + $0x8] sm:$0xff] 0.0
    %21 = vst [vmem:[#allocation2 + $0x10] sm:$0xff] 0.0
    %22 = vst [vmem:[#allocation2 + $0x18] sm:$0xff] 0.0
    %23 = vst [vmem:[#allocation2 + $0x20] sm:$0xff] 0.0
    %24 = vst [vmem:[#allocation2 + $0x28] sm:$0xff] 0.0
    %25 = vst [vmem:[#allocation2 + $0x30] sm:$0xff] 0.0
    %26 = vst [vmem:[#allocation2 + $0x38] sm:$0xff] 0.0
    %27 = vst [vmem:[#allocation2 + $0x40] sm:$0xff] 0.0
    %28 = vst [vmem:[#allocation2 + $0x48] sm:$0xff] 0.0
    %29 = vst [vmem:[#allocation2 + $0x50] sm:$0xff] 0.0
    %30 = vst [vmem:[#allocation2 + $0x58] sm:$0xff] 0.0
    %31 = vst [vmem:[#allocation2 + $0x60] sm:$0xff] 0.0
    %32 = vst [vmem:[#allocation2 + $0x68] sm:$0xff] 0.0
    %33 = vst [vmem:[#allocation2 + $0x70] sm:$0xff] 0.0
    %34 = vst [vmem:[#allocation2 + $0x78] sm:$0xff] 0.0
  $region17: #{densenet_multi_att_forward.42} parent=0 // pred_fallthru
    _
  %v35 = vld [vmem:[#allocation2] sm:$0xff]
  %v36 = vld [vmem:[#allocation2 + $0x8] sm:$0xff]
  %v37 = vld [vmem:[#allocation2 + $0x10] sm:$0xff]
  %v38 = vld [vmem:[#allocation2 + $0x18] sm:$0xff]
  %v39 = vld [vmem:[#allocation2 + $0x20] sm:$0xff]
  %v40 = vld [vmem:[#allocation2 + $0x28] sm:$0xff]
  %v41 = vld [vmem:[#allocation2 + $0x30] sm:$0xff]
  %v42 = vld [vmem:[#allocation2 + $0x38] sm:$0xff]
  %v43 = vld [vmem:[#allocation2 + $0x40] sm:$0xff]
  %v44 = vld [vmem:[#allocation2 + $0x48] sm:$0xff]
  %v45 = vld [vmem:[#allocation2 + $0x50] sm:$0xff]
  %v46 = vld [vmem:[#allocation2 + $0x58] sm:$0xff]
  %v47 = vld [vmem:[#allocation2 + $0x60] sm:$0xff]
  %v48 = vld [vmem:[#allocation2 + $0x68] sm:$0xff]
  %v49 = vld [vmem:[#allocation2 + $0x70] sm:$0xff]
  %v50 = vld [vmem:[#allocation2 + $0x78] sm:$0xff]
  %v51 = vld [vmem:[%s0] sm:$0xff]
  %v52 = vld [vmem:[%s0 + $0x8] sm:$0xff]
  %v53 = vld [vmem:[%s0 + $0x10] sm:$0xff]
  %v54 = vld [vmem:[%s0 + $0x18] sm:$0xff]
  %v55 = vld [vmem:[%s0 + $0x20] sm:$0xff]
  %v56 = vld [vmem:[%s0 + $0x28] sm:$0xff]
  %v57 = vld [vmem:[%s0 + $0x30] sm:$0xff]
  %v58 = vld [vmem:[%s0 + $0x38] sm:$0xff]
  %v59 = vld [vmem:[%s0 + $0x40] sm:$0xff]
  %v60 = vld [vmem:[%s0 + $0x48] sm:$0xff]
  %v61 = vld [vmem:[%s0 + $0x50] sm:$0xff]
  %v62 = vld [vmem:[%s0 + $0x58] sm:$0xff]
  %v63 = vld [vmem:[%s0 + $0x60] sm:$0xff]
  %v64 = vld [vmem:[%s0 + $0x68] sm:$0xff]
  %v65 = vld [vmem:[%s0 + $0x70] sm:$0xff]
  %v66 = vld [vmem:[%s0 + $0x78] sm:$0xff]
  %v67 = vld [vmem:[%s1] sm:$0xf]
  %v68 = vld [vmem:[%s1 + $0x4] sm:$0xf]
  %v69 = vld [vmem:[%s1 + $0x8] sm:$0xf]
  %v70 = vld [vmem:[%s1 + $0xc] sm:$0xf]
  %v71 = vld [vmem:[%s1 + $0x10] sm:$0xf]
  %v72 = vld [vmem:[%s1 + $0x14] sm:$0xf]
  %v73 = vld [vmem:[%s1 + $0x18] sm:$0xf]
  %v74 = vld [vmem:[%s1 + $0x1c] sm:$0xf]
  %v75 = vld [vmem:[%s1 + $0x20] sm:$0xf]
  %v76 = vld [vmem:[%s1 + $0x24] sm:$0xf]
  %v77 = vld [vmem:[%s1 + $0x28] sm:$0xf]
  %v78 = vld [vmem:[%s1 + $0x2c] sm:$0xf]
  %v79 = vld [vmem:[%s1 + $0x30] sm:$0xf]
  %v80 = vld [vmem:[%s1 + $0x34] sm:$0xf]
  %v81 = vld [vmem:[%s1 + $0x38] sm:$0xf]
  %v82 = vld [vmem:[%s1 + $0x3c] sm:$0xf]
  %v83 = vld [vmem:[%s1 + $0x40] sm:$0xf]
  %v84 = vld [vmem:[%s1 + $0x44] sm:$0xf]
  %v85 = vld [vmem:[%s1 + $0x48] sm:$0xf]
  %v86 = vld [vmem:[%s1 + $0x4c] sm:$0xf]
  %v87 = vld [vmem:[%s1 + $0x50] sm:$0xf]
  %v88 = vld [vmem:[%s1 + $0x54] sm:$0xf]
  %v89 = vld [vmem:[%s1 + $0x58] sm:$0xf]
  %v90 = vld [vmem:[%s1 + $0x5c] sm:$0xf]
  %v91 = vld [vmem:[%s1 + $0x60] sm:$0xf]
  %v92 = vld [vmem:[%s1 + $0x64] sm:$0xf]
  %v93 = vld [vmem:[%s1 + $0x68] sm:$0xf]
  %v94 = vld [vmem:[%s1 + $0x6c] sm:$0xf]
  %v95 = vld [vmem:[%s1 + $0x70] sm:$0xf]
  %v96 = vld [vmem:[%s1 + $0x74] sm:$0xf]
  %v97 = vld [vmem:[%s1 + $0x78] sm:$0xf]
  %v98 = vld [vmem:[%s1 + $0x7c] sm:$0xf]
  %v115 = vunpack.c.l.b16 %v51
  %v116 = vunpack.c.h.b16 %v51
  %v117 = vunpack.c.l.b16 %v52
  %v118 = vunpack.c.h.b16 %v52
  %v119 = vunpack.c.l.b16 %v53
  %v120 = vunpack.c.h.b16 %v53
  %v121 = vunpack.c.l.b16 %v54
  %v122 = vunpack.c.h.b16 %v54
  %v123 = vunpack.c.l.b16 %v55
  %v124 = vunpack.c.h.b16 %v55
  %v125 = vunpack.c.l.b16 %v56
  %v126 = vunpack.c.h.b16 %v56
  %v127 = vunpack.c.l.b16 %v57
  %v128 = vunpack.c.h.b16 %v57
  %v129 = vunpack.c.l.b16 %v58
  %v130 = vunpack.c.h.b16 %v58
  %v131 = vunpack.c.l.b16 %v59
  %v132 = vunpack.c.h.b16 %v59
  %v133 = vunpack.c.l.b16 %v60
  %v134 = vunpack.c.h.b16 %v60
  %v135 = vunpack.c.l.b16 %v61
  %v136 = vunpack.c.h.b16 %v61
  %v137 = vunpack.c.l.b16 %v62
  %v138 = vunpack.c.h.b16 %v62
  %v139 = vunpack.c.l.b16 %v63
  %v140 = vunpack.c.h.b16 %v63
  %v141 = vunpack.c.l.b16 %v64
  %v142 = vunpack.c.h.b16 %v64
  %v143 = vunpack.c.l.b16 %v65
  %v144 = vunpack.c.h.b16 %v65
  %v145 = vunpack.c.l.b16 %v66
  %v146 = vunpack.c.h.b16 %v66
  %v147 = vpack.c.b16 %v117, %v115
  %v148 = vpack.c.b16 %v118, %v116
  %v149 = vpack.c.b16 %v121, %v119
  %v150 = vpack.c.b16 %v122, %v120
  %v151 = vpack.c.b16 %v125, %v123
  %v152 = vpack.c.b16 %v126, %v124
  %v153 = vpack.c.b16 %v129, %v127
  %v154 = vpack.c.b16 %v130, %v128
  %v155 = vpack.c.b16 %v133, %v131
  %v156 = vpack.c.b16 %v134, %v132
  %v157 = vpack.c.b16 %v137, %v135
  %v158 = vpack.c.b16 %v138, %v136
  %v159 = vpack.c.b16 %v141, %v139
  %v160 = vpack.c.b16 %v142, %v140
  %v161 = vpack.c.b16 %v145, %v143
  %v162 = vpack.c.b16 %v146, %v144
  %v211 = vunpack.c.l.b16 %v67
  %v212 = vunpack.c.l.b16 %v68
  %v213 = vunpack.c.l.b16 %v69
  %v214 = vunpack.c.l.b16 %v70
  %v215 = vunpack.c.l.b16 %v71
  %v216 = vunpack.c.l.b16 %v72
  %v217 = vunpack.c.l.b16 %v73
  %v218 = vunpack.c.l.b16 %v74
  %v219 = vunpack.c.l.b16 %v75
  %v220 = vunpack.c.l.b16 %v76
  %v221 = vunpack.c.l.b16 %v77
  %v222 = vunpack.c.l.b16 %v78
  %v223 = vunpack.c.l.b16 %v79
  %v224 = vunpack.c.l.b16 %v80
  %v225 = vunpack.c.l.b16 %v81
  %v226 = vunpack.c.l.b16 %v82
  %v227 = vunpack.c.l.b16 %v83
  %v228 = vunpack.c.l.b16 %v84
  %v229 = vunpack.c.l.b16 %v85
  %v230 = vunpack.c.l.b16 %v86
  %v231 = vunpack.c.l.b16 %v87
  %v232 = vunpack.c.l.b16 %v88
  %v233 = vunpack.c.l.b16 %v89
  %v234 = vunpack.c.l.b16 %v90
  %v235 = vunpack.c.l.b16 %v91
  %v236 = vunpack.c.l.b16 %v92
  %v237 = vunpack.c.l.b16 %v93
  %v238 = vunpack.c.l.b16 %v94
  %v239 = vunpack.c.l.b16 %v95
  %v240 = vunpack.c.l.b16 %v96
  %v241 = vunpack.c.l.b16 %v97
  %v242 = vunpack.c.l.b16 %v98
  %v243 = vpack.c.b16 %v212, %v211
  %v244 = vpack.c.b16 %v214, %v213
  %v245 = vpack.c.b16 %v216, %v215
  %v246 = vpack.c.b16 %v218, %v217
  %v247 = vpack.c.b16 %v220, %v219
  %v248 = vpack.c.b16 %v222, %v221
  %v249 = vpack.c.b16 %v224, %v223
  %v250 = vpack.c.b16 %v226, %v225
  %v251 = vpack.c.b16 %v228, %v227
  %v252 = vpack.c.b16 %v230, %v229
  %v253 = vpack.c.b16 %v232, %v231
  %v254 = vpack.c.b16 %v234, %v233
  %v255 = vpack.c.b16 %v236, %v235
  %v256 = vpack.c.b16 %v238, %v237
  %v257 = vpack.c.b16 %v240, %v239
  %v258 = vpack.c.b16 %v242, %v241
  %275 = vmatprep.subr.bf16.mxu0 0
  %276 = vmatpush1.bf16.msra.mxu0 %v243
  %277 = vmatprep.subr.bf16.mxu0 0
  %278 = vmatpush1.bf16.msra.mxu0 %v244
  %279 = vmatprep.subr.bf16.mxu0 0
  %280 = vmatpush1.bf16.msra.mxu0 %v245
  %281 = vmatprep.subr.bf16.mxu0 0
  %282 = vmatpush1.bf16.msra.mxu0 %v246
  %283 = vmatprep.subr.bf16.mxu0 0
  %284 = vmatpush1.bf16.msra.mxu0 %v247
  %285 = vmatprep.subr.bf16.mxu0 0
  %286 = vmatpush1.bf16.msra.mxu0 %v248
  %287 = vmatprep.subr.bf16.mxu0 0
  %288 = vmatpush1.bf16.msra.mxu0 %v249
  %289 = vmatprep.subr.bf16.mxu0 0
  %290 = vmatpush1.bf16.msra.mxu0 %v250
  %291 = vmatprep.subr.bf16.mxu0 0
  %292 = vmatpush1.bf16.msra.mxu0 %v251
  %293 = vmatprep.subr.bf16.mxu0 0
  %294 = vmatpush1.bf16.msra.mxu0 %v252
  %295 = vmatprep.subr.bf16.mxu0 0
  %296 = vmatpush1.bf16.msra.mxu0 %v253
  %297 = vmatprep.subr.bf16.mxu0 0
  %298 = vmatpush1.bf16.msra.mxu0 %v254
  %299 = vmatprep.subr.bf16.mxu0 0
  %300 = vmatpush1.bf16.msra.mxu0 %v255
  %301 = vmatprep.subr.bf16.mxu0 0
  %302 = vmatpush1.bf16.msra.mxu0 %v256
  %303 = vmatprep.subr.bf16.mxu0 0
  %304 = vmatpush1.bf16.msra.mxu0 %v257
  %305 = vmatprep.subr.bf16.mxu0 0
  %306 = vmatpush1.bf16.msra.mxu0 %v258
  %307 = vmatprep.mubr.bf16.mxu0 %v148
  %308 = vmatmul.mubr.bf16.gmra.mrb[0].mxu0 %v147
  %v309 = vpop.f32.mrb[0].mxu0
  %v310 = vadd.f32 0.0, %v309
  %v311 = vpop.f32.mrb[0].mxu0
  %v312 = vpop.f32.mrb[0].mxu0
  %v313 = vadd.f32 0.0, %v312
  %v314 = vpop.f32.mrb[0].mxu0
  %315 = vmatprep.mubr.bf16.mxu0 %v150
  %316 = vmatmul.mubr.bf16.gmra.mrb[0].mxu0 %v149
  %v317 = vpop.f32.mrb[0].mxu0
  %v318 = vadd.f32 0.0, %v317
  %v319 = vpop.f32.mrb[0].mxu0
  %v320 = vpop.f32.mrb[0].mxu0
  %v321 = vadd.f32 0.0, %v320
  %v322 = vpop.f32.mrb[0].mxu0
  %323 = vmatprep.mubr.bf16.mxu0 %v152
  %324 = vmatmul.mubr.bf16.gmra.mrb[0].mxu0 %v151
  %v325 = vpop.f32.mrb[0].mxu0
  %v326 = vadd.f32 0.0, %v325
  %v327 = vpop.f32.mrb[0].mxu0
  %v328 = vpop.f32.mrb[0].mxu0
  %v329 = vadd.f32 0.0, %v328
  %v330 = vpop.f32.mrb[0].mxu0
  %331 = vmatprep.mubr.bf16.mxu0 %v154
  %332 = vmatmul.mubr.bf16.gmra.mrb[0].mxu0 %v153
  %v333 = vpop.f32.mrb[0].mxu0
  %v334 = vadd.f32 0.0, %v333
  %v335 = vpop.f32.mrb[0].mxu0
  %v336 = vpop.f32.mrb[0].mxu0
  %v337 = vadd.f32 0.0, %v336
  %v338 = vpop.f32.mrb[0].mxu0
  %339 = vmatprep.mubr.bf16.mxu0 %v156
  %340 = vmatmul.mubr.bf16.gmra.mrb[0].mxu0 %v155
  %v341 = vpop.f32.mrb[0].mxu0
  %v342 = vadd.f32 0.0, %v341
  %v343 = vpop.f32.mrb[0].mxu0
  %v344 = vpop.f32.mrb[0].mxu0
  %v345 = vadd.f32 0.0, %v344
  %v346 = vpop.f32.mrb[0].mxu0
  %347 = vmatprep.mubr.bf16.mxu0 %v158
  %348 = vmatmul.mubr.bf16.gmra.mrb[0].mxu0 %v157
  %v349 = vpop.f32.mrb[0].mxu0
  %v350 = vadd.f32 0.0, %v349
  %v351 = vpop.f32.mrb[0].mxu0
  %v352 = vpop.f32.mrb[0].mxu0
  %v353 = vadd.f32 0.0, %v352
  %v354 = vpop.f32.mrb[0].mxu0
  %355 = vmatprep.mubr.bf16.mxu0 %v160
  %356 = vmatmul.mubr.bf16.gmra.mrb[0].mxu0 %v159
  %v357 = vpop.f32.mrb[0].mxu0
  %v358 = vadd.f32 0.0, %v357
  %v359 = vpop.f32.mrb[0].mxu0
  %v360 = vpop.f32.mrb[0].mxu0
  %v361 = vadd.f32 0.0, %v360
  %v362 = vpop.f32.mrb[0].mxu0
  %363 = vmatprep.mubr.bf16.mxu0 %v162
  %364 = vmatmul.mubr.bf16.gmra.mrb[0].mxu0 %v161
  %v365 = vpop.f32.mrb[0].mxu0
  %v366 = vadd.f32 0.0, %v365
  %v367 = vpop.f32.mrb[0].mxu0
  %v368 = vpop.f32.mrb[0].mxu0
  %v369 = vadd.f32 0.0, %v368
  %v370 = vpop.f32.mrb[0].mxu0
  %371 = vdwg.mxu0
  %v372 = vadd.f32 %v35, %v310
  %v373 = vadd.f32 %v36, %v313
  %v374 = vadd.f32 %v37, %v318
  %v375 = vadd.f32 %v38, %v321
  %v376 = vadd.f32 %v39, %v326
  %v377 = vadd.f32 %v40, %v329
  %v378 = vadd.f32 %v41, %v334
  %v379 = vadd.f32 %v42, %v337
  %v380 = vadd.f32 %v43, %v342
  %v381 = vadd.f32 %v44, %v345
  %v382 = vadd.f32 %v45, %v350
  %v383 = vadd.f32 %v46, %v353
  %v384 = vadd.f32 %v47, %v358
  %v385 = vadd.f32 %v48, %v361
  %v386 = vadd.f32 %v49, %v366
  %v387 = vadd.f32 %v50, %v369
  %388 = vst [vmem:[#allocation2] sm:$0xff] %v372
  %389 = vst [vmem:[#allocation2 + $0x8] sm:$0xff] %v373
  %390 = vst [vmem:[#allocation2 + $0x10] sm:$0xff] %v374
  %391 = vst [vmem:[#allocation2 + $0x18] sm:$0xff] %v375
  %392 = vst [vmem:[#allocation2 + $0x20] sm:$0xff] %v376
  %393 = vst [vmem:[#allocation2 + $0x28] sm:$0xff] %v377
  %394 = vst [vmem:[#allocation2 + $0x30] sm:$0xff] %v378
  %395 = vst [vmem:[#allocation2 + $0x38] sm:$0xff] %v379
  %396 = vst [vmem:[#allocation2 + $0x40] sm:$0xff] %v380
  %397 = vst [vmem:[#allocation2 + $0x48] sm:$0xff] %v381
  %398 = vst [vmem:[#allocation2 + $0x50] sm:$0xff] %v382
  %399 = vst [vmem:[#allocation2 + $0x58] sm:$0xff] %v383
  %400 = vst [vmem:[#allocation2 + $0x60] sm:$0xff] %v384
  %401 = vst [vmem:[#allocation2 + $0x68] sm:$0xff] %v385
  %402 = vst [vmem:[#allocation2 + $0x70] sm:$0xff] %v386
  %403 = vst [vmem:[#allocation2 + $0x78] sm:$0xff] %v387
  // Predicated region
  $region18: #{densenet_multi_att_forward.42} parent=0 // pred_check
    %p404 = pneg %p15
  $region19: #{densenet_multi_att_forward.42} parent=0 // pred_check_branch
    %406 = sbr.rel (%p404) target = $region21
  $region20: #{densenet_multi_att_forward.42} parent=0 // pred_region
    %v407 = vld [vmem:[#allocation2] sm:$0xff]
    %v408 = vld [vmem:[#allocation2 + $0x8] sm:$0xff]
    %v409 = vld [vmem:[#allocation2 + $0x10] sm:$0xff]
    %v410 = vld [vmem:[#allocation2 + $0x18] sm:$0xff]
    %v411 = vld [vmem:[#allocation2 + $0x20] sm:$0xff]
    %v412 = vld [vmem:[#allocation2 + $0x28] sm:$0xff]
    %v413 = vld [vmem:[#allocation2 + $0x30] sm:$0xff]
    %v414 = vld [vmem:[#allocation2 + $0x38] sm:$0xff]
    %v415 = vld [vmem:[#allocation2 + $0x40] sm:$0xff]
    %v416 = vld [vmem:[#allocation2 + $0x48] sm:$0xff]
    %v417 = vld [vmem:[#allocation2 + $0x50] sm:$0xff]
    %v418 = vld [vmem:[#allocation2 + $0x58] sm:$0xff]
    %v419 = vld [vmem:[#allocation2 + $0x60] sm:$0xff]
    %v420 = vld [vmem:[#allocation2 + $0x68] sm:$0xff]
    %v421 = vld [vmem:[#allocation2 + $0x70] sm:$0xff]
    %v422 = vld [vmem:[#allocation2 + $0x78] sm:$0xff]
    %v423 = vld [vmem:[%s2] sm:$0x1]
    %v425 = vlaneseq
    %v426 = vshrl.u32 %v425, 7
    %v427 = vsub.s32 0, %v426
    %v428 = vrot.slane %v423, %v427
    %v430 = vadd.f32 %v407, %v428
    %v431 = vadd.f32 %v408, %v428
    %v432 = vadd.f32 %v409, %v428
    %v433 = vadd.f32 %v410, %v428
    %v434 = vadd.f32 %v411, %v428
    %v435 = vadd.f32 %v412, %v428
    %v436 = vadd.f32 %v413, %v428
    %v437 = vadd.f32 %v414, %v428
    %v438 = vadd.f32 %v415, %v428
    %v439 = vadd.f32 %v416, %v428
    %v440 = vadd.f32 %v417, %v428
    %v441 = vadd.f32 %v418, %v428
    %v442 = vadd.f32 %v419, %v428
    %v443 = vadd.f32 %v420, %v428
    %v444 = vadd.f32 %v421, %v428
    %v445 = vadd.f32 %v422, %v428
    %446 = vst [vmem:[%s3] sm:$0xff] %v430
    %447 = vst [vmem:[%s3 + $0x8] sm:$0xff] %v431
    %448 = vst [vmem:[%s3 + $0x10] sm:$0xff] %v432
    %449 = vst [vmem:[%s3 + $0x18] sm:$0xff] %v433
    %450 = vst [vmem:[%s3 + $0x20] sm:$0xff] %v434
    %451 = vst [vmem:[%s3 + $0x28] sm:$0xff] %v435
    %452 = vst [vmem:[%s3 + $0x30] sm:$0xff] %v436
    %453 = vst [vmem:[%s3 + $0x38] sm:$0xff] %v437
    %454 = vst [vmem:[%s3 + $0x40] sm:$0xff] %v438
    %455 = vst [vmem:[%s3 + $0x48] sm:$0xff] %v439
    %456 = vst [vmem:[%s3 + $0x50] sm:$0xff] %v440
    %457 = vst [vmem:[%s3 + $0x58] sm:$0xff] %v441
    %458 = vst [vmem:[%s3 + $0x60] sm:$0xff] %v442
    %459 = vst [vmem:[%s3 + $0x68] sm:$0xff] %v443
    %460 = vst [vmem:[%s3 + $0x70] sm:$0xff] %v444
    %461 = vst [vmem:[%s3 + $0x78] sm:$0xff] %v445
  $region21: #{densenet_multi_att_forward.42} parent=0 // pred_fallthru
    _
  // Predicated region
  $region22: #{densenet_multi_att_forward.42} parent=0 // pred_check
    _
  $region23: #{densenet_multi_att_forward.42} parent=0 // pred_check_branch
    %463 = sbr.rel (0) target = $region25
  $region24: #{densenet_multi_att_forward.42} parent=0 // pred_region
    _
  $region25: #{densenet_multi_att_forward.42} parent=0 // pred_fallthru
    _
  // Predicated region
  $region26: #{densenet_multi_att_forward.42} parent=0 // pred_check
    _
  $region27: #{densenet_multi_att_forward.42} parent=0 // pred_check_branch
    %465 = sbr.rel (0) target = $region29
  $region28: #{densenet_multi_att_forward.42} parent=0 // pred_region
    _
  $region29: #{densenet_multi_att_forward.42} parent=0 // pred_fallthru
    _

// kernel: densenet_multi_att_forward.53
$region0: #{densenet_multi_att_forward.53}
  #allocation0 [shape = 'u32[]', space=smem, size = 0x4, offset = 0x4, fixed_abs, tag = 'smem constant byte address 0x4 - core index']
  #allocation1 [shape = 'u32[144,128]{1,0:T(1,128)}', space=vmem, size = 0x12000, scoped, tag = 'internal scratch']
  %s0 = inlined_call_operand.vmem [shape: f32[32,128], index: 0, kind: input, shape index: {}]
  %s1 = inlined_call_operand.vmem [shape: f32[1,128], index: 1, kind: input, shape index: {}]
  %s2 = inlined_call_operand.vmem [shape: f32[1,128], index: 2, kind: input, shape index: {}]
  %s3 = inlined_call_operand.vmem [shape: f32[32,128], index: 3, kind: output, shape index: {}]
  %s4 = sld [smem:[#allocation0]]
  $region22: #{densenet_multi_att_forward.53} parent=0
    _
  %s6 = ssub.s32 1, %s4
  %s7 = scalar_select 0, %s6, %s4
  // Predicated region
  $region2: #{densenet_multi_att_forward.53} parent=0 // pred_check
    _
  $region3: #{densenet_multi_att_forward.53} parent=0 // pred_check_branch
    %9 = sbr.rel (0) target = $region5
  $region4: #{densenet_multi_att_forward.53} parent=0 // pred_region
    _
  $region5: #{densenet_multi_att_forward.53} parent=0 // pred_fallthru
    _
  // Predicated region
  $region6: #{densenet_multi_att_forward.53} parent=0 // pred_check
    _
  $region7: #{densenet_multi_att_forward.53} parent=0 // pred_check_branch
    %11 = sbr.rel (0) target = $region9
  $region8: #{densenet_multi_att_forward.53} parent=0 // pred_region
    _
  $region9: #{densenet_multi_att_forward.53} parent=0 // pred_fallthru
    _
  // Predicated region
  $region10: #{densenet_multi_att_forward.53} parent=0 // pred_check
    _
  $region11: #{densenet_multi_att_forward.53} parent=0 // pred_check_branch
    %13 = sbr.rel (0) target = $region13
  $region12: #{densenet_multi_att_forward.53} parent=0 // pred_region
    _
  $region13: #{densenet_multi_att_forward.53} parent=0 // pred_fallthru
    _
  %v14 = vld [vmem:[%s0] sm:$0xff]
  %v15 = vld [vmem:[%s0 + $0x8] sm:$0xff]
  %v16 = vld [vmem:[%s0 + $0x10] sm:$0xff]
  %v17 = vld [vmem:[%s0 + $0x18] sm:$0xff]
  %v18 = vld [vmem:[%s1] sm:$0x1]
  %v20 = vlaneseq
  %v21 = vshrl.u32 %v20, 7
  %v22 = vsub.s32 0, %v21
  %v23 = vrot.slane %v18, %v22
  %v25 = vmul.f32 %v14, %v23
  %v26 = vmul.f32 %v15, %v23
  %v27 = vmul.f32 %v16, %v23
  %v28 = vmul.f32 %v17, %v23
  %v29 = vld [vmem:[%s2] sm:$0x1]
  %v31 = vlaneseq
  %v32 = vshrl.u32 %v31, 7
  %v33 = vsub.s32 0, %v32
  %v34 = vrot.slane %v29, %v33
  %v36 = vadd.f32 %v25, %v34
  %v37 = vadd.f32 %v26, %v34
  %v38 = vadd.f32 %v27, %v34
  %v39 = vadd.f32 %v28, %v34
  %v40 = vmax.f32 %v36, 0.0
  %v41 = vmax.f32 %v37, 0.0
  %v42 = vmax.f32 %v38, 0.0
  %v43 = vmax.f32 %v39, 0.0
  %44 = vst [vmem:[%s3] sm:$0xff] %v40
  %45 = vst [vmem:[%s3 + $0x8] sm:$0xff] %v41
  %46 = vst [vmem:[%s3 + $0x10] sm:$0xff] %v42
  %47 = vst [vmem:[%s3 + $0x18] sm:$0xff] %v43
  // Predicated region
  $region14: #{densenet_multi_att_forward.53} parent=0 // pred_check
    _
  $region15: #{densenet_multi_att_forward.53} parent=0 // pred_check_branch
    %49 = sbr.rel (0) target = $region17
  $region16: #{densenet_multi_att_forward.53} parent=0 // pred_region
    _
  $region17: #{densenet_multi_att_forward.53} parent=0 // pred_fallthru
    _
  // Predicated region
  $region18: #{densenet_multi_att_forward.53} parent=0 // pred_check
    _
  $region19: #{densenet_multi_att_forward.53} parent=0 // pred_check_branch
    %51 = sbr.rel (0) target = $region21
  $region20: #{densenet_multi_att_forward.53} parent=0 // pred_region
    _
  $region21: #{densenet_multi_att_forward.53} parent=0 // pred_fallthru
    _

// kernel: densenet_multi_att_forward.51
$region0: #{densenet_multi_att_forward.51}
  #allocation0 [shape = 'u32[]', space=smem, size = 0x4, offset = 0x4, fixed_abs, tag = 'smem constant byte address 0x4 - core index']
  #allocation1 [shape = 'u32[144,128]{1,0:T(1,128)}', space=vmem, size = 0x12000, scoped, tag = 'internal scratch']
  #allocation2 [shape = 'f32[32,128]{1,0:T(8,128)}', space=vmem, size = 0x4000, scoped, tag = 'scratch operand']
  %s0 = inlined_call_operand.vmem [shape: f32[32,128], index: 0, kind: input, shape index: {}]
  %s1 = inlined_call_operand.vmem [shape: f32[1,128], index: 1, kind: input, shape index: {}]
  %s2 = inlined_call_operand.vmem [shape: f32[1,128], index: 2, kind: input, shape index: {}]
  %s3 = inlined_call_operand.vmem [shape: bf16[128,128], index: 3, kind: input, shape index: {}]
  %s4 = inlined_call_operand.vmem [shape: f32[1,128], index: 4, kind: input, shape index: {}]
  %s5 = inlined_call_operand.vmem [shape: f32[32,128], index: 5, kind: output, shape index: {}]
  %s6 = sld [smem:[#allocation0]]
  $region38: #{densenet_multi_att_forward.51} parent=0
    _
  %s8 = ssub.s32 1, %s6
  %s9 = scalar_select 0, %s8, %s6
  // Predicated region
  $region2: #{densenet_multi_att_forward.51} parent=0 // pred_check
    _
  $region3: #{densenet_multi_att_forward.51} parent=0 // pred_check_branch
    %11 = sbr.rel (0) target = $region5
  $region4: #{densenet_multi_att_forward.51} parent=0 // pred_region
    _
  $region5: #{densenet_multi_att_forward.51} parent=0 // pred_fallthru
    _
  // Predicated region
  $region6: #{densenet_multi_att_forward.51} parent=0 // pred_check
    _
  $region7: #{densenet_multi_att_forward.51} parent=0 // pred_check_branch
    %13 = sbr.rel (0) target = $region9
  $region8: #{densenet_multi_att_forward.51} parent=0 // pred_region
    _
  $region9: #{densenet_multi_att_forward.51} parent=0 // pred_fallthru
    _
  // Predicated region
  $region10: #{densenet_multi_att_forward.51} parent=0 // pred_check
    _
  $region11: #{densenet_multi_att_forward.51} parent=0 // pred_check_branch
    %15 = sbr.rel (0) target = $region13
  $region12: #{densenet_multi_att_forward.51} parent=0 // pred_region
    _
  $region13: #{densenet_multi_att_forward.51} parent=0 // pred_fallthru
    _
  // Predicated region
  $region14: #{densenet_multi_att_forward.51} parent=0 // pred_check
    _
  $region15: #{densenet_multi_att_forward.51} parent=0 // pred_check_branch
    %17 = sbr.rel (0) target = $region17
  $region16: #{densenet_multi_att_forward.51} parent=0 // pred_region
    _
  $region17: #{densenet_multi_att_forward.51} parent=0 // pred_fallthru
    _
  // Predicated region
  $region18: #{densenet_multi_att_forward.51} parent=0 // pred_check
    _
  $region19: #{densenet_multi_att_forward.51} parent=0 // pred_check_branch
    %19 = sbr.rel (0) target = $region21
  $region20: #{densenet_multi_att_forward.51} parent=0 // pred_region
    _
  $region21: #{densenet_multi_att_forward.51} parent=0 // pred_fallthru
    _
  %p21 = scmp.eq.s32.totalorder 0, 0
  // Predicated region
  $region22: #{densenet_multi_att_forward.51} parent=0 // pred_check
    %p22 = pneg %p21
  $region23: #{densenet_multi_att_forward.51} parent=0 // pred_check_branch
    %24 = sbr.rel (%p22) target = $region25
  $region24: #{densenet_multi_att_forward.51} parent=0 // pred_region
    %25 = vst [vmem:[#allocation2] sm:$0xff] 0.0
    %26 = vst [vmem:[#allocation2 + $0x8] sm:$0xff] 0.0
    %27 = vst [vmem:[#allocation2 + $0x10] sm:$0xff] 0.0
    %28 = vst [vmem:[#allocation2 + $0x18] sm:$0xff] 0.0
  $region25: #{densenet_multi_att_forward.51} parent=0 // pred_fallthru
    _
  %v29 = vld [vmem:[%s0] sm:$0xff]
  %v30 = vld [vmem:[%s0 + $0x8] sm:$0xff]
  %v31 = vld [vmem:[%s0 + $0x10] sm:$0xff]
  %v32 = vld [vmem:[%s0 + $0x18] sm:$0xff]
  %v33 = vld [vmem:[%s1] sm:$0x1]
  %v35 = vlaneseq
  %v36 = vshrl.u32 %v35, 7
  %v37 = vsub.s32 0, %v36
  %v38 = vrot.slane %v33, %v37
  %v40 = vmul.f32 %v29, %v38
  %v41 = vmul.f32 %v30, %v38
  %v42 = vmul.f32 %v31, %v38
  %v43 = vmul.f32 %v32, %v38
  %v44 = vld [vmem:[%s2] sm:$0x1]
  %v46 = vlaneseq
  %v47 = vshrl.u32 %v46, 7
  %v48 = vsub.s32 0, %v47
  %v49 = vrot.slane %v44, %v48
  %v51 = vadd.f32 %v40, %v49
  %v52 = vadd.f32 %v41, %v49
  %v53 = vadd.f32 %v42, %v49
  %v54 = vadd.f32 %v43, %v49
  %v55 = vmax.f32 %v51, 0.0
  %v56 = vmax.f32 %v52, 0.0
  %v57 = vmax.f32 %v53, 0.0
  %v58 = vmax.f32 %v54, 0.0
  %v59 = vld [vmem:[#allocation2] sm:$0xff]
  %v60 = vld [vmem:[#allocation2 + $0x8] sm:$0xff]
  %v61 = vld [vmem:[#allocation2 + $0x10] sm:$0xff]
  %v62 = vld [vmem:[#allocation2 + $0x18] sm:$0xff]
  %v63 = vpack.c.bf16 %v56, %v55
  %v64 = vpack.c.bf16 %v58, %v57
  %v65 = vld [vmem:[%s3] sm:$0xf]
  %v66 = vld [vmem:[%s3 + $0x4] sm:$0xf]
  %v67 = vld [vmem:[%s3 + $0x8] sm:$0xf]
  %v68 = vld [vmem:[%s3 + $0xc] sm:$0xf]
  %v69 = vld [vmem:[%s3 + $0x10] sm:$0xf]
  %v70 = vld [vmem:[%s3 + $0x14] sm:$0xf]
  %v71 = vld [vmem:[%s3 + $0x18] sm:$0xf]
  %v72 = vld [vmem:[%s3 + $0x1c] sm:$0xf]
  %v73 = vld [vmem:[%s3 + $0x20] sm:$0xf]
  %v74 = vld [vmem:[%s3 + $0x24] sm:$0xf]
  %v75 = vld [vmem:[%s3 + $0x28] sm:$0xf]
  %v76 = vld [vmem:[%s3 + $0x2c] sm:$0xf]
  %v77 = vld [vmem:[%s3 + $0x30] sm:$0xf]
  %v78 = vld [vmem:[%s3 + $0x34] sm:$0xf]
  %v79 = vld [vmem:[%s3 + $0x38] sm:$0xf]
  %v80 = vld [vmem:[%s3 + $0x3c] sm:$0xf]
  %v97 = vunpack.c.l.b16 %v65
  %v98 = vunpack.c.l.b16 %v66
  %v99 = vunpack.c.l.b16 %v67
  %v100 = vunpack.c.l.b16 %v68
  %v101 = vunpack.c.l.b16 %v69
  %v102 = vunpack.c.l.b16 %v70
  %v103 = vunpack.c.l.b16 %v71
  %v104 = vunpack.c.l.b16 %v72
  %v105 = vunpack.c.l.b16 %v73
  %v106 = vunpack.c.l.b16 %v74
  %v107 = vunpack.c.l.b16 %v75
  %v108 = vunpack.c.l.b16 %v76
  %v109 = vunpack.c.l.b16 %v77
  %v110 = vunpack.c.l.b16 %v78
  %v111 = vunpack.c.l.b16 %v79
  %v112 = vunpack.c.l.b16 %v80
  %v113 = vpack.c.b16 %v98, %v97
  %v114 = vpack.c.b16 %v100, %v99
  %v115 = vpack.c.b16 %v102, %v101
  %v116 = vpack.c.b16 %v104, %v103
  %v117 = vpack.c.b16 %v106, %v105
  %v118 = vpack.c.b16 %v108, %v107
  %v119 = vpack.c.b16 %v110, %v109
  %v120 = vpack.c.b16 %v112, %v111
  %129 = vmatprep.subr.bf16.mxu0 0
  %130 = vmatpush1.bf16.msra.mxu0 %v113
  %131 = vmatprep.subr.bf16.mxu0 0
  %132 = vmatpush1.bf16.msra.mxu0 %v114
  %133 = vmatprep.subr.bf16.mxu0 0
  %134 = vmatpush1.bf16.msra.mxu0 %v115
  %135 = vmatprep.subr.bf16.mxu0 0
  %136 = vmatpush1.bf16.msra.mxu0 %v116
  %137 = vmatprep.subr.bf16.mxu0 0
  %138 = vmatpush1.bf16.msra.mxu0 %v117
  %139 = vmatprep.subr.bf16.mxu0 0
  %140 = vmatpush1.bf16.msra.mxu0 %v118
  %141 = vmatprep.subr.bf16.mxu0 0
  %142 = vmatpush1.bf16.msra.mxu0 %v119
  %143 = vmatprep.subr.bf16.mxu0 0
  %144 = vmatpush1.bf16.msra.mxu0 %v120
  %145 = vmatprep.subr.bf16.mxu0 0
  %146 = vmatpush1.bf16.msra.mxu0 0
  %147 = vmatprep.subr.bf16.mxu0 0
  %148 = vmatpush1.bf16.msra.mxu0 0
  %149 = vmatprep.subr.bf16.mxu0 0
  %150 = vmatpush1.bf16.msra.mxu0 0
  %151 = vmatprep.subr.bf16.mxu0 0
  %152 = vmatpush1.bf16.msra.mxu0 0
  %153 = vmatprep.subr.bf16.mxu0 0
  %154 = vmatpush1.bf16.msra.mxu0 0
  %155 = vmatprep.subr.bf16.mxu0 0
  %156 = vmatpush1.bf16.msra.mxu0 0
  %157 = vmatprep.subr.bf16.mxu0 0
  %158 = vmatpush1.bf16.msra.mxu0 0
  %159 = vmatprep.subr.bf16.mxu0 0
  %160 = vmatpush1.bf16.msra.mxu0 0
  %161 = vmatprep.mubr.bf16.mxu0 0
  %162 = vmatmul.mubr.bf16.gmra.mrb[0].mxu0 %v63
  %v163 = vpop.f32.mrb[0].mxu0
  %v164 = vadd.f32 0.0, %v163
  %v165 = vpop.f32.mrb[0].mxu0
  %v166 = vpop.f32.mrb[0].mxu0
  %v167 = vadd.f32 0.0, %v166
  %v168 = vpop.f32.mrb[0].mxu0
  %169 = vmatprep.mubr.bf16.mxu0 0
  %170 = vmatmul.mubr.bf16.gmra.mrb[0].mxu0 %v64
  %v171 = vpop.f32.mrb[0].mxu0
  %v172 = vadd.f32 0.0, %v171
  %v173 = vpop.f32.mrb[0].mxu0
  %v174 = vpop.f32.mrb[0].mxu0
  %v175 = vadd.f32 0.0, %v174
  %v176 = vpop.f32.mrb[0].mxu0
  %177 = vdwg.mxu0
  %v178 = vadd.f32 %v59, %v164
  %v179 = vadd.f32 %v60, %v167
  %v180 = vadd.f32 %v61, %v172
  %v181 = vadd.f32 %v62, %v175
  %182 = vst [vmem:[#allocation2] sm:$0xff] %v178
  %183 = vst [vmem:[#allocation2 + $0x8] sm:$0xff] %v179
  %184 = vst [vmem:[#allocation2 + $0x10] sm:$0xff] %v180
  %185 = vst [vmem:[#allocation2 + $0x18] sm:$0xff] %v181
  // Predicated region
  $region26: #{densenet_multi_att_forward.51} parent=0 // pred_check
    %p186 = pneg %p21
  $region27: #{densenet_multi_att_forward.51} parent=0 // pred_check_branch
    %188 = sbr.rel (%p186) target = $region29
  $region28: #{densenet_multi_att_forward.51} parent=0 // pred_region
    %v189 = vld [vmem:[#allocation2] sm:$0xff]
    %v190 = vld [vmem:[#allocation2 + $0x8] sm:$0xff]
    %v191 = vld [vmem:[#allocation2 + $0x10] sm:$0xff]
    %v192 = vld [vmem:[#allocation2 + $0x18] sm:$0xff]
    %v193 = vld [vmem:[%s4] sm:$0x1]
    %v195 = vlaneseq
    %v196 = vshrl.u32 %v195, 7
    %v197 = vsub.s32 0, %v196
    %v198 = vrot.slane %v193, %v197
    %v200 = vadd.f32 %v189, %v198
    %v201 = vadd.f32 %v190, %v198
    %v202 = vadd.f32 %v191, %v198
    %v203 = vadd.f32 %v192, %v198
    %204 = vst [vmem:[%s5] sm:$0xff] %v200
    %205 = vst [vmem:[%s5 + $0x8] sm:$0xff] %v201
    %206 = vst [vmem:[%s5 + $0x10] sm:$0xff] %v202
    %207 = vst [vmem:[%s5 + $0x18] sm:$0xff] %v203
  $region29: #{densenet_multi_att_forward.51} parent=0 // pred_fallthru
    _
  // Predicated region
  $region30: #{densenet_multi_att_forward.51} parent=0 // pred_check
    _
  $region31: #{densenet_multi_att_forward.51} parent=0 // pred_check_branch
    %209 = sbr.rel (0) target = $region33
  $region32: #{densenet_multi_att_forward.51} parent=0 // pred_region
    _
  $region33: #{densenet_multi_att_forward.51} parent=0 // pred_fallthru
    _
  // Predicated region
  $region34: #{densenet_multi_att_forward.51} parent=0 // pred_check
    _
  $region35: #{densenet_multi_att_forward.51} parent=0 // pred_check_branch
    %211 = sbr.rel (0) target = $region37
  $region36: #{densenet_multi_att_forward.51} parent=0 // pred_region
    _
  $region37: #{densenet_multi_att_forward.51} parent=0 // pred_fallthru
    _

// kernel: densenet_multi_att_forward.54
$region0: #{densenet_multi_att_forward.54}
  #allocation0 [shape = 'u32[]', space=smem, size = 0x4, offset = 0x4, fixed_abs, tag = 'smem constant byte address 0x4 - core index']
  #allocation1 [shape = 'u32[144,128]{1,0:T(1,128)}', space=vmem, size = 0x12000, scoped, tag = 'internal scratch']
  #allocation2 [shape = 'f32[32,128]{1,0:T(8,128)}', space=vmem, size = 0x4000, scoped, tag = 'scratch operand']
  %s0 = inlined_call_operand.vmem [shape: bf16[32,256], index: 0, kind: input, shape index: {}]
  %s1 = inlined_call_operand.vmem [shape: bf16[256,128], index: 1, kind: input, shape index: {}]
  %s2 = inlined_call_operand.vmem [shape: f32[1,128], index: 2, kind: input, shape index: {}]
  %s3 = inlined_call_operand.vmem [shape: f32[32,128], index: 3, kind: output, shape index: {}]
  %s4 = sld [smem:[#allocation0]]
  $region30: #{densenet_multi_att_forward.54} parent=0
    _
  %s6 = ssub.s32 1, %s4
  %s7 = scalar_select 0, %s6, %s4
  // Predicated region
  $region2: #{densenet_multi_att_forward.54} parent=0 // pred_check
    _
  $region3: #{densenet_multi_att_forward.54} parent=0 // pred_check_branch
    %9 = sbr.rel (0) target = $region5
  $region4: #{densenet_multi_att_forward.54} parent=0 // pred_region
    _
  $region5: #{densenet_multi_att_forward.54} parent=0 // pred_fallthru
    _
  // Predicated region
  $region6: #{densenet_multi_att_forward.54} parent=0 // pred_check
    _
  $region7: #{densenet_multi_att_forward.54} parent=0 // pred_check_branch
    %11 = sbr.rel (0) target = $region9
  $region8: #{densenet_multi_att_forward.54} parent=0 // pred_region
    _
  $region9: #{densenet_multi_att_forward.54} parent=0 // pred_fallthru
    _
  // Predicated region
  $region10: #{densenet_multi_att_forward.54} parent=0 // pred_check
    _
  $region11: #{densenet_multi_att_forward.54} parent=0 // pred_check_branch
    %13 = sbr.rel (0) target = $region13
  $region12: #{densenet_multi_att_forward.54} parent=0 // pred_region
    _
  $region13: #{densenet_multi_att_forward.54} parent=0 // pred_fallthru
    _
  %p15 = scmp.eq.s32.totalorder 0, 0
  // Predicated region
  $region14: #{densenet_multi_att_forward.54} parent=0 // pred_check
    %p16 = pneg %p15
  $region15: #{densenet_multi_att_forward.54} parent=0 // pred_check_branch
    %18 = sbr.rel (%p16) target = $region17
  $region16: #{densenet_multi_att_forward.54} parent=0 // pred_region
    %19 = vst [vmem:[#allocation2] sm:$0xff] 0.0
    %20 = vst [vmem:[#allocation2 + $0x8] sm:$0xff] 0.0
    %21 = vst [vmem:[#allocation2 + $0x10] sm:$0xff] 0.0
    %22 = vst [vmem:[#allocation2 + $0x18] sm:$0xff] 0.0
  $region17: #{densenet_multi_att_forward.54} parent=0 // pred_fallthru
    _
  %v23 = vld [vmem:[#allocation2] sm:$0xff]
  %v24 = vld [vmem:[#allocation2 + $0x8] sm:$0xff]
  %v25 = vld [vmem:[#allocation2 + $0x10] sm:$0xff]
  %v26 = vld [vmem:[#allocation2 + $0x18] sm:$0xff]
  %v27 = vld [vmem:[%s0] sm:$0xff]
  %v28 = vld [vmem:[%s0 + $0x8] sm:$0xff]
  %v29 = vld [vmem:[%s0 + $0x10] sm:$0xff]
  %v30 = vld [vmem:[%s0 + $0x18] sm:$0xff]
  %v31 = vld [vmem:[%s1] sm:$0xf]
  %v32 = vld [vmem:[%s1 + $0x4] sm:$0xf]
  %v33 = vld [vmem:[%s1 + $0x8] sm:$0xf]
  %v34 = vld [vmem:[%s1 + $0xc] sm:$0xf]
  %v35 = vld [vmem:[%s1 + $0x10] sm:$0xf]
  %v36 = vld [vmem:[%s1 + $0x14] sm:$0xf]
  %v37 = vld [vmem:[%s1 + $0x18] sm:$0xf]
  %v38 = vld [vmem:[%s1 + $0x1c] sm:$0xf]
  %v39 = vld [vmem:[%s1 + $0x20] sm:$0xf]
  %v40 = vld [vmem:[%s1 + $0x24] sm:$0xf]
  %v41 = vld [vmem:[%s1 + $0x28] sm:$0xf]
  %v42 = vld [vmem:[%s1 + $0x2c] sm:$0xf]
  %v43 = vld [vmem:[%s1 + $0x30] sm:$0xf]
  %v44 = vld [vmem:[%s1 + $0x34] sm:$0xf]
  %v45 = vld [vmem:[%s1 + $0x38] sm:$0xf]
  %v46 = vld [vmem:[%s1 + $0x3c] sm:$0xf]
  %v47 = vld [vmem:[%s1 + $0x40] sm:$0xf]
  %v48 = vld [vmem:[%s1 + $0x44] sm:$0xf]
  %v49 = vld [vmem:[%s1 + $0x48] sm:$0xf]
  %v50 = vld [vmem:[%s1 + $0x4c] sm:$0xf]
  %v51 = vld [vmem:[%s1 + $0x50] sm:$0xf]
  %v52 = vld [vmem:[%s1 + $0x54] sm:$0xf]
  %v53 = vld [vmem:[%s1 + $0x58] sm:$0xf]
  %v54 = vld [vmem:[%s1 + $0x5c] sm:$0xf]
  %v55 = vld [vmem:[%s1 + $0x60] sm:$0xf]
  %v56 = vld [vmem:[%s1 + $0x64] sm:$0xf]
  %v57 = vld [vmem:[%s1 + $0x68] sm:$0xf]
  %v58 = vld [vmem:[%s1 + $0x6c] sm:$0xf]
  %v59 = vld [vmem:[%s1 + $0x70] sm:$0xf]
  %v60 = vld [vmem:[%s1 + $0x74] sm:$0xf]
  %v61 = vld [vmem:[%s1 + $0x78] sm:$0xf]
  %v62 = vld [vmem:[%s1 + $0x7c] sm:$0xf]
  %v67 = vunpack.c.l.b16 %v27
  %v68 = vunpack.c.h.b16 %v27
  %v69 = vunpack.c.l.b16 %v28
  %v70 = vunpack.c.h.b16 %v28
  %v71 = vunpack.c.l.b16 %v29
  %v72 = vunpack.c.h.b16 %v29
  %v73 = vunpack.c.l.b16 %v30
  %v74 = vunpack.c.h.b16 %v30
  %v75 = vpack.c.b16 %v69, %v67
  %v76 = vpack.c.b16 %v70, %v68
  %v77 = vpack.c.b16 %v73, %v71
  %v78 = vpack.c.b16 %v74, %v72
  %v115 = vunpack.c.l.b16 %v31
  %v116 = vunpack.c.l.b16 %v32
  %v117 = vunpack.c.l.b16 %v33
  %v118 = vunpack.c.l.b16 %v34
  %v119 = vunpack.c.l.b16 %v35
  %v120 = vunpack.c.l.b16 %v36
  %v121 = vunpack.c.l.b16 %v37
  %v122 = vunpack.c.l.b16 %v38
  %v123 = vunpack.c.l.b16 %v39
  %v124 = vunpack.c.l.b16 %v40
  %v125 = vunpack.c.l.b16 %v41
  %v126 = vunpack.c.l.b16 %v42
  %v127 = vunpack.c.l.b16 %v43
  %v128 = vunpack.c.l.b16 %v44
  %v129 = vunpack.c.l.b16 %v45
  %v130 = vunpack.c.l.b16 %v46
  %v131 = vunpack.c.l.b16 %v47
  %v132 = vunpack.c.l.b16 %v48
  %v133 = vunpack.c.l.b16 %v49
  %v134 = vunpack.c.l.b16 %v50
  %v135 = vunpack.c.l.b16 %v51
  %v136 = vunpack.c.l.b16 %v52
  %v137 = vunpack.c.l.b16 %v53
  %v138 = vunpack.c.l.b16 %v54
  %v139 = vunpack.c.l.b16 %v55
  %v140 = vunpack.c.l.b16 %v56
  %v141 = vunpack.c.l.b16 %v57
  %v142 = vunpack.c.l.b16 %v58
  %v143 = vunpack.c.l.b16 %v59
  %v144 = vunpack.c.l.b16 %v60
  %v145 = vunpack.c.l.b16 %v61
  %v146 = vunpack.c.l.b16 %v62
  %v147 = vpack.c.b16 %v116, %v115
  %v148 = vpack.c.b16 %v118, %v117
  %v149 = vpack.c.b16 %v120, %v119
  %v150 = vpack.c.b16 %v122, %v121
  %v151 = vpack.c.b16 %v124, %v123
  %v152 = vpack.c.b16 %v126, %v125
  %v153 = vpack.c.b16 %v128, %v127
  %v154 = vpack.c.b16 %v130, %v129
  %v155 = vpack.c.b16 %v132, %v131
  %v156 = vpack.c.b16 %v134, %v133
  %v157 = vpack.c.b16 %v136, %v135
  %v158 = vpack.c.b16 %v138, %v137
  %v159 = vpack.c.b16 %v140, %v139
  %v160 = vpack.c.b16 %v142, %v141
  %v161 = vpack.c.b16 %v144, %v143
  %v162 = vpack.c.b16 %v146, %v145
  %179 = vmatprep.subr.bf16.mxu0 0
  %180 = vmatpush1.bf16.msra.mxu0 %v147
  %181 = vmatprep.subr.bf16.mxu0 0
  %182 = vmatpush1.bf16.msra.mxu0 %v148
  %183 = vmatprep.subr.bf16.mxu0 0
  %184 = vmatpush1.bf16.msra.mxu0 %v149
  %185 = vmatprep.subr.bf16.mxu0 0
  %186 = vmatpush1.bf16.msra.mxu0 %v150
  %187 = vmatprep.subr.bf16.mxu0 0
  %188 = vmatpush1.bf16.msra.mxu0 %v151
  %189 = vmatprep.subr.bf16.mxu0 0
  %190 = vmatpush1.bf16.msra.mxu0 %v152
  %191 = vmatprep.subr.bf16.mxu0 0
  %192 = vmatpush1.bf16.msra.mxu0 %v153
  %193 = vmatprep.subr.bf16.mxu0 0
  %194 = vmatpush1.bf16.msra.mxu0 %v154
  %195 = vmatprep.subr.bf16.mxu0 0
  %196 = vmatpush1.bf16.msra.mxu0 %v155
  %197 = vmatprep.subr.bf16.mxu0 0
  %198 = vmatpush1.bf16.msra.mxu0 %v156
  %199 = vmatprep.subr.bf16.mxu0 0
  %200 = vmatpush1.bf16.msra.mxu0 %v157
  %201 = vmatprep.subr.bf16.mxu0 0
  %202 = vmatpush1.bf16.msra.mxu0 %v158
  %203 = vmatprep.subr.bf16.mxu0 0
  %204 = vmatpush1.bf16.msra.mxu0 %v159
  %205 = vmatprep.subr.bf16.mxu0 0
  %206 = vmatpush1.bf16.msra.mxu0 %v160
  %207 = vmatprep.subr.bf16.mxu0 0
  %208 = vmatpush1.bf16.msra.mxu0 %v161
  %209 = vmatprep.subr.bf16.mxu0 0
  %210 = vmatpush1.bf16.msra.mxu0 %v162
  %211 = vmatprep.mubr.bf16.mxu0 %v76
  %212 = vmatmul.mubr.bf16.gmra.mrb[0].mxu0 %v75
  %v213 = vpop.f32.mrb[0].mxu0
  %v214 = vadd.f32 0.0, %v213
  %v215 = vpop.f32.mrb[0].mxu0
  %v216 = vpop.f32.mrb[0].mxu0
  %v217 = vadd.f32 0.0, %v216
  %v218 = vpop.f32.mrb[0].mxu0
  %219 = vmatprep.mubr.bf16.mxu0 %v78
  %220 = vmatmul.mubr.bf16.gmra.mrb[0].mxu0 %v77
  %v221 = vpop.f32.mrb[0].mxu0
  %v222 = vadd.f32 0.0, %v221
  %v223 = vpop.f32.mrb[0].mxu0
  %v224 = vpop.f32.mrb[0].mxu0
  %v225 = vadd.f32 0.0, %v224
  %v226 = vpop.f32.mrb[0].mxu0
  %227 = vdwg.mxu0
  %v228 = vadd.f32 %v23, %v214
  %v229 = vadd.f32 %v24, %v217
  %v230 = vadd.f32 %v25, %v222
  %v231 = vadd.f32 %v26, %v225
  %232 = vst [vmem:[#allocation2] sm:$0xff] %v228
  %233 = vst [vmem:[#allocation2 + $0x8] sm:$0xff] %v229
  %234 = vst [vmem:[#allocation2 + $0x10] sm:$0xff] %v230
  %235 = vst [vmem:[#allocation2 + $0x18] sm:$0xff] %v231
  // Predicated region
  $region18: #{densenet_multi_att_forward.54} parent=0 // pred_check
    %p236 = pneg %p15
  $region19: #{densenet_multi_att_forward.54} parent=0 // pred_check_branch
    %238 = sbr.rel (%p236) target = $region21
  $region20: #{densenet_multi_att_forward.54} parent=0 // pred_region
    %v239 = vld [vmem:[#allocation2] sm:$0xff]
    %v240 = vld [vmem:[#allocation2 + $0x8] sm:$0xff]
    %v241 = vld [vmem:[#allocation2 + $0x10] sm:$0xff]
    %v242 = vld [vmem:[#allocation2 + $0x18] sm:$0xff]
    %v243 = vld [vmem:[%s2] sm:$0x1]
    %v245 = vlaneseq
    %v246 = vshrl.u32 %v245, 7
    %v247 = vsub.s32 0, %v246
    %v248 = vrot.slane %v243, %v247
    %v250 = vadd.f32 %v239, %v248
    %v251 = vadd.f32 %v240, %v248
    %v252 = vadd.f32 %v241, %v248
    %v253 = vadd.f32 %v242, %v248
    %254 = vst [vmem:[%s3] sm:$0xff] %v250
    %255 = vst [vmem:[%s3 + $0x8] sm:$0xff] %v251
    %256 = vst [vmem:[%s3 + $0x10] sm:$0xff] %v252
    %257 = vst [vmem:[%s3 + $0x18] sm:$0xff] %v253
  $region21: #{densenet_multi_att_forward.54} parent=0 // pred_fallthru
    _
  // Predicated region
  $region22: #{densenet_multi_att_forward.54} parent=0 // pred_check
    _
  $region23: #{densenet_multi_att_forward.54} parent=0 // pred_check_branch
    %259 = sbr.rel (0) target = $region25
  $region24: #{densenet_multi_att_forward.54} parent=0 // pred_region
    _
  $region25: #{densenet_multi_att_forward.54} parent=0 // pred_fallthru
    _
  // Predicated region
  $region26: #{densenet_multi_att_forward.54} parent=0 // pred_check
    _
  $region27: #{densenet_multi_att_forward.54} parent=0 // pred_check_branch
    %261 = sbr.rel (0) target = $region29
  $region28: #{densenet_multi_att_forward.54} parent=0 // pred_region
    _
  $region29: #{densenet_multi_att_forward.54} parent=0 // pred_fallthru
    _

// kernel: densenet_multi_att_forward.62
$region0: #{densenet_multi_att_forward.62}
  #allocation0 [shape = 'u32[]', space=smem, size = 0x4, offset = 0x4, fixed_abs, tag = 'smem constant byte address 0x4 - core index']
  #allocation1 [shape = 'u32[144,128]{1,0:T(1,128)}', space=vmem, size = 0x12000, scoped, tag = 'internal scratch']
  %s0 = inlined_call_operand.vmem [shape: f32[4,8,128], index: 0, kind: input, shape index: {}]
  %s1 = inlined_call_operand.vmem [shape: f32[80], index: 1, kind: input, shape index: {}]
  %s2 = inlined_call_operand.vmem [shape: f32[20], index: 2, kind: input, shape index: {}]
  %s3 = inlined_call_operand.vmem [shape: f32[4,8,128], index: 3, kind: output, shape index: {}]
  %s4 = sld [smem:[#allocation0]]
  $region30: #{densenet_multi_att_forward.62} parent=0
    _
  %s6 = ssub.s32 1, %s4
  %s7 = scalar_select 0, %s6, %s4
  $region1: #{densenet_multi_att_forward.62} parent=0
    #allocation2 [shape = 'u8[512]{0}', space=smem, size = 0x200, scoped, tag = 'input window, operand 1, single buffered']
    #allocation3 [shape = 's32[1]{0}', space=sflag, size = 0x4, scoped, tag = 'scoped memory for densenet_multi_att_forward.62']
    #allocation4 [shape = 'u8[512]{0}', space=smem, size = 0x200, scoped, tag = 'input window, operand 2, single buffered']
    #allocation5 [shape = 's32[1]{0}', space=sflag, size = 0x4, scoped, tag = 'scoped memory for densenet_multi_att_forward.62']
    %8 = vsyncpa [#allocation3], 0
    %9 = vsyncpa [#allocation5], 0
    // Predicated region
    $region2: #{densenet_multi_att_forward.62} parent=1 // pred_check
      _
    $region3: #{densenet_multi_att_forward.62} parent=1 // pred_check_branch
      %11 = sbr.rel (0) target = $region5
    $region4: #{densenet_multi_att_forward.62} parent=1 // pred_region
      _
    $region5: #{densenet_multi_att_forward.62} parent=1 // pred_fallthru
      _
    // Predicated region
    $region6: #{densenet_multi_att_forward.62} parent=1 // pred_check
      _
    $region7: #{densenet_multi_att_forward.62} parent=1 // pred_check_branch
      %13 = sbr.rel (0) target = $region9
    $region8: #{densenet_multi_att_forward.62} parent=1 // pred_region
      %s15 = ssub.s32 16, 16
      %16 = vsyncadd [#allocation3], %s15
      %s18 = sshll.u32 %s1, 4
      %s19 = int_to_ptr.vmem [resolvable:$true] %s18
      %21 = dma.vmem_to_smem %s19, 16, [#allocation2], [#allocation3]
    $region9: #{densenet_multi_att_forward.62} parent=1 // pred_fallthru
      _
    // Predicated region
    $region10: #{densenet_multi_att_forward.62} parent=1 // pred_check
      _
    $region11: #{densenet_multi_att_forward.62} parent=1 // pred_check_branch
      %23 = sbr.rel (0) target = $region13
    $region12: #{densenet_multi_att_forward.62} parent=1 // pred_region
      %s25 = ssub.s32 16, 16
      %26 = vsyncadd [#allocation5], %s25
      %s28 = sshll.u32 %s2, 4
      %s29 = int_to_ptr.vmem [resolvable:$true] %s28
      %31 = dma.vmem_to_smem %s29, 16, [#allocation4], [#allocation5]
    $region13: #{densenet_multi_att_forward.62} parent=1 // pred_fallthru
      _
    // Predicated region
    $region14: #{densenet_multi_att_forward.62} parent=1 // pred_check
      _
    $region15: #{densenet_multi_att_forward.62} parent=1 // pred_check_branch
      %33 = sbr.rel (0) target = $region17
    $region16: #{densenet_multi_att_forward.62} parent=1 // pred_region
      %34 = dma.done [#allocation3], 16
    $region17: #{densenet_multi_att_forward.62} parent=1 // pred_fallthru
      _
    // Predicated region
    $region18: #{densenet_multi_att_forward.62} parent=1 // pred_check
      _
    $region19: #{densenet_multi_att_forward.62} parent=1 // pred_check_branch
      %36 = sbr.rel (0) target = $region21
    $region20: #{densenet_multi_att_forward.62} parent=1 // pred_region
      %37 = dma.done [#allocation5], 16
    $region21: #{densenet_multi_att_forward.62} parent=1 // pred_fallthru
      _
    %38 = sfence
    %v39 = vld [vmem:[%s0] sm:$0xff]
    %s40 = scalar_lea.vmem %s0, 8
    %v41 = vld [vmem:[%s40] sm:$0xff]
    %s42 = scalar_lea.vmem %s0, 16
    %v43 = vld [vmem:[%s42] sm:$0xff]
    %s44 = scalar_lea.vmem %s0, 24
    %v45 = vld [vmem:[%s44] sm:$0xff]
    %s46 = sld [smem:[#allocation2]]
    %v47 = vstv %s46
    %v48 = vmul.f32 %v39, %v47
    %s49 = sld [smem:[#allocation4]]
    %v50 = vstv %s49
    %v51 = vadd.f32 %v48, %v50
    %s52 = sld [smem:[#allocation2 + $0x1]]
    %v53 = vstv %s52
    %v54 = vmul.f32 %v41, %v53
    %v55 = vadd.f32 %v51, %v54
    %s56 = sld [smem:[#allocation2 + $0x2]]
    %v57 = vstv %s56
    %v58 = vmul.f32 %v43, %v57
    %v59 = vadd.f32 %v55, %v58
    %s60 = sld [smem:[#allocation2 + $0x3]]
    %v61 = vstv %s60
    %v62 = vmul.f32 %v45, %v61
    %v63 = vadd.f32 %v59, %v62
    %v64 = vmax.f32 %v63, 0.0
    %s65 = sld [smem:[#allocation2 + $0x4]]
    %v66 = vstv %s65
    %v67 = vmul.f32 %v39, %v66
    %s68 = sld [smem:[#allocation4 + $0x1]]
    %v69 = vstv %s68
    %v70 = vadd.f32 %v67, %v69
    %s71 = sld [smem:[#allocation2 + $0x5]]
    %v72 = vstv %s71
    %v73 = vmul.f32 %v41, %v72
    %v74 = vadd.f32 %v70, %v73
    %s75 = sld [smem:[#allocation2 + $0x6]]
    %v76 = vstv %s75
    %v77 = vmul.f32 %v43, %v76
    %v78 = vadd.f32 %v74, %v77
    %s79 = sld [smem:[#allocation2 + $0x7]]
    %v80 = vstv %s79
    %v81 = vmul.f32 %v45, %v80
    %v82 = vadd.f32 %v78, %v81
    %v83 = vmax.f32 %v82, 0.0
    %s84 = sld [smem:[#allocation2 + $0x8]]
    %v85 = vstv %s84
    %v86 = vmul.f32 %v39, %v85
    %s87 = sld [smem:[#allocation4 + $0x2]]
    %v88 = vstv %s87
    %v89 = vadd.f32 %v86, %v88
    %s90 = sld [smem:[#allocation2 + $0x9]]
    %v91 = vstv %s90
    %v92 = vmul.f32 %v41, %v91
    %v93 = vadd.f32 %v89, %v92
    %s94 = sld [smem:[#allocation2 + $0xa]]
    %v95 = vstv %s94
    %v96 = vmul.f32 %v43, %v95
    %v97 = vadd.f32 %v93, %v96
    %s98 = sld [smem:[#allocation2 + $0xb]]
    %v99 = vstv %s98
    %v100 = vmul.f32 %v45, %v99
    %v101 = vadd.f32 %v97, %v100
    %v102 = vmax.f32 %v101, 0.0
    %s103 = sld [smem:[#allocation2 + $0xc]]
    %v104 = vstv %s103
    %v105 = vmul.f32 %v39, %v104
    %s106 = sld [smem:[#allocation4 + $0x3]]
    %v107 = vstv %s106
    %v108 = vadd.f32 %v105, %v107
    %s109 = sld [smem:[#allocation2 + $0xd]]
    %v110 = vstv %s109
    %v111 = vmul.f32 %v41, %v110
    %v112 = vadd.f32 %v108, %v111
    %s113 = sld [smem:[#allocation2 + $0xe]]
    %v114 = vstv %s113
    %v115 = vmul.f32 %v43, %v114
    %v116 = vadd.f32 %v112, %v115
    %s117 = sld [smem:[#allocation2 + $0xf]]
    %v118 = vstv %s117
    %v119 = vmul.f32 %v45, %v118
    %v120 = vadd.f32 %v116, %v119
    %v121 = vmax.f32 %v120, 0.0
    %s122 = sld [smem:[#allocation2 + $0x40]]
    %v123 = vstv %s122
    %v124 = vmul.f32 %v64, %v123
    %s125 = sld [smem:[#allocation4 + $0x10]]
    %v126 = vstv %s125
    %v127 = vadd.f32 %v124, %v126
    %s128 = sld [smem:[#allocation2 + $0x41]]
    %v129 = vstv %s128
    %v130 = vmul.f32 %v83, %v129
    %v131 = vadd.f32 %v127, %v130
    %s132 = sld [smem:[#allocation2 + $0x42]]
    %v133 = vstv %s132
    %v134 = vmul.f32 %v102, %v133
    %v135 = vadd.f32 %v131, %v134
    %s136 = sld [smem:[#allocation2 + $0x43]]
    %v137 = vstv %s136
    %v138 = vmul.f32 %v121, %v137
    %v139 = vadd.f32 %v135, %v138
    %v140 = vxor.u32 %v139, 2147483648
    %v141 = vmul.f32 %v140, 1.442695
    %v142 = vpow.pop %v141
    %v143 = vadd.f32 %v142, 1.0
    %v144 = vrcp.pop %v143
    %v145 = vmul.f32 1.0, %v144
    %s146 = sld [smem:[#allocation2 + $0x44]]
    %v147 = vstv %s146
    %v148 = vmul.f32 %v64, %v147
    %s149 = sld [smem:[#allocation4 + $0x11]]
    %v150 = vstv %s149
    %v151 = vadd.f32 %v148, %v150
    %s152 = sld [smem:[#allocation2 + $0x45]]
    %v153 = vstv %s152
    %v154 = vmul.f32 %v83, %v153
    %v155 = vadd.f32 %v151, %v154
    %s156 = sld [smem:[#allocation2 + $0x46]]
    %v157 = vstv %s156
    %v158 = vmul.f32 %v102, %v157
    %v159 = vadd.f32 %v155, %v158
    %s160 = sld [smem:[#allocation2 + $0x47]]
    %v161 = vstv %s160
    %v162 = vmul.f32 %v121, %v161
    %v163 = vadd.f32 %v159, %v162
    %v164 = vxor.u32 %v163, 2147483648
    %v165 = vmul.f32 %v164, 1.442695
    %v166 = vpow.pop %v165
    %v167 = vadd.f32 %v166, 1.0
    %v168 = vrcp.pop %v167
    %v169 = vmul.f32 1.0, %v168
    %s170 = sld [smem:[#allocation2 + $0x48]]
    %v171 = vstv %s170
    %v172 = vmul.f32 %v64, %v171
    %s173 = sld [smem:[#allocation4 + $0x12]]
    %v174 = vstv %s173
    %v175 = vadd.f32 %v172, %v174
    %s176 = sld [smem:[#allocation2 + $0x49]]
    %v177 = vstv %s176
    %v178 = vmul.f32 %v83, %v177
    %v179 = vadd.f32 %v175, %v178
    %s180 = sld [smem:[#allocation2 + $0x4a]]
    %v181 = vstv %s180
    %v182 = vmul.f32 %v102, %v181
    %v183 = vadd.f32 %v179, %v182
    %s184 = sld [smem:[#allocation2 + $0x4b]]
    %v185 = vstv %s184
    %v186 = vmul.f32 %v121, %v185
    %v187 = vadd.f32 %v183, %v186
    %v188 = vxor.u32 %v187, 2147483648
    %v189 = vmul.f32 %v188, 1.442695
    %v190 = vpow.pop %v189
    %v191 = vadd.f32 %v190, 1.0
    %v192 = vrcp.pop %v191
    %v193 = vmul.f32 1.0, %v192
    %s194 = sld [smem:[#allocation2 + $0x4c]]
    %v195 = vstv %s194
    %v196 = vmul.f32 %v64, %v195
    %s197 = sld [smem:[#allocation4 + $0x13]]
    %v198 = vstv %s197
    %v199 = vadd.f32 %v196, %v198
    %s200 = sld [smem:[#allocation2 + $0x4d]]
    %v201 = vstv %s200
    %v202 = vmul.f32 %v83, %v201
    %v203 = vadd.f32 %v199, %v202
    %s204 = sld [smem:[#allocation2 + $0x4e]]
    %v205 = vstv %s204
    %v206 = vmul.f32 %v102, %v205
    %v207 = vadd.f32 %v203, %v206
    %s208 = sld [smem:[#allocation2 + $0x4f]]
    %v209 = vstv %s208
    %v210 = vmul.f32 %v121, %v209
    %v211 = vadd.f32 %v207, %v210
    %v212 = vxor.u32 %v211, 2147483648
    %v213 = vmul.f32 %v212, 1.442695
    %v214 = vpow.pop %v213
    %v215 = vadd.f32 %v214, 1.0
    %v216 = vrcp.pop %v215
    %v217 = vmul.f32 1.0, %v216
    %218 = vst [vmem:[%s3] sm:$0xff] %v145
    %s219 = scalar_lea.vmem %s3, 8
    %220 = vst [vmem:[%s219] sm:$0xff] %v169
    %s221 = scalar_lea.vmem %s3, 16
    %222 = vst [vmem:[%s221] sm:$0xff] %v193
    %s223 = scalar_lea.vmem %s3, 24
    %224 = vst [vmem:[%s223] sm:$0xff] %v217
    // Predicated region
    $region22: #{densenet_multi_att_forward.62} parent=1 // pred_check
      _
    $region23: #{densenet_multi_att_forward.62} parent=1 // pred_check_branch
      %226 = sbr.rel (0) target = $region25
    $region24: #{densenet_multi_att_forward.62} parent=1 // pred_region
      _
    $region25: #{densenet_multi_att_forward.62} parent=1 // pred_fallthru
      _
    // Predicated region
    $region26: #{densenet_multi_att_forward.62} parent=1 // pred_check
      _
    $region27: #{densenet_multi_att_forward.62} parent=1 // pred_check_branch
      %228 = sbr.rel (0) target = $region29
    $region28: #{densenet_multi_att_forward.62} parent=1 // pred_region
      _
    $region29: #{densenet_multi_att_forward.62} parent=1 // pred_fallthru
      _
    %229 = vsyncpa [#allocation3], 1
    %230 = vsyncpa [#allocation5], 1

// kernel: densenet_multi_att_forward.63
$region0: #{densenet_multi_att_forward.63}
  #allocation0 [shape = 'u32[]', space=smem, size = 0x4, offset = 0x4, fixed_abs, tag = 'smem constant byte address 0x4 - core index']
  #allocation1 [shape = 'u32[144,128]{1,0:T(1,128)}', space=vmem, size = 0x12000, scoped, tag = 'internal scratch']
  #allocation2 [shape = 'f32[32,128]{1,0:T(8,128)}', space=vmem, size = 0x4000, scoped, tag = 'scratch operand']
  %s0 = inlined_call_operand.vmem [shape: bf16[32,128], index: 0, kind: input, shape index: {}]
  %s1 = inlined_call_operand.vmem [shape: bf16[128,128], index: 1, kind: input, shape index: {}]
  %s2 = inlined_call_operand.vmem [shape: f32[1,128], index: 2, kind: input, shape index: {}]
  %s3 = inlined_call_operand.vmem [shape: f32[32,128], index: 3, kind: output, shape index: {}]
  %s4 = sld [smem:[#allocation0]]
  $region30: #{densenet_multi_att_forward.63} parent=0
    _
  %s6 = ssub.s32 1, %s4
  %s7 = scalar_select 0, %s6, %s4
  // Predicated region
  $region2: #{densenet_multi_att_forward.63} parent=0 // pred_check
    _
  $region3: #{densenet_multi_att_forward.63} parent=0 // pred_check_branch
    %9 = sbr.rel (0) target = $region5
  $region4: #{densenet_multi_att_forward.63} parent=0 // pred_region
    _
  $region5: #{densenet_multi_att_forward.63} parent=0 // pred_fallthru
    _
  // Predicated region
  $region6: #{densenet_multi_att_forward.63} parent=0 // pred_check
    _
  $region7: #{densenet_multi_att_forward.63} parent=0 // pred_check_branch
    %11 = sbr.rel (0) target = $region9
  $region8: #{densenet_multi_att_forward.63} parent=0 // pred_region
    _
  $region9: #{densenet_multi_att_forward.63} parent=0 // pred_fallthru
    _
  // Predicated region
  $region10: #{densenet_multi_att_forward.63} parent=0 // pred_check
    _
  $region11: #{densenet_multi_att_forward.63} parent=0 // pred_check_branch
    %13 = sbr.rel (0) target = $region13
  $region12: #{densenet_multi_att_forward.63} parent=0 // pred_region
    _
  $region13: #{densenet_multi_att_forward.63} parent=0 // pred_fallthru
    _
  %p15 = scmp.eq.s32.totalorder 0, 0
  // Predicated region
  $region14: #{densenet_multi_att_forward.63} parent=0 // pred_check
    %p16 = pneg %p15
  $region15: #{densenet_multi_att_forward.63} parent=0 // pred_check_branch
    %18 = sbr.rel (%p16) target = $region17
  $region16: #{densenet_multi_att_forward.63} parent=0 // pred_region
    %19 = vst [vmem:[#allocation2] sm:$0xff] 0.0
    %20 = vst [vmem:[#allocation2 + $0x8] sm:$0xff] 0.0
    %21 = vst [vmem:[#allocation2 + $0x10] sm:$0xff] 0.0
    %22 = vst [vmem:[#allocation2 + $0x18] sm:$0xff] 0.0
  $region17: #{densenet_multi_att_forward.63} parent=0 // pred_fallthru
    _
  %v23 = vld [vmem:[#allocation2] sm:$0xff]
  %v24 = vld [vmem:[#allocation2 + $0x8] sm:$0xff]
  %v25 = vld [vmem:[#allocation2 + $0x10] sm:$0xff]
  %v26 = vld [vmem:[#allocation2 + $0x18] sm:$0xff]
  %v27 = vld [vmem:[%s0] sm:$0xf]
  %v28 = vld [vmem:[%s0 + $0x4] sm:$0xf]
  %v29 = vld [vmem:[%s0 + $0x8] sm:$0xf]
  %v30 = vld [vmem:[%s0 + $0xc] sm:$0xf]
  %v31 = vld [vmem:[%s1] sm:$0xf]
  %v32 = vld [vmem:[%s1 + $0x4] sm:$0xf]
  %v33 = vld [vmem:[%s1 + $0x8] sm:$0xf]
  %v34 = vld [vmem:[%s1 + $0xc] sm:$0xf]
  %v35 = vld [vmem:[%s1 + $0x10] sm:$0xf]
  %v36 = vld [vmem:[%s1 + $0x14] sm:$0xf]
  %v37 = vld [vmem:[%s1 + $0x18] sm:$0xf]
  %v38 = vld [vmem:[%s1 + $0x1c] sm:$0xf]
  %v39 = vld [vmem:[%s1 + $0x20] sm:$0xf]
  %v40 = vld [vmem:[%s1 + $0x24] sm:$0xf]
  %v41 = vld [vmem:[%s1 + $0x28] sm:$0xf]
  %v42 = vld [vmem:[%s1 + $0x2c] sm:$0xf]
  %v43 = vld [vmem:[%s1 + $0x30] sm:$0xf]
  %v44 = vld [vmem:[%s1 + $0x34] sm:$0xf]
  %v45 = vld [vmem:[%s1 + $0x38] sm:$0xf]
  %v46 = vld [vmem:[%s1 + $0x3c] sm:$0xf]
  %v51 = vunpack.c.l.b16 %v27
  %v52 = vunpack.c.l.b16 %v28
  %v53 = vunpack.c.l.b16 %v29
  %v54 = vunpack.c.l.b16 %v30
  %v55 = vpack.c.b16 %v52, %v51
  %v56 = vpack.c.b16 %v54, %v53
  %v75 = vunpack.c.l.b16 %v31
  %v76 = vunpack.c.l.b16 %v32
  %v77 = vunpack.c.l.b16 %v33
  %v78 = vunpack.c.l.b16 %v34
  %v79 = vunpack.c.l.b16 %v35
  %v80 = vunpack.c.l.b16 %v36
  %v81 = vunpack.c.l.b16 %v37
  %v82 = vunpack.c.l.b16 %v38
  %v83 = vunpack.c.l.b16 %v39
  %v84 = vunpack.c.l.b16 %v40
  %v85 = vunpack.c.l.b16 %v41
  %v86 = vunpack.c.l.b16 %v42
  %v87 = vunpack.c.l.b16 %v43
  %v88 = vunpack.c.l.b16 %v44
  %v89 = vunpack.c.l.b16 %v45
  %v90 = vunpack.c.l.b16 %v46
  %v91 = vpack.c.b16 %v76, %v75
  %v92 = vpack.c.b16 %v78, %v77
  %v93 = vpack.c.b16 %v80, %v79
  %v94 = vpack.c.b16 %v82, %v81
  %v95 = vpack.c.b16 %v84, %v83
  %v96 = vpack.c.b16 %v86, %v85
  %v97 = vpack.c.b16 %v88, %v87
  %v98 = vpack.c.b16 %v90, %v89
  %107 = vmatprep.subr.bf16.mxu0 0
  %108 = vmatpush1.bf16.msra.mxu0 %v91
  %109 = vmatprep.subr.bf16.mxu0 0
  %110 = vmatpush1.bf16.msra.mxu0 %v92
  %111 = vmatprep.subr.bf16.mxu0 0
  %112 = vmatpush1.bf16.msra.mxu0 %v93
  %113 = vmatprep.subr.bf16.mxu0 0
  %114 = vmatpush1.bf16.msra.mxu0 %v94
  %115 = vmatprep.subr.bf16.mxu0 0
  %116 = vmatpush1.bf16.msra.mxu0 %v95
  %117 = vmatprep.subr.bf16.mxu0 0
  %118 = vmatpush1.bf16.msra.mxu0 %v96
  %119 = vmatprep.subr.bf16.mxu0 0
  %120 = vmatpush1.bf16.msra.mxu0 %v97
  %121 = vmatprep.subr.bf16.mxu0 0
  %122 = vmatpush1.bf16.msra.mxu0 %v98
  %123 = vmatprep.subr.bf16.mxu0 0
  %124 = vmatpush1.bf16.msra.mxu0 0
  %125 = vmatprep.subr.bf16.mxu0 0
  %126 = vmatpush1.bf16.msra.mxu0 0
  %127 = vmatprep.subr.bf16.mxu0 0
  %128 = vmatpush1.bf16.msra.mxu0 0
  %129 = vmatprep.subr.bf16.mxu0 0
  %130 = vmatpush1.bf16.msra.mxu0 0
  %131 = vmatprep.subr.bf16.mxu0 0
  %132 = vmatpush1.bf16.msra.mxu0 0
  %133 = vmatprep.subr.bf16.mxu0 0
  %134 = vmatpush1.bf16.msra.mxu0 0
  %135 = vmatprep.subr.bf16.mxu0 0
  %136 = vmatpush1.bf16.msra.mxu0 0
  %137 = vmatprep.subr.bf16.mxu0 0
  %138 = vmatpush1.bf16.msra.mxu0 0
  %139 = vmatprep.mubr.bf16.mxu0 0
  %140 = vmatmul.mubr.bf16.gmra.mrb[0].mxu0 %v55
  %v141 = vpop.f32.mrb[0].mxu0
  %v142 = vadd.f32 0.0, %v141
  %v143 = vpop.f32.mrb[0].mxu0
  %v144 = vpop.f32.mrb[0].mxu0
  %v145 = vadd.f32 0.0, %v144
  %v146 = vpop.f32.mrb[0].mxu0
  %147 = vmatprep.mubr.bf16.mxu0 0
  %148 = vmatmul.mubr.bf16.gmra.mrb[0].mxu0 %v56
  %v149 = vpop.f32.mrb[0].mxu0
  %v150 = vadd.f32 0.0, %v149
  %v151 = vpop.f32.mrb[0].mxu0
  %v152 = vpop.f32.mrb[0].mxu0
  %v153 = vadd.f32 0.0, %v152
  %v154 = vpop.f32.mrb[0].mxu0
  %155 = vdwg.mxu0
  %v156 = vadd.f32 %v23, %v142
  %v157 = vadd.f32 %v24, %v145
  %v158 = vadd.f32 %v25, %v150
  %v159 = vadd.f32 %v26, %v153
  %160 = vst [vmem:[#allocation2] sm:$0xff] %v156
  %161 = vst [vmem:[#allocation2 + $0x8] sm:$0xff] %v157
  %162 = vst [vmem:[#allocation2 + $0x10] sm:$0xff] %v158
  %163 = vst [vmem:[#allocation2 + $0x18] sm:$0xff] %v159
  // Predicated region
  $region18: #{densenet_multi_att_forward.63} parent=0 // pred_check
    %p164 = pneg %p15
  $region19: #{densenet_multi_att_forward.63} parent=0 // pred_check_branch
    %166 = sbr.rel (%p164) target = $region21
  $region20: #{densenet_multi_att_forward.63} parent=0 // pred_region
    %v167 = vld [vmem:[#allocation2] sm:$0xff]
    %v168 = vld [vmem:[#allocation2 + $0x8] sm:$0xff]
    %v169 = vld [vmem:[#allocation2 + $0x10] sm:$0xff]
    %v170 = vld [vmem:[#allocation2 + $0x18] sm:$0xff]
    %v171 = vld [vmem:[%s2] sm:$0x1]
    %v173 = vlaneseq
    %v174 = vshrl.u32 %v173, 7
    %v175 = vsub.s32 0, %v174
    %v176 = vrot.slane %v171, %v175
    %v178 = vadd.f32 %v167, %v176
    %v179 = vadd.f32 %v168, %v176
    %v180 = vadd.f32 %v169, %v176
    %v181 = vadd.f32 %v170, %v176
    %v182 = vmax.f32 %v178, 0.0
    %v183 = vmax.f32 %v179, 0.0
    %v184 = vmax.f32 %v180, 0.0
    %v185 = vmax.f32 %v181, 0.0
    %186 = vst [vmem:[%s3] sm:$0xff] %v182
    %187 = vst [vmem:[%s3 + $0x8] sm:$0xff] %v183
    %188 = vst [vmem:[%s3 + $0x10] sm:$0xff] %v184
    %189 = vst [vmem:[%s3 + $0x18] sm:$0xff] %v185
  $region21: #{densenet_multi_att_forward.63} parent=0 // pred_fallthru
    _
  // Predicated region
  $region22: #{densenet_multi_att_forward.63} parent=0 // pred_check
    _
  $region23: #{densenet_multi_att_forward.63} parent=0 // pred_check_branch
    %191 = sbr.rel (0) target = $region25
  $region24: #{densenet_multi_att_forward.63} parent=0 // pred_region
    _
  $region25: #{densenet_multi_att_forward.63} parent=0 // pred_fallthru
    _
  // Predicated region
  $region26: #{densenet_multi_att_forward.63} parent=0 // pred_check
    _
  $region27: #{densenet_multi_att_forward.63} parent=0 // pred_check_branch
    %193 = sbr.rel (0) target = $region29
  $region28: #{densenet_multi_att_forward.63} parent=0 // pred_region
    _
  $region29: #{densenet_multi_att_forward.63} parent=0 // pred_fallthru
    _

// kernel: densenet_multi_att_forward.67
$region0: #{densenet_multi_att_forward.67}
  #allocation0 [shape = 'u32[]', space=smem, size = 0x4, offset = 0x4, fixed_abs, tag = 'smem constant byte address 0x4 - core index']
  #allocation1 [shape = 'u32[144,128]{1,0:T(1,128)}', space=vmem, size = 0x12000, scoped, tag = 'internal scratch']
  #allocation2 [shape = 'f32[8,128]{1,0:T(8,128)}', space=vmem, size = 0x1000, scoped, tag = 'scratch operand']
  %s0 = inlined_call_operand.vmem [shape: bf16[8,128], index: 0, kind: input, shape index: {}]
  %s1 = inlined_call_operand.vmem [shape: bf16[128,128], index: 1, kind: input, shape index: {}]
  %s2 = inlined_call_operand.vmem [shape: f32[1,128], index: 2, kind: input, shape index: {}]
  %s3 = inlined_call_operand.vmem [shape: f32[8,128], index: 3, kind: output, shape index: {}]
  %s4 = sld [smem:[#allocation0]]
  $region30: #{densenet_multi_att_forward.67} parent=0
    _
  %s6 = ssub.s32 1, %s4
  %s7 = scalar_select 0, %s6, %s4
  // Predicated region
  $region2: #{densenet_multi_att_forward.67} parent=0 // pred_check
    _
  $region3: #{densenet_multi_att_forward.67} parent=0 // pred_check_branch
    %9 = sbr.rel (0) target = $region5
  $region4: #{densenet_multi_att_forward.67} parent=0 // pred_region
    _
  $region5: #{densenet_multi_att_forward.67} parent=0 // pred_fallthru
    _
  // Predicated region
  $region6: #{densenet_multi_att_forward.67} parent=0 // pred_check
    _
  $region7: #{densenet_multi_att_forward.67} parent=0 // pred_check_branch
    %11 = sbr.rel (0) target = $region9
  $region8: #{densenet_multi_att_forward.67} parent=0 // pred_region
    _
  $region9: #{densenet_multi_att_forward.67} parent=0 // pred_fallthru
    _
  // Predicated region
  $region10: #{densenet_multi_att_forward.67} parent=0 // pred_check
    _
  $region11: #{densenet_multi_att_forward.67} parent=0 // pred_check_branch
    %13 = sbr.rel (0) target = $region13
  $region12: #{densenet_multi_att_forward.67} parent=0 // pred_region
    _
  $region13: #{densenet_multi_att_forward.67} parent=0 // pred_fallthru
    _
  %p15 = scmp.eq.s32.totalorder 0, 0
  // Predicated region
  $region14: #{densenet_multi_att_forward.67} parent=0 // pred_check
    %p16 = pneg %p15
  $region15: #{densenet_multi_att_forward.67} parent=0 // pred_check_branch
    %18 = sbr.rel (%p16) target = $region17
  $region16: #{densenet_multi_att_forward.67} parent=0 // pred_region
    %19 = vst [vmem:[#allocation2] sm:$0xff] 0.0
  $region17: #{densenet_multi_att_forward.67} parent=0 // pred_fallthru
    _
  %v20 = vld [vmem:[#allocation2] sm:$0xff]
  %v21 = vld [vmem:[%s0] sm:$0xf]
  %v22 = vld [vmem:[%s1] sm:$0xf]
  %v23 = vld [vmem:[%s1 + $0x4] sm:$0xf]
  %v24 = vld [vmem:[%s1 + $0x8] sm:$0xf]
  %v25 = vld [vmem:[%s1 + $0xc] sm:$0xf]
  %v26 = vld [vmem:[%s1 + $0x10] sm:$0xf]
  %v27 = vld [vmem:[%s1 + $0x14] sm:$0xf]
  %v28 = vld [vmem:[%s1 + $0x18] sm:$0xf]
  %v29 = vld [vmem:[%s1 + $0x1c] sm:$0xf]
  %v30 = vld [vmem:[%s1 + $0x20] sm:$0xf]
  %v31 = vld [vmem:[%s1 + $0x24] sm:$0xf]
  %v32 = vld [vmem:[%s1 + $0x28] sm:$0xf]
  %v33 = vld [vmem:[%s1 + $0x2c] sm:$0xf]
  %v34 = vld [vmem:[%s1 + $0x30] sm:$0xf]
  %v35 = vld [vmem:[%s1 + $0x34] sm:$0xf]
  %v36 = vld [vmem:[%s1 + $0x38] sm:$0xf]
  %v37 = vld [vmem:[%s1 + $0x3c] sm:$0xf]
  %v54 = vunpack.c.l.b16 %v22
  %v55 = vunpack.c.l.b16 %v23
  %v56 = vunpack.c.l.b16 %v24
  %v57 = vunpack.c.l.b16 %v25
  %v58 = vunpack.c.l.b16 %v26
  %v59 = vunpack.c.l.b16 %v27
  %v60 = vunpack.c.l.b16 %v28
  %v61 = vunpack.c.l.b16 %v29
  %v62 = vunpack.c.l.b16 %v30
  %v63 = vunpack.c.l.b16 %v31
  %v64 = vunpack.c.l.b16 %v32
  %v65 = vunpack.c.l.b16 %v33
  %v66 = vunpack.c.l.b16 %v34
  %v67 = vunpack.c.l.b16 %v35
  %v68 = vunpack.c.l.b16 %v36
  %v69 = vunpack.c.l.b16 %v37
  %v70 = vpack.c.b16 %v55, %v54
  %v71 = vpack.c.b16 %v57, %v56
  %v72 = vpack.c.b16 %v59, %v58
  %v73 = vpack.c.b16 %v61, %v60
  %v74 = vpack.c.b16 %v63, %v62
  %v75 = vpack.c.b16 %v65, %v64
  %v76 = vpack.c.b16 %v67, %v66
  %v77 = vpack.c.b16 %v69, %v68
  %86 = vmatprep.subr.bf16.mxu0 0
  %87 = vmatpush1.bf16.msra.mxu0 %v70
  %88 = vmatprep.subr.bf16.mxu0 0
  %89 = vmatpush1.bf16.msra.mxu0 %v71
  %90 = vmatprep.subr.bf16.mxu0 0
  %91 = vmatpush1.bf16.msra.mxu0 %v72
  %92 = vmatprep.subr.bf16.mxu0 0
  %93 = vmatpush1.bf16.msra.mxu0 %v73
  %94 = vmatprep.subr.bf16.mxu0 0
  %95 = vmatpush1.bf16.msra.mxu0 %v74
  %96 = vmatprep.subr.bf16.mxu0 0
  %97 = vmatpush1.bf16.msra.mxu0 %v75
  %98 = vmatprep.subr.bf16.mxu0 0
  %99 = vmatpush1.bf16.msra.mxu0 %v76
  %100 = vmatprep.subr.bf16.mxu0 0
  %101 = vmatpush1.bf16.msra.mxu0 %v77
  %102 = vmatprep.subr.bf16.mxu0 0
  %103 = vmatpush1.bf16.msra.mxu0 0
  %104 = vmatprep.subr.bf16.mxu0 0
  %105 = vmatpush1.bf16.msra.mxu0 0
  %106 = vmatprep.subr.bf16.mxu0 0
  %107 = vmatpush1.bf16.msra.mxu0 0
  %108 = vmatprep.subr.bf16.mxu0 0
  %109 = vmatpush1.bf16.msra.mxu0 0
  %110 = vmatprep.subr.bf16.mxu0 0
  %111 = vmatpush1.bf16.msra.mxu0 0
  %112 = vmatprep.subr.bf16.mxu0 0
  %113 = vmatpush1.bf16.msra.mxu0 0
  %114 = vmatprep.subr.bf16.mxu0 0
  %115 = vmatpush1.bf16.msra.mxu0 0
  %116 = vmatprep.subr.bf16.mxu0 0
  %117 = vmatpush1.bf16.msra.mxu0 0
  %118 = vmatprep.mubr.bf16.mxu0 0
  %119 = vmatmul.mubr.bf16.gmra.mrb[0].mxu0 %v21
  %v120 = vpop.f32.mrb[0].mxu0
  %v121 = vadd.f32 0.0, %v120
  %v122 = vpop.f32.mrb[0].mxu0
  %v123 = vpop.f32.mrb[0].mxu0
  %v124 = vpop.f32.mrb[0].mxu0
  %125 = vdwg.mxu0
  %v126 = vadd.f32 %v20, %v121
  %127 = vst [vmem:[#allocation2] sm:$0xff] %v126
  // Predicated region
  $region18: #{densenet_multi_att_forward.67} parent=0 // pred_check
    %p128 = pneg %p15
  $region19: #{densenet_multi_att_forward.67} parent=0 // pred_check_branch
    %130 = sbr.rel (%p128) target = $region21
  $region20: #{densenet_multi_att_forward.67} parent=0 // pred_region
    %v131 = vld [vmem:[#allocation2] sm:$0xff]
    %v132 = vld [vmem:[%s2] sm:$0x1]
    %v134 = vlaneseq
    %v135 = vshrl.u32 %v134, 7
    %v136 = vsub.s32 0, %v135
    %v137 = vrot.slane %v132, %v136
    %v139 = vadd.f32 %v131, %v137
    %140 = vst [vmem:[%s3] sm:$0xff] %v139
  $region21: #{densenet_multi_att_forward.67} parent=0 // pred_fallthru
    _
  // Predicated region
  $region22: #{densenet_multi_att_forward.67} parent=0 // pred_check
    _
  $region23: #{densenet_multi_att_forward.67} parent=0 // pred_check_branch
    %142 = sbr.rel (0) target = $region25
  $region24: #{densenet_multi_att_forward.67} parent=0 // pred_region
    _
  $region25: #{densenet_multi_att_forward.67} parent=0 // pred_fallthru
    _
  // Predicated region
  $region26: #{densenet_multi_att_forward.67} parent=0 // pred_check
    _
  $region27: #{densenet_multi_att_forward.67} parent=0 // pred_check_branch
    %144 = sbr.rel (0) target = $region29
  $region28: #{densenet_multi_att_forward.67} parent=0 // pred_region
    _
  $region29: #{densenet_multi_att_forward.67} parent=0 // pred_fallthru
    _

// kernel: densenet_multi_att_forward.68
$region0: #{densenet_multi_att_forward.68}
  #allocation0 [shape = 'u32[]', space=smem, size = 0x4, offset = 0x4, fixed_abs, tag = 'smem constant byte address 0x4 - core index']
  #allocation1 [shape = 'u32[144,128]{1,0:T(1,128)}', space=vmem, size = 0x12000, scoped, tag = 'internal scratch']
  %s0 = inlined_call_operand.vmem [shape: f32[2,16,128], index: 0, kind: input, shape index: {}]
  %s1 = inlined_call_operand.vmem [shape: f32[2,16,128], index: 1, kind: input, shape index: {}]
  %s2 = inlined_call_operand.vmem [shape: f32[2,128], index: 2, kind: output, shape index: {}]
  %s3 = sld [smem:[#allocation0]]
  $region22: #{densenet_multi_att_forward.68} parent=0
    _
  %s5 = ssub.s32 1, %s3
  %s6 = scalar_select 0, %s5, %s3
  // Predicated region
  $region2: #{densenet_multi_att_forward.68} parent=0 // pred_check
    _
  $region3: #{densenet_multi_att_forward.68} parent=0 // pred_check_branch
    %8 = sbr.rel (0) target = $region5
  $region4: #{densenet_multi_att_forward.68} parent=0 // pred_region
    _
  $region5: #{densenet_multi_att_forward.68} parent=0 // pred_fallthru
    _
  // Predicated region
  $region6: #{densenet_multi_att_forward.68} parent=0 // pred_check
    _
  $region7: #{densenet_multi_att_forward.68} parent=0 // pred_check_branch
    %10 = sbr.rel (0) target = $region9
  $region8: #{densenet_multi_att_forward.68} parent=0 // pred_region
    _
  $region9: #{densenet_multi_att_forward.68} parent=0 // pred_fallthru
    _
  %p11 = scmp.eq.s32.totalorder 0, 0
  // Predicated region
  $region10: #{densenet_multi_att_forward.68} parent=0 // pred_check
    %p12 = pneg %p11
  $region11: #{densenet_multi_att_forward.68} parent=0 // pred_check_branch
    %14 = sbr.rel (%p12) target = $region13
  $region12: #{densenet_multi_att_forward.68} parent=0 // pred_region
    %15 = vst [vmem:[%s2] sm:$0x3] 0.0
  $region13: #{densenet_multi_att_forward.68} parent=0 // pred_fallthru
    _
  %v16 = vld [vmem:[%s2] sm:$0x3]
  %v17 = vld [vmem:[%s0] sm:$0xff]
  %v18 = vld [vmem:[%s0 + $0x8] sm:$0xff]
  %v19 = vld [vmem:[%s0 + $0x10] sm:$0xff]
  %v20 = vld [vmem:[%s0 + $0x18] sm:$0xff]
  %v21 = vld [vmem:[%s1] sm:$0xff]
  %v22 = vld [vmem:[%s1 + $0x8] sm:$0xff]
  %v23 = vld [vmem:[%s1 + $0x10] sm:$0xff]
  %v24 = vld [vmem:[%s1 + $0x18] sm:$0xff]
  %v25 = vmul.f32 %v17, %v21
  %v26 = vmul.f32 %v18, %v22
  %v27 = vmul.f32 %v19, %v23
  %v28 = vmul.f32 %v20, %v24
  %v29 = vadd.f32 %v25, %v26
  %v30 = vrot.slane %v29, 4
  %v31 = vadd.f32 %v29, %v30
  %v32 = vrot.slane %v31, 2
  %v33 = vadd.f32 %v31, %v32
  %v34 = vrot.slane %v33, 1
  %v35 = vadd.f32 %v33, %v34
  %v36 = vadd.f32 %v27, %v28
  %v37 = vrot.slane %v36, 4
  %v38 = vadd.f32 %v36, %v37
  %v39 = vrot.slane %v38, 2
  %v40 = vadd.f32 %v38, %v39
  %v41 = vrot.slane %v40, 1
  %v42 = vadd.f32 %v40, %v41
  %v43 = vmul.f32 %v35, 0.0625
  %v44 = vmul.f32 %v42, 0.0625
  %vm47 = vcmask 1041409
  %v48 = vsel %vm47, %v44, %v43
  %v50 = vadd.f32 %v16, %v48
  %51 = vst [vmem:[%s2] sm:$0x3] %v50
  // Predicated region
  $region14: #{densenet_multi_att_forward.68} parent=0 // pred_check
    _
  $region15: #{densenet_multi_att_forward.68} parent=0 // pred_check_branch
    %53 = sbr.rel (0) target = $region17
  $region16: #{densenet_multi_att_forward.68} parent=0 // pred_region
    _
  $region17: #{densenet_multi_att_forward.68} parent=0 // pred_fallthru
    _
  // Predicated region
  $region18: #{densenet_multi_att_forward.68} parent=0 // pred_check
    _
  $region19: #{densenet_multi_att_forward.68} parent=0 // pred_check_branch
    %55 = sbr.rel (0) target = $region21
  $region20: #{densenet_multi_att_forward.68} parent=0 // pred_region
    _
  $region21: #{densenet_multi_att_forward.68} parent=0 // pred_fallthru
    _

</llo_original>
